<compile_context>
chip_gen: v7x
topology: tpu7x:2x2x1
jax: 0.10.0
libtpu: 0.0.40
codegen_flags: <defaults>
</compile_context>

<pallas_src>
import math
import functools

import jax
import jax.numpy as jnp
from jax.experimental import pallas as pl
from jax.experimental.pallas import tpu as pltpu


def _layernorm(x, gamma, beta, eps=1e-5):
    # x: (L, D) f32, gamma/beta: (1, D) — matches torch.nn.LayerNorm(dim)
    mean = jnp.mean(x, axis=-1, keepdims=True)
    var = jnp.mean(jnp.square(x - mean), axis=-1, keepdims=True)
    return (x - mean) * jax.lax.rsqrt(var + eps) * gamma + beta


def _perceiver_attn_kernel(
    x_ref, lat_ref,
    g1_ref, b1_ref, g2_ref, b2_ref,
    wq_ref, wk_ref, wv_ref, wo_ref,
    out_ref,
    *, heads, dim_head, bt, n1, n2, dim,
):
    f32 = jnp.float32
    mxu_dtype = x_ref.dtype                 # bf16 in -> bf16 MXU operands, f32 otherwise
    scale = 1.0 / math.sqrt(dim_head)       # one-sided scaling; f32 score accumulation

    # Flatten batch into rows: big-M LayerNorm + projections.
    x2 = x_ref[...].reshape(bt * n1, dim).astype(f32)
    l2 = lat_ref[...].reshape(bt * n2, dim).astype(f32)

    xn = _layernorm(x2, g1_ref[...].astype(f32), b1_ref[...].astype(f32)).astype(mxu_dtype)
    ln = _layernorm(l2, g2_ref[...].astype(f32), b2_ref[...].astype(f32)).astype(mxu_dtype)

    o_acc = jnp.zeros((bt * n2, dim), f32)

    for h in range(heads):                  # static unroll; heads is small
        wq_h = wq_ref[h].astype(mxu_dtype)  # (D, dh)  leading-axis view, no lane slice
        wk_h = wk_ref[h].astype(mxu_dtype)
        wv_h = wv_ref[h].astype(mxu_dtype)
        wo_h = wo_ref[h].astype(mxu_dtype)  # (dh, D)

        # Per-head projections (M = Bt*N1 / Bt*N2 rows, f32 accumulate).
        q_h = jnp.dot(ln, wq_h, preferred_element_type=f32) * scale        # (bt*n2, dh)
        kx_h = jnp.dot(xn, wk_h, preferred_element_type=f32)               # (bt*n1, dh)
        kl_h = jnp.dot(ln, wk_h, preferred_element_type=f32)               # (bt*n2, dh)
        vx_h = jnp.dot(xn, wv_h, preferred_element_type=f32)
        vl_h = jnp.dot(ln, wv_h, preferred_element_type=f32)

        q3 = q_h.astype(mxu_dtype).reshape(bt, n2, dim_head)
        kx3 = kx_h.astype(mxu_dtype).reshape(bt, n1, dim_head)
        kl3 = kl_h.astype(mxu_dtype).reshape(bt, n2, dim_head)
        vx3 = vx_h.astype(mxu_dtype).reshape(bt, n1, dim_head)
        vl3 = vl_h.astype(mxu_dtype).reshape(bt, n2, dim_head)

        # Batched scores over the two key pieces (x keys, latent keys); joint f32 softmax.
        s_x = jnp.einsum('bqd,bkd->bqk', q3, kx3, preferred_element_type=f32)  # (bt,n2,n1)
        s_l = jnp.einsum('bqd,bkd->bqk', q3, kl3, preferred_element_type=f32)  # (bt,n2,n2)
        m = jnp.maximum(jnp.max(s_x, axis=-1, keepdims=True),
                        jnp.max(s_l, axis=-1, keepdims=True))
        e_x = jnp.exp(s_x - m)
        e_l = jnp.exp(s_l - m)
        denom = jnp.sum(e_x, axis=-1, keepdims=True) + jnp.sum(e_l, axis=-1, keepdims=True)
        r = pl.reciprocal(denom, approx=True)
        p_x = (e_x * r).astype(mxu_dtype)
        p_l = (e_l * r).astype(mxu_dtype)

        h_out = (jnp.einsum('bqk,bkd->bqd', p_x, vx3, preferred_element_type=f32)
                 + jnp.einsum('bqk,bkd->bqd', p_l, vl3, preferred_element_type=f32))
        h_out = h_out.reshape(bt * n2, dim_head).astype(mxu_dtype)

        # Per-head accumulation of the output projection (no lane-axis concat).
        o_acc = o_acc + jnp.dot(h_out, wo_h, preferred_element_type=f32)

    out_ref[...] = o_acc.reshape(bt, n2, dim).astype(out_ref.dtype)


def _pick_batch_block(B, max_bt=8):
    """Largest divisor of B <= max_bt, preferring >=2 grid steps (v7x megacore)."""
    divisors = [d for d in range(1, min(B, max_bt) + 1) if B % d == 0]
    bt = divisors[-1]
    if B > 1 and B // bt < 2:
        for d in reversed(divisors):
            if B // d >= 2:
                return d
    return bt


def perceiver_attention(x, latents, params, *, heads, dim_head, batch_block=None):
    """x: (B, N1, D), latents: (B, N2, D) -> (B, N2, D)."""
    B, N1, D = x.shape
    _, N2, _ = latents.shape
    inner = heads * dim_head

    bt = batch_block if batch_block is not None else _pick_batch_block(B)
    assert B % bt == 0, "batch block must divide batch size"
    grid = (B // bt,)

    g1 = params["g1"].reshape(1, D)
    b1 = params["b1"].reshape(1, D)
    g2 = params["g2"].reshape(1, D)
    b2 = params["b2"].reshape(1, D)

    # Host-side (free) re-layout of weights to per-head form -> no in-kernel slicing.
    wq = params["wq"].reshape(D, heads, dim_head).transpose(1, 0, 2)               # (h, D, dh)
    wk = params["wkv"][:, :inner].reshape(D, heads, dim_head).transpose(1, 0, 2)   # (h, D, dh)
    wv = params["wkv"][:, inner:].reshape(D, heads, dim_head).transpose(1, 0, 2)   # (h, D, dh)
    wo = params["wo"].reshape(heads, dim_head, D)                                  # (h, dh, D)

    kernel = functools.partial(
        _perceiver_attn_kernel,
        heads=heads, dim_head=dim_head, bt=bt, n1=N1, n2=N2, dim=D,
    )

    full2 = lambda s: pl.BlockSpec(s, lambda i: (0, 0))
    full3 = lambda s: pl.BlockSpec(s, lambda i: (0, 0, 0))

    return pl.pallas_call(
        kernel,
        out_shape=jax.ShapeDtypeStruct((B, N2, D), x.dtype),
        grid_spec=pltpu.PrefetchScalarGridSpec(
            num_scalar_prefetch=0,
            grid=grid,
            in_specs=[
                pl.BlockSpec((bt, N1, D), lambda i: (i, 0, 0)),
                pl.BlockSpec((bt, N2, D), lambda i: (i, 0, 0)),
                full2((1, D)), full2((1, D)), full2((1, D)), full2((1, D)),
                full3((heads, D, dim_head)),
                full3((heads, D, dim_head)),
                full3((heads, D, dim_head)),
                full3((heads, dim_head, D)),
            ],
            out_specs=pl.BlockSpec((bt, N2, D), lambda i: (i, 0, 0)),
        ),
        compiler_params=pltpu.CompilerParams(
            dimension_semantics=("parallel",),
        ),
    )(x, latents, g1, b1, g2, b2, wq, wk, wv, wo)


def perceiver_attention_ref(x, latents, params, *, heads, dim_head):
    """Pure-JAX reference mirroring the PyTorch forward pass."""
    inner = heads * dim_head

    def ln(v, g, b, eps=1e-5):
        mu = jnp.mean(v, axis=-1, keepdims=True)
        var = jnp.mean(jnp.square(v - mu), axis=-1, keepdims=True)
        return (v - mu) / jnp.sqrt(var + eps) * g + b

    xn = ln(x, params["g1"], params["b1"])
    la = ln(latents, params["g2"], params["b2"])
    b, l, _ = la.shape
    q = la @ params["wq"]
    kv_in = jnp.concatenate([xn, la], axis=-2)
    kv = kv_in @ params["wkv"]
    k, v = kv[..., :inner], kv[..., inner:]

    def rsh(t):
        bs, length, _ = t.shape
        return t.reshape(bs, length, heads, -1).transpose(0, 2, 1, 3)

    q, k, v = rsh(q), rsh(k), rsh(v)
    scale = 1.0 / math.sqrt(math.sqrt(dim_head))
    w = jnp.einsum("bhqd,bhkd->bhqk", q * scale, k * scale)
    w = jax.nn.softmax(w.astype(jnp.float32), axis=-1).astype(w.dtype)
    out = jnp.einsum("bhqk,bhkd->bhqd", w, v)
    out = out.transpose(0, 2, 1, 3).reshape(b, l, -1)
    return out @ params["wo"]


if __name__ == "__main__":
    # Small shapes consistent with the module's forward.
    B, N1, N2 = 4, 16, 8
    dim, heads, dim_head = 64, 4, 16
    inner = heads * dim_head

    key = jax.random.PRNGKey(0)
    kx, kl, kq, kkv, ko = jax.random.split(key, 5)

    x = jax.random.normal(kx, (B, N1, dim), dtype=jnp.float32)
    latents = jax.random.normal(kl, (B, N2, dim), dtype=jnp.float32)

    params = {
        # LayerNorm affine params (PyTorch default init: ones / zeros)
        "g1": jnp.ones((dim,), jnp.float32),
        "b1": jnp.zeros((dim,), jnp.float32),
        "g2": jnp.ones((dim,), jnp.float32),
        "b2": jnp.zeros((dim,), jnp.float32),
        # Linear weights stored (in, out)
        "wq": 0.05 * jax.random.normal(kq, (dim, inner), dtype=jnp.float32),
        "wkv": 0.05 * jax.random.normal(kkv, (dim, 2 * inner), dtype=jnp.float32),
        "wo": 0.05 * jax.random.normal(ko, (inner, dim), dtype=jnp.float32),
    }

    out = perceiver_attention(x, latents, params, heads=heads, dim_head=dim_head)
    out = jax.block_until_ready(out)

    ref = perceiver_attention_ref(x, latents, params, heads=heads, dim_head=dim_head)
    assert out.shape == (B, N2, dim)
    # Tolerance loosened vs. pure-f32 because of the approx (EUP) softmax reciprocal.
    assert jnp.allclose(out, ref, atol=1e-2, rtol=1e-2), "mismatch vs reference"

    print("KERNEL_OK")
</pallas_src>

<mosaic_0001>
module attributes {stable_mosaic.version = 11 : i64} {
  func.func @_perceiver_attn_kernel(%arg0: i32, %arg1: memref<2x16x64xf32, #tpu.memory_space<vmem>>, %arg2: memref<2x8x64xf32, #tpu.memory_space<vmem>>, %arg3: memref<1x64xf32, #tpu.memory_space<vmem>>, %arg4: memref<1x64xf32, #tpu.memory_space<vmem>>, %arg5: memref<1x64xf32, #tpu.memory_space<vmem>>, %arg6: memref<1x64xf32, #tpu.memory_space<vmem>>, %arg7: memref<4x64x16xf32, #tpu.memory_space<vmem>>, %arg8: memref<4x64x16xf32, #tpu.memory_space<vmem>>, %arg9: memref<4x64x16xf32, #tpu.memory_space<vmem>>, %arg10: memref<4x16x64xf32, #tpu.memory_space<vmem>>, %arg11: memref<2x8x64xf32, #tpu.memory_space<vmem>>) attributes {dimension_semantics = [#tpu.dimension_semantics<parallel>], iteration_bounds = array<i64: 2>, scalar_prefetch = 0 : i64, scratch_operands = 0 : i64, tpu.core_type = #tpu.core_type<tc>, window_params = [{transform_indices = @transform_0, window_bounds = array<i64: 2, 16, 64>}, {transform_indices = @transform_1, window_bounds = array<i64: 2, 8, 64>}, {pipeline_mode = #tpu.pipeline_mode<synchronous>, transform_indices = @transform_2, window_bounds = array<i64: 1, 64>}, {pipeline_mode = #tpu.pipeline_mode<synchronous>, transform_indices = @transform_3, window_bounds = array<i64: 1, 64>}, {pipeline_mode = #tpu.pipeline_mode<synchronous>, transform_indices = @transform_4, window_bounds = array<i64: 1, 64>}, {pipeline_mode = #tpu.pipeline_mode<synchronous>, transform_indices = @transform_5, window_bounds = array<i64: 1, 64>}, {pipeline_mode = #tpu.pipeline_mode<synchronous>, transform_indices = @transform_6, window_bounds = array<i64: 4, 64, 16>}, {pipeline_mode = #tpu.pipeline_mode<synchronous>, transform_indices = @transform_7, window_bounds = array<i64: 4, 64, 16>}, {pipeline_mode = #tpu.pipeline_mode<synchronous>, transform_indices = @transform_8, window_bounds = array<i64: 4, 64, 16>}, {pipeline_mode = #tpu.pipeline_mode<synchronous>, transform_indices = @transform_9, window_bounds = array<i64: 4, 16, 64>}, {transform_indices = @transform_10, window_bounds = array<i64: 2, 8, 64>}]} {
    %c0 = arith.constant 0 : index
    %c0_0 = arith.constant 0 : index
    %c0_1 = arith.constant 0 : index
    %0 = vector.load %arg1[%c0, %c0_0, %c0_1] : memref<2x16x64xf32, #tpu.memory_space<vmem>>, vector<2x16x64xf32>
    %1 = vector.shape_cast %0 : vector<2x16x64xf32> to vector<32x64xf32>
    %c0_2 = arith.constant 0 : index
    %c0_3 = arith.constant 0 : index
    %c0_4 = arith.constant 0 : index
    %2 = vector.load %arg2[%c0_2, %c0_3, %c0_4] : memref<2x8x64xf32, #tpu.memory_space<vmem>>, vector<2x8x64xf32>
    %3 = vector.shape_cast %2 : vector<2x8x64xf32> to vector<16x64xf32>
    %c0_5 = arith.constant 0 : index
    %c0_6 = arith.constant 0 : index
    %4 = vector.load %arg3[%c0_5, %c0_6] : memref<1x64xf32, #tpu.memory_space<vmem>>, vector<1x64xf32>
    %c0_7 = arith.constant 0 : index
    %c0_8 = arith.constant 0 : index
    %5 = vector.load %arg4[%c0_7, %c0_8] : memref<1x64xf32, #tpu.memory_space<vmem>>, vector<1x64xf32>
    %cst = arith.constant dense<0.000000e+00> : vector<32xf32>
    %6 = vector.multi_reduction <add>, %1, %cst [1] : vector<32x64xf32> to vector<32xf32>
    %7 = vector.shape_cast %6 : vector<32xf32> to vector<32x1xf32>
    %cst_9 = arith.constant 6.400000e+01 : f32
    %8 = vector.broadcast %cst_9 : f32 to vector<32x1xf32>
    %9 = arith.divf %7, %8 : vector<32x1xf32>
    %10 = vector.broadcast %9 : vector<32x1xf32> to vector<32x64xf32>
    %11 = arith.subf %1, %10 : vector<32x64xf32>
    %12 = arith.mulf %11, %11 : vector<32x64xf32>
    %cst_10 = arith.constant dense<0.000000e+00> : vector<32xf32>
    %13 = vector.multi_reduction <add>, %12, %cst_10 [1] : vector<32x64xf32> to vector<32xf32>
    %14 = vector.shape_cast %13 : vector<32xf32> to vector<32x1xf32>
    %cst_11 = arith.constant 6.400000e+01 : f32
    %15 = vector.broadcast %cst_11 : f32 to vector<32x1xf32>
    %16 = arith.divf %14, %15 : vector<32x1xf32>
    %17 = vector.broadcast %9 : vector<32x1xf32> to vector<32x64xf32>
    %18 = arith.subf %1, %17 : vector<32x64xf32>
    %cst_12 = arith.constant 9.99999974E-6 : f32
    %19 = vector.broadcast %cst_12 : f32 to vector<32x1xf32>
    %20 = arith.addf %16, %19 : vector<32x1xf32>
    %21 = math.rsqrt %20 : vector<32x1xf32>
    %22 = vector.broadcast %21 : vector<32x1xf32> to vector<32x64xf32>
    %23 = arith.mulf %18, %22 : vector<32x64xf32>
    %24 = vector.broadcast %4 : vector<1x64xf32> to vector<32x64xf32>
    %25 = arith.mulf %23, %24 : vector<32x64xf32>
    %26 = vector.broadcast %5 : vector<1x64xf32> to vector<32x64xf32>
    %27 = arith.addf %25, %26 : vector<32x64xf32>
    %c0_13 = arith.constant 0 : index
    %c0_14 = arith.constant 0 : index
    %28 = vector.load %arg5[%c0_13, %c0_14] : memref<1x64xf32, #tpu.memory_space<vmem>>, vector<1x64xf32>
    %c0_15 = arith.constant 0 : index
    %c0_16 = arith.constant 0 : index
    %29 = vector.load %arg6[%c0_15, %c0_16] : memref<1x64xf32, #tpu.memory_space<vmem>>, vector<1x64xf32>
    %cst_17 = arith.constant dense<0.000000e+00> : vector<16xf32>
    %30 = vector.multi_reduction <add>, %3, %cst_17 [1] : vector<16x64xf32> to vector<16xf32>
    %31 = vector.shape_cast %30 : vector<16xf32> to vector<16x1xf32>
    %cst_18 = arith.constant 6.400000e+01 : f32
    %32 = vector.broadcast %cst_18 : f32 to vector<16x1xf32>
    %33 = arith.divf %31, %32 : vector<16x1xf32>
    %34 = vector.broadcast %33 : vector<16x1xf32> to vector<16x64xf32>
    %35 = arith.subf %3, %34 : vector<16x64xf32>
    %36 = arith.mulf %35, %35 : vector<16x64xf32>
    %cst_19 = arith.constant dense<0.000000e+00> : vector<16xf32>
    %37 = vector.multi_reduction <add>, %36, %cst_19 [1] : vector<16x64xf32> to vector<16xf32>
    %38 = vector.shape_cast %37 : vector<16xf32> to vector<16x1xf32>
    %cst_20 = arith.constant 6.400000e+01 : f32
    %39 = vector.broadcast %cst_20 : f32 to vector<16x1xf32>
    %40 = arith.divf %38, %39 : vector<16x1xf32>
    %41 = vector.broadcast %33 : vector<16x1xf32> to vector<16x64xf32>
    %42 = arith.subf %3, %41 : vector<16x64xf32>
    %cst_21 = arith.constant 9.99999974E-6 : f32
    %43 = vector.broadcast %cst_21 : f32 to vector<16x1xf32>
    %44 = arith.addf %40, %43 : vector<16x1xf32>
    %45 = math.rsqrt %44 : vector<16x1xf32>
    %46 = vector.broadcast %45 : vector<16x1xf32> to vector<16x64xf32>
    %47 = arith.mulf %42, %46 : vector<16x64xf32>
    %48 = vector.broadcast %28 : vector<1x64xf32> to vector<16x64xf32>
    %49 = arith.mulf %47, %48 : vector<16x64xf32>
    %50 = vector.broadcast %29 : vector<1x64xf32> to vector<16x64xf32>
    %51 = arith.addf %49, %50 : vector<16x64xf32>
    %cst_22 = arith.constant 0.000000e+00 : f32
    %52 = vector.broadcast %cst_22 : f32 to vector<16x64xf32>
    %c0_23 = arith.constant 0 : index
    %c0_24 = arith.constant 0 : index
    %c0_25 = arith.constant 0 : index
    %53 = vector.load %arg7[%c0_23, %c0_24, %c0_25] : memref<4x64x16xf32, #tpu.memory_space<vmem>>, vector<1x64x16xf32>
    %54 = vector.shape_cast %53 : vector<1x64x16xf32> to vector<64x16xf32>
    %c0_26 = arith.constant 0 : index
    %c0_27 = arith.constant 0 : index
    %c0_28 = arith.constant 0 : index
    %55 = vector.load %arg8[%c0_26, %c0_27, %c0_28] : memref<4x64x16xf32, #tpu.memory_space<vmem>>, vector<1x64x16xf32>
    %56 = vector.shape_cast %55 : vector<1x64x16xf32> to vector<64x16xf32>
    %c0_29 = arith.constant 0 : index
    %c0_30 = arith.constant 0 : index
    %c0_31 = arith.constant 0 : index
    %57 = vector.load %arg9[%c0_29, %c0_30, %c0_31] : memref<4x64x16xf32, #tpu.memory_space<vmem>>, vector<1x64x16xf32>
    %58 = vector.shape_cast %57 : vector<1x64x16xf32> to vector<64x16xf32>
    %c0_32 = arith.constant 0 : index
    %c0_33 = arith.constant 0 : index
    %c0_34 = arith.constant 0 : index
    %59 = vector.load %arg10[%c0_32, %c0_33, %c0_34] : memref<4x16x64xf32, #tpu.memory_space<vmem>>, vector<1x16x64xf32>
    %60 = vector.shape_cast %59 : vector<1x16x64xf32> to vector<16x64xf32>
    %cst_35 = arith.constant dense<0.000000e+00> : vector<16x16xf32>
    %61 = tpu.matmul %51, %54, %cst_35 {dimension_numbers = #tpu.dot_dimension_numbers<[1], [0], [0], [1], [0, 0, 1, 1], [], []>} : vector<16x64xf32>, vector<64x16xf32>, vector<16x16xf32> -> vector<16x16xf32>
    %cst_36 = arith.constant 2.500000e-01 : f32
    %62 = vector.broadcast %cst_36 : f32 to vector<16x16xf32>
    %63 = arith.mulf %61, %62 : vector<16x16xf32>
    %cst_37 = arith.constant dense<0.000000e+00> : vector<32x16xf32>
    %64 = tpu.matmul %27, %56, %cst_37 {dimension_numbers = #tpu.dot_dimension_numbers<[1], [0], [0], [1], [0, 0, 1, 1], [], []>} : vector<32x64xf32>, vector<64x16xf32>, vector<32x16xf32> -> vector<32x16xf32>
    %cst_38 = arith.constant dense<0.000000e+00> : vector<16x16xf32>
    %65 = tpu.matmul %51, %56, %cst_38 {dimension_numbers = #tpu.dot_dimension_numbers<[1], [0], [0], [1], [0, 0, 1, 1], [], []>} : vector<16x64xf32>, vector<64x16xf32>, vector<16x16xf32> -> vector<16x16xf32>
    %cst_39 = arith.constant dense<0.000000e+00> : vector<32x16xf32>
    %66 = tpu.matmul %27, %58, %cst_39 {dimension_numbers = #tpu.dot_dimension_numbers<[1], [0], [0], [1], [0, 0, 1, 1], [], []>} : vector<32x64xf32>, vector<64x16xf32>, vector<32x16xf32> -> vector<32x16xf32>
    %cst_40 = arith.constant dense<0.000000e+00> : vector<16x16xf32>
    %67 = tpu.matmul %51, %58, %cst_40 {dimension_numbers = #tpu.dot_dimension_numbers<[1], [0], [0], [1], [0, 0, 1, 1], [], []>} : vector<16x64xf32>, vector<64x16xf32>, vector<16x16xf32> -> vector<16x16xf32>
    %68 = vector.shape_cast %63 : vector<16x16xf32> to vector<2x8x16xf32>
    %69 = vector.shape_cast %64 : vector<32x16xf32> to vector<2x16x16xf32>
    %70 = vector.shape_cast %65 : vector<16x16xf32> to vector<2x8x16xf32>
    %71 = vector.shape_cast %66 : vector<32x16xf32> to vector<2x16x16xf32>
    %72 = vector.shape_cast %67 : vector<16x16xf32> to vector<2x8x16xf32>
    "tpu.trace_start"() <{level = 10 : i32, message = "bqd,bkd->bqk"}> : () -> ()
    %cst_41 = arith.constant dense<0.000000e+00> : vector<2x8x16xf32>
    %73 = tpu.matmul %68, %69, %cst_41 {dimension_numbers = #tpu.dot_dimension_numbers<[2], [2], [1], [1], [0, 0, 0, 1, 1, 1], [0], [0]>} : vector<2x8x16xf32>, vector<2x16x16xf32>, vector<2x8x16xf32> -> vector<2x8x16xf32>
    %cst_42 = arith.constant dense<0.000000e+00> : vector<2x8x8xf32>
    %74 = tpu.matmul %68, %70, %cst_42 {dimension_numbers = #tpu.dot_dimension_numbers<[2], [2], [1], [1], [0, 0, 0, 1, 1, 1], [0], [0]>} : vector<2x8x16xf32>, vector<2x8x16xf32>, vector<2x8x8xf32> -> vector<2x8x8xf32>
    "tpu.trace_stop"() : () -> ()
    %cst_43 = arith.constant dense<0xFF800000> : vector<2x8xf32>
    %75 = vector.multi_reduction <maximumf>, %73, %cst_43 [2] : vector<2x8x16xf32> to vector<2x8xf32>
    %76 = vector.shape_cast %75 : vector<2x8xf32> to vector<2x8x1xf32>
    %cst_44 = arith.constant dense<0xFF800000> : vector<2x8xf32>
    %77 = vector.multi_reduction <maximumf>, %74, %cst_44 [2] : vector<2x8x8xf32> to vector<2x8xf32>
    %78 = vector.shape_cast %77 : vector<2x8xf32> to vector<2x8x1xf32>
    %79 = arith.maximumf %76, %78 : vector<2x8x1xf32>
    %80 = vector.broadcast %79 : vector<2x8x1xf32> to vector<2x8x16xf32>
    %81 = arith.subf %73, %80 : vector<2x8x16xf32>
    %82 = math.exp %81 : vector<2x8x16xf32>
    %83 = vector.broadcast %79 : vector<2x8x1xf32> to vector<2x8x8xf32>
    %84 = arith.subf %74, %83 : vector<2x8x8xf32>
    %85 = math.exp %84 : vector<2x8x8xf32>
    %cst_45 = arith.constant dense<0.000000e+00> : vector<2x8xf32>
    %86 = vector.multi_reduction <add>, %82, %cst_45 [2] : vector<2x8x16xf32> to vector<2x8xf32>
    %87 = vector.shape_cast %86 : vector<2x8xf32> to vector<2x8x1xf32>
    %cst_46 = arith.constant dense<0.000000e+00> : vector<2x8xf32>
    %88 = vector.multi_reduction <add>, %85, %cst_46 [2] : vector<2x8x8xf32> to vector<2x8xf32>
    %89 = vector.shape_cast %88 : vector<2x8xf32> to vector<2x8x1xf32>
    %90 = arith.addf %87, %89 : vector<2x8x1xf32>
    %91 = tpu.reciprocal %90 {approx = true} : vector<2x8x1xf32> -> vector<2x8x1xf32>
    %92 = vector.broadcast %91 : vector<2x8x1xf32> to vector<2x8x16xf32>
    %93 = arith.mulf %82, %92 : vector<2x8x16xf32>
    %94 = vector.broadcast %91 : vector<2x8x1xf32> to vector<2x8x8xf32>
    %95 = arith.mulf %85, %94 : vector<2x8x8xf32>
    "tpu.trace_start"() <{level = 10 : i32, message = "bqk,bkd->bqd"}> : () -> ()
    %cst_47 = arith.constant dense<0.000000e+00> : vector<2x8x16xf32>
    %96 = tpu.matmul %93, %71, %cst_47 {dimension_numbers = #tpu.dot_dimension_numbers<[2], [1], [1], [2], [0, 0, 0, 1, 1, 2], [0], [0]>} : vector<2x8x16xf32>, vector<2x16x16xf32>, vector<2x8x16xf32> -> vector<2x8x16xf32>
    %cst_48 = arith.constant dense<0.000000e+00> : vector<2x8x16xf32>
    %97 = tpu.matmul %95, %72, %cst_48 {dimension_numbers = #tpu.dot_dimension_numbers<[2], [1], [1], [2], [0, 0, 0, 1, 1, 2], [0], [0]>} : vector<2x8x8xf32>, vector<2x8x16xf32>, vector<2x8x16xf32> -> vector<2x8x16xf32>
    "tpu.trace_stop"() : () -> ()
    %98 = arith.addf %96, %97 : vector<2x8x16xf32>
    %99 = vector.shape_cast %98 : vector<2x8x16xf32> to vector<16x16xf32>
    %cst_49 = arith.constant dense<0.000000e+00> : vector<16x64xf32>
    %100 = tpu.matmul %99, %60, %cst_49 {dimension_numbers = #tpu.dot_dimension_numbers<[1], [0], [0], [1], [0, 0, 1, 1], [], []>} : vector<16x16xf32>, vector<16x64xf32>, vector<16x64xf32> -> vector<16x64xf32>
    %101 = arith.addf %52, %100 : vector<16x64xf32>
    %c1 = arith.constant 1 : index
    %c0_50 = arith.constant 0 : index
    %c0_51 = arith.constant 0 : index
    %102 = vector.load %arg7[%c1, %c0_50, %c0_51] : memref<4x64x16xf32, #tpu.memory_space<vmem>>, vector<1x64x16xf32>
    %103 = vector.shape_cast %102 : vector<1x64x16xf32> to vector<64x16xf32>
    %c1_52 = arith.constant 1 : index
    %c0_53 = arith.constant 0 : index
    %c0_54 = arith.constant 0 : index
    %104 = vector.load %arg8[%c1_52, %c0_53, %c0_54] : memref<4x64x16xf32, #tpu.memory_space<vmem>>, vector<1x64x16xf32>
    %105 = vector.shape_cast %104 : vector<1x64x16xf32> to vector<64x16xf32>
    %c1_55 = arith.constant 1 : index
    %c0_56 = arith.constant 0 : index
    %c0_57 = arith.constant 0 : index
    %106 = vector.load %arg9[%c1_55, %c0_56, %c0_57] : memref<4x64x16xf32, #tpu.memory_space<vmem>>, vector<1x64x16xf32>
    %107 = vector.shape_cast %106 : vector<1x64x16xf32> to vector<64x16xf32>
    %c1_58 = arith.constant 1 : index
    %c0_59 = arith.constant 0 : index
    %c0_60 = arith.constant 0 : index
    %108 = vector.load %arg10[%c1_58, %c0_59, %c0_60] : memref<4x16x64xf32, #tpu.memory_space<vmem>>, vector<1x16x64xf32>
    %109 = vector.shape_cast %108 : vector<1x16x64xf32> to vector<16x64xf32>
    %cst_61 = arith.constant dense<0.000000e+00> : vector<16x16xf32>
    %110 = tpu.matmul %51, %103, %cst_61 {dimension_numbers = #tpu.dot_dimension_numbers<[1], [0], [0], [1], [0, 0, 1, 1], [], []>} : vector<16x64xf32>, vector<64x16xf32>, vector<16x16xf32> -> vector<16x16xf32>
    %cst_62 = arith.constant 2.500000e-01 : f32
    %111 = vector.broadcast %cst_62 : f32 to vector<16x16xf32>
    %112 = arith.mulf %110, %111 : vector<16x16xf32>
    %cst_63 = arith.constant dense<0.000000e+00> : vector<32x16xf32>
    %113 = tpu.matmul %27, %105, %cst_63 {dimension_numbers = #tpu.dot_dimension_numbers<[1], [0], [0], [1], [0, 0, 1, 1], [], []>} : vector<32x64xf32>, vector<64x16xf32>, vector<32x16xf32> -> vector<32x16xf32>
    %cst_64 = arith.constant dense<0.000000e+00> : vector<16x16xf32>
    %114 = tpu.matmul %51, %105, %cst_64 {dimension_numbers = #tpu.dot_dimension_numbers<[1], [0], [0], [1], [0, 0, 1, 1], [], []>} : vector<16x64xf32>, vector<64x16xf32>, vector<16x16xf32> -> vector<16x16xf32>
    %cst_65 = arith.constant dense<0.000000e+00> : vector<32x16xf32>
    %115 = tpu.matmul %27, %107, %cst_65 {dimension_numbers = #tpu.dot_dimension_numbers<[1], [0], [0], [1], [0, 0, 1, 1], [], []>} : vector<32x64xf32>, vector<64x16xf32>, vector<32x16xf32> -> vector<32x16xf32>
    %cst_66 = arith.constant dense<0.000000e+00> : vector<16x16xf32>
    %116 = tpu.matmul %51, %107, %cst_66 {dimension_numbers = #tpu.dot_dimension_numbers<[1], [0], [0], [1], [0, 0, 1, 1], [], []>} : vector<16x64xf32>, vector<64x16xf32>, vector<16x16xf32> -> vector<16x16xf32>
    %117 = vector.shape_cast %112 : vector<16x16xf32> to vector<2x8x16xf32>
    %118 = vector.shape_cast %113 : vector<32x16xf32> to vector<2x16x16xf32>
    %119 = vector.shape_cast %114 : vector<16x16xf32> to vector<2x8x16xf32>
    %120 = vector.shape_cast %115 : vector<32x16xf32> to vector<2x16x16xf32>
    %121 = vector.shape_cast %116 : vector<16x16xf32> to vector<2x8x16xf32>
    "tpu.trace_start"() <{level = 10 : i32, message = "bqd,bkd->bqk"}> : () -> ()
    %cst_67 = arith.constant dense<0.000000e+00> : vector<2x8x16xf32>
    %122 = tpu.matmul %117, %118, %cst_67 {dimension_numbers = #tpu.dot_dimension_numbers<[2], [2], [1], [1], [0, 0, 0, 1, 1, 1], [0], [0]>} : vector<2x8x16xf32>, vector<2x16x16xf32>, vector<2x8x16xf32> -> vector<2x8x16xf32>
    %cst_68 = arith.constant dense<0.000000e+00> : vector<2x8x8xf32>
    %123 = tpu.matmul %117, %119, %cst_68 {dimension_numbers = #tpu.dot_dimension_numbers<[2], [2], [1], [1], [0, 0, 0, 1, 1, 1], [0], [0]>} : vector<2x8x16xf32>, vector<2x8x16xf32>, vector<2x8x8xf32> -> vector<2x8x8xf32>
    "tpu.trace_stop"() : () -> ()
    %cst_69 = arith.constant dense<0xFF800000> : vector<2x8xf32>
    %124 = vector.multi_reduction <maximumf>, %122, %cst_69 [2] : vector<2x8x16xf32> to vector<2x8xf32>
    %125 = vector.shape_cast %124 : vector<2x8xf32> to vector<2x8x1xf32>
    %cst_70 = arith.constant dense<0xFF800000> : vector<2x8xf32>
    %126 = vector.multi_reduction <maximumf>, %123, %cst_70 [2] : vector<2x8x8xf32> to vector<2x8xf32>
    %127 = vector.shape_cast %126 : vector<2x8xf32> to vector<2x8x1xf32>
    %128 = arith.maximumf %125, %127 : vector<2x8x1xf32>
    %129 = vector.broadcast %128 : vector<2x8x1xf32> to vector<2x8x16xf32>
    %130 = arith.subf %122, %129 : vector<2x8x16xf32>
    %131 = math.exp %130 : vector<2x8x16xf32>
    %132 = vector.broadcast %128 : vector<2x8x1xf32> to vector<2x8x8xf32>
    %133 = arith.subf %123, %132 : vector<2x8x8xf32>
    %134 = math.exp %133 : vector<2x8x8xf32>
    %cst_71 = arith.constant dense<0.000000e+00> : vector<2x8xf32>
    %135 = vector.multi_reduction <add>, %131, %cst_71 [2] : vector<2x8x16xf32> to vector<2x8xf32>
    %136 = vector.shape_cast %135 : vector<2x8xf32> to vector<2x8x1xf32>
    %cst_72 = arith.constant dense<0.000000e+00> : vector<2x8xf32>
    %137 = vector.multi_reduction <add>, %134, %cst_72 [2] : vector<2x8x8xf32> to vector<2x8xf32>
    %138 = vector.shape_cast %137 : vector<2x8xf32> to vector<2x8x1xf32>
    %139 = arith.addf %136, %138 : vector<2x8x1xf32>
    %140 = tpu.reciprocal %139 {approx = true} : vector<2x8x1xf32> -> vector<2x8x1xf32>
    %141 = vector.broadcast %140 : vector<2x8x1xf32> to vector<2x8x16xf32>
    %142 = arith.mulf %131, %141 : vector<2x8x16xf32>
    %143 = vector.broadcast %140 : vector<2x8x1xf32> to vector<2x8x8xf32>
    %144 = arith.mulf %134, %143 : vector<2x8x8xf32>
    "tpu.trace_start"() <{level = 10 : i32, message = "bqk,bkd->bqd"}> : () -> ()
    %cst_73 = arith.constant dense<0.000000e+00> : vector<2x8x16xf32>
    %145 = tpu.matmul %142, %120, %cst_73 {dimension_numbers = #tpu.dot_dimension_numbers<[2], [1], [1], [2], [0, 0, 0, 1, 1, 2], [0], [0]>} : vector<2x8x16xf32>, vector<2x16x16xf32>, vector<2x8x16xf32> -> vector<2x8x16xf32>
    %cst_74 = arith.constant dense<0.000000e+00> : vector<2x8x16xf32>
    %146 = tpu.matmul %144, %121, %cst_74 {dimension_numbers = #tpu.dot_dimension_numbers<[2], [1], [1], [2], [0, 0, 0, 1, 1, 2], [0], [0]>} : vector<2x8x8xf32>, vector<2x8x16xf32>, vector<2x8x16xf32> -> vector<2x8x16xf32>
    "tpu.trace_stop"() : () -> ()
    %147 = arith.addf %145, %146 : vector<2x8x16xf32>
    %148 = vector.shape_cast %147 : vector<2x8x16xf32> to vector<16x16xf32>
    %cst_75 = arith.constant dense<0.000000e+00> : vector<16x64xf32>
    %149 = tpu.matmul %148, %109, %cst_75 {dimension_numbers = #tpu.dot_dimension_numbers<[1], [0], [0], [1], [0, 0, 1, 1], [], []>} : vector<16x16xf32>, vector<16x64xf32>, vector<16x64xf32> -> vector<16x64xf32>
    %150 = arith.addf %101, %149 : vector<16x64xf32>
    %c2 = arith.constant 2 : index
    %c0_76 = arith.constant 0 : index
    %c0_77 = arith.constant 0 : index
    %151 = vector.load %arg7[%c2, %c0_76, %c0_77] : memref<4x64x16xf32, #tpu.memory_space<vmem>>, vector<1x64x16xf32>
    %152 = vector.shape_cast %151 : vector<1x64x16xf32> to vector<64x16xf32>
    %c2_78 = arith.constant 2 : index
    %c0_79 = arith.constant 0 : index
    %c0_80 = arith.constant 0 : index
    %153 = vector.load %arg8[%c2_78, %c0_79, %c0_80] : memref<4x64x16xf32, #tpu.memory_space<vmem>>, vector<1x64x16xf32>
    %154 = vector.shape_cast %153 : vector<1x64x16xf32> to vector<64x16xf32>
    %c2_81 = arith.constant 2 : index
    %c0_82 = arith.constant 0 : index
    %c0_83 = arith.constant 0 : index
    %155 = vector.load %arg9[%c2_81, %c0_82, %c0_83] : memref<4x64x16xf32, #tpu.memory_space<vmem>>, vector<1x64x16xf32>
    %156 = vector.shape_cast %155 : vector<1x64x16xf32> to vector<64x16xf32>
    %c2_84 = arith.constant 2 : index
    %c0_85 = arith.constant 0 : index
    %c0_86 = arith.constant 0 : index
    %157 = vector.load %arg10[%c2_84, %c0_85, %c0_86] : memref<4x16x64xf32, #tpu.memory_space<vmem>>, vector<1x16x64xf32>
    %158 = vector.shape_cast %157 : vector<1x16x64xf32> to vector<16x64xf32>
    %cst_87 = arith.constant dense<0.000000e+00> : vector<16x16xf32>
    %159 = tpu.matmul %51, %152, %cst_87 {dimension_numbers = #tpu.dot_dimension_numbers<[1], [0], [0], [1], [0, 0, 1, 1], [], []>} : vector<16x64xf32>, vector<64x16xf32>, vector<16x16xf32> -> vector<16x16xf32>
    %cst_88 = arith.constant 2.500000e-01 : f32
    %160 = vector.broadcast %cst_88 : f32 to vector<16x16xf32>
    %161 = arith.mulf %159, %160 : vector<16x16xf32>
    %cst_89 = arith.constant dense<0.000000e+00> : vector<32x16xf32>
    %162 = tpu.matmul %27, %154, %cst_89 {dimension_numbers = #tpu.dot_dimension_numbers<[1], [0], [0], [1], [0, 0, 1, 1], [], []>} : vector<32x64xf32>, vector<64x16xf32>, vector<32x16xf32> -> vector<32x16xf32>
    %cst_90 = arith.constant dense<0.000000e+00> : vector<16x16xf32>
    %163 = tpu.matmul %51, %154, %cst_90 {dimension_numbers = #tpu.dot_dimension_numbers<[1], [0], [0], [1], [0, 0, 1, 1], [], []>} : vector<16x64xf32>, vector<64x16xf32>, vector<16x16xf32> -> vector<16x16xf32>
    %cst_91 = arith.constant dense<0.000000e+00> : vector<32x16xf32>
    %164 = tpu.matmul %27, %156, %cst_91 {dimension_numbers = #tpu.dot_dimension_numbers<[1], [0], [0], [1], [0, 0, 1, 1], [], []>} : vector<32x64xf32>, vector<64x16xf32>, vector<32x16xf32> -> vector<32x16xf32>
    %cst_92 = arith.constant dense<0.000000e+00> : vector<16x16xf32>
    %165 = tpu.matmul %51, %156, %cst_92 {dimension_numbers = #tpu.dot_dimension_numbers<[1], [0], [0], [1], [0, 0, 1, 1], [], []>} : vector<16x64xf32>, vector<64x16xf32>, vector<16x16xf32> -> vector<16x16xf32>
    %166 = vector.shape_cast %161 : vector<16x16xf32> to vector<2x8x16xf32>
    %167 = vector.shape_cast %162 : vector<32x16xf32> to vector<2x16x16xf32>
    %168 = vector.shape_cast %163 : vector<16x16xf32> to vector<2x8x16xf32>
    %169 = vector.shape_cast %164 : vector<32x16xf32> to vector<2x16x16xf32>
    %170 = vector.shape_cast %165 : vector<16x16xf32> to vector<2x8x16xf32>
    "tpu.trace_start"() <{level = 10 : i32, message = "bqd,bkd->bqk"}> : () -> ()
    %cst_93 = arith.constant dense<0.000000e+00> : vector<2x8x16xf32>
    %171 = tpu.matmul %166, %167, %cst_93 {dimension_numbers = #tpu.dot_dimension_numbers<[2], [2], [1], [1], [0, 0, 0, 1, 1, 1], [0], [0]>} : vector<2x8x16xf32>, vector<2x16x16xf32>, vector<2x8x16xf32> -> vector<2x8x16xf32>
    %cst_94 = arith.constant dense<0.000000e+00> : vector<2x8x8xf32>
    %172 = tpu.matmul %166, %168, %cst_94 {dimension_numbers = #tpu.dot_dimension_numbers<[2], [2], [1], [1], [0, 0, 0, 1, 1, 1], [0], [0]>} : vector<2x8x16xf32>, vector<2x8x16xf32>, vector<2x8x8xf32> -> vector<2x8x8xf32>
    "tpu.trace_stop"() : () -> ()
    %cst_95 = arith.constant dense<0xFF800000> : vector<2x8xf32>
    %173 = vector.multi_reduction <maximumf>, %171, %cst_95 [2] : vector<2x8x16xf32> to vector<2x8xf32>
    %174 = vector.shape_cast %173 : vector<2x8xf32> to vector<2x8x1xf32>
    %cst_96 = arith.constant dense<0xFF800000> : vector<2x8xf32>
    %175 = vector.multi_reduction <maximumf>, %172, %cst_96 [2] : vector<2x8x8xf32> to vector<2x8xf32>
    %176 = vector.shape_cast %175 : vector<2x8xf32> to vector<2x8x1xf32>
    %177 = arith.maximumf %174, %176 : vector<2x8x1xf32>
    %178 = vector.broadcast %177 : vector<2x8x1xf32> to vector<2x8x16xf32>
    %179 = arith.subf %171, %178 : vector<2x8x16xf32>
    %180 = math.exp %179 : vector<2x8x16xf32>
    %181 = vector.broadcast %177 : vector<2x8x1xf32> to vector<2x8x8xf32>
    %182 = arith.subf %172, %181 : vector<2x8x8xf32>
    %183 = math.exp %182 : vector<2x8x8xf32>
    %cst_97 = arith.constant dense<0.000000e+00> : vector<2x8xf32>
    %184 = vector.multi_reduction <add>, %180, %cst_97 [2] : vector<2x8x16xf32> to vector<2x8xf32>
    %185 = vector.shape_cast %184 : vector<2x8xf32> to vector<2x8x1xf32>
    %cst_98 = arith.constant dense<0.000000e+00> : vector<2x8xf32>
    %186 = vector.multi_reduction <add>, %183, %cst_98 [2] : vector<2x8x8xf32> to vector<2x8xf32>
    %187 = vector.shape_cast %186 : vector<2x8xf32> to vector<2x8x1xf32>
    %188 = arith.addf %185, %187 : vector<2x8x1xf32>
    %189 = tpu.reciprocal %188 {approx = true} : vector<2x8x1xf32> -> vector<2x8x1xf32>
    %190 = vector.broadcast %189 : vector<2x8x1xf32> to vector<2x8x16xf32>
    %191 = arith.mulf %180, %190 : vector<2x8x16xf32>
    %192 = vector.broadcast %189 : vector<2x8x1xf32> to vector<2x8x8xf32>
    %193 = arith.mulf %183, %192 : vector<2x8x8xf32>
    "tpu.trace_start"() <{level = 10 : i32, message = "bqk,bkd->bqd"}> : () -> ()
    %cst_99 = arith.constant dense<0.000000e+00> : vector<2x8x16xf32>
    %194 = tpu.matmul %191, %169, %cst_99 {dimension_numbers = #tpu.dot_dimension_numbers<[2], [1], [1], [2], [0, 0, 0, 1, 1, 2], [0], [0]>} : vector<2x8x16xf32>, vector<2x16x16xf32>, vector<2x8x16xf32> -> vector<2x8x16xf32>
    %cst_100 = arith.constant dense<0.000000e+00> : vector<2x8x16xf32>
    %195 = tpu.matmul %193, %170, %cst_100 {dimension_numbers = #tpu.dot_dimension_numbers<[2], [1], [1], [2], [0, 0, 0, 1, 1, 2], [0], [0]>} : vector<2x8x8xf32>, vector<2x8x16xf32>, vector<2x8x16xf32> -> vector<2x8x16xf32>
    "tpu.trace_stop"() : () -> ()
    %196 = arith.addf %194, %195 : vector<2x8x16xf32>
    %197 = vector.shape_cast %196 : vector<2x8x16xf32> to vector<16x16xf32>
    %cst_101 = arith.constant dense<0.000000e+00> : vector<16x64xf32>
    %198 = tpu.matmul %197, %158, %cst_101 {dimension_numbers = #tpu.dot_dimension_numbers<[1], [0], [0], [1], [0, 0, 1, 1], [], []>} : vector<16x16xf32>, vector<16x64xf32>, vector<16x64xf32> -> vector<16x64xf32>
    %199 = arith.addf %150, %198 : vector<16x64xf32>
    %c3 = arith.constant 3 : index
    %c0_102 = arith.constant 0 : index
    %c0_103 = arith.constant 0 : index
    %200 = vector.load %arg7[%c3, %c0_102, %c0_103] : memref<4x64x16xf32, #tpu.memory_space<vmem>>, vector<1x64x16xf32>
    %201 = vector.shape_cast %200 : vector<1x64x16xf32> to vector<64x16xf32>
    %c3_104 = arith.constant 3 : index
    %c0_105 = arith.constant 0 : index
    %c0_106 = arith.constant 0 : index
    %202 = vector.load %arg8[%c3_104, %c0_105, %c0_106] : memref<4x64x16xf32, #tpu.memory_space<vmem>>, vector<1x64x16xf32>
    %203 = vector.shape_cast %202 : vector<1x64x16xf32> to vector<64x16xf32>
    %c3_107 = arith.constant 3 : index
    %c0_108 = arith.constant 0 : index
    %c0_109 = arith.constant 0 : index
    %204 = vector.load %arg9[%c3_107, %c0_108, %c0_109] : memref<4x64x16xf32, #tpu.memory_space<vmem>>, vector<1x64x16xf32>
    %205 = vector.shape_cast %204 : vector<1x64x16xf32> to vector<64x16xf32>
    %c3_110 = arith.constant 3 : index
    %c0_111 = arith.constant 0 : index
    %c0_112 = arith.constant 0 : index
    %206 = vector.load %arg10[%c3_110, %c0_111, %c0_112] : memref<4x16x64xf32, #tpu.memory_space<vmem>>, vector<1x16x64xf32>
    %207 = vector.shape_cast %206 : vector<1x16x64xf32> to vector<16x64xf32>
    %cst_113 = arith.constant dense<0.000000e+00> : vector<16x16xf32>
    %208 = tpu.matmul %51, %201, %cst_113 {dimension_numbers = #tpu.dot_dimension_numbers<[1], [0], [0], [1], [0, 0, 1, 1], [], []>} : vector<16x64xf32>, vector<64x16xf32>, vector<16x16xf32> -> vector<16x16xf32>
    %cst_114 = arith.constant 2.500000e-01 : f32
    %209 = vector.broadcast %cst_114 : f32 to vector<16x16xf32>
    %210 = arith.mulf %208, %209 : vector<16x16xf32>
    %cst_115 = arith.constant dense<0.000000e+00> : vector<32x16xf32>
    %211 = tpu.matmul %27, %203, %cst_115 {dimension_numbers = #tpu.dot_dimension_numbers<[1], [0], [0], [1], [0, 0, 1, 1], [], []>} : vector<32x64xf32>, vector<64x16xf32>, vector<32x16xf32> -> vector<32x16xf32>
    %cst_116 = arith.constant dense<0.000000e+00> : vector<16x16xf32>
    %212 = tpu.matmul %51, %203, %cst_116 {dimension_numbers = #tpu.dot_dimension_numbers<[1], [0], [0], [1], [0, 0, 1, 1], [], []>} : vector<16x64xf32>, vector<64x16xf32>, vector<16x16xf32> -> vector<16x16xf32>
    %cst_117 = arith.constant dense<0.000000e+00> : vector<32x16xf32>
    %213 = tpu.matmul %27, %205, %cst_117 {dimension_numbers = #tpu.dot_dimension_numbers<[1], [0], [0], [1], [0, 0, 1, 1], [], []>} : vector<32x64xf32>, vector<64x16xf32>, vector<32x16xf32> -> vector<32x16xf32>
    %cst_118 = arith.constant dense<0.000000e+00> : vector<16x16xf32>
    %214 = tpu.matmul %51, %205, %cst_118 {dimension_numbers = #tpu.dot_dimension_numbers<[1], [0], [0], [1], [0, 0, 1, 1], [], []>} : vector<16x64xf32>, vector<64x16xf32>, vector<16x16xf32> -> vector<16x16xf32>
    %215 = vector.shape_cast %210 : vector<16x16xf32> to vector<2x8x16xf32>
    %216 = vector.shape_cast %211 : vector<32x16xf32> to vector<2x16x16xf32>
    %217 = vector.shape_cast %212 : vector<16x16xf32> to vector<2x8x16xf32>
    %218 = vector.shape_cast %213 : vector<32x16xf32> to vector<2x16x16xf32>
    %219 = vector.shape_cast %214 : vector<16x16xf32> to vector<2x8x16xf32>
    "tpu.trace_start"() <{level = 10 : i32, message = "bqd,bkd->bqk"}> : () -> ()
    %cst_119 = arith.constant dense<0.000000e+00> : vector<2x8x16xf32>
    %220 = tpu.matmul %215, %216, %cst_119 {dimension_numbers = #tpu.dot_dimension_numbers<[2], [2], [1], [1], [0, 0, 0, 1, 1, 1], [0], [0]>} : vector<2x8x16xf32>, vector<2x16x16xf32>, vector<2x8x16xf32> -> vector<2x8x16xf32>
    %cst_120 = arith.constant dense<0.000000e+00> : vector<2x8x8xf32>
    %221 = tpu.matmul %215, %217, %cst_120 {dimension_numbers = #tpu.dot_dimension_numbers<[2], [2], [1], [1], [0, 0, 0, 1, 1, 1], [0], [0]>} : vector<2x8x16xf32>, vector<2x8x16xf32>, vector<2x8x8xf32> -> vector<2x8x8xf32>
    "tpu.trace_stop"() : () -> ()
    %cst_121 = arith.constant dense<0xFF800000> : vector<2x8xf32>
    %222 = vector.multi_reduction <maximumf>, %220, %cst_121 [2] : vector<2x8x16xf32> to vector<2x8xf32>
    %223 = vector.shape_cast %222 : vector<2x8xf32> to vector<2x8x1xf32>
    %cst_122 = arith.constant dense<0xFF800000> : vector<2x8xf32>
    %224 = vector.multi_reduction <maximumf>, %221, %cst_122 [2] : vector<2x8x8xf32> to vector<2x8xf32>
    %225 = vector.shape_cast %224 : vector<2x8xf32> to vector<2x8x1xf32>
    %226 = arith.maximumf %223, %225 : vector<2x8x1xf32>
    %227 = vector.broadcast %226 : vector<2x8x1xf32> to vector<2x8x16xf32>
    %228 = arith.subf %220, %227 : vector<2x8x16xf32>
    %229 = math.exp %228 : vector<2x8x16xf32>
    %230 = vector.broadcast %226 : vector<2x8x1xf32> to vector<2x8x8xf32>
    %231 = arith.subf %221, %230 : vector<2x8x8xf32>
    %232 = math.exp %231 : vector<2x8x8xf32>
    %cst_123 = arith.constant dense<0.000000e+00> : vector<2x8xf32>
    %233 = vector.multi_reduction <add>, %229, %cst_123 [2] : vector<2x8x16xf32> to vector<2x8xf32>
    %234 = vector.shape_cast %233 : vector<2x8xf32> to vector<2x8x1xf32>
    %cst_124 = arith.constant dense<0.000000e+00> : vector<2x8xf32>
    %235 = vector.multi_reduction <add>, %232, %cst_124 [2] : vector<2x8x8xf32> to vector<2x8xf32>
    %236 = vector.shape_cast %235 : vector<2x8xf32> to vector<2x8x1xf32>
    %237 = arith.addf %234, %236 : vector<2x8x1xf32>
    %238 = tpu.reciprocal %237 {approx = true} : vector<2x8x1xf32> -> vector<2x8x1xf32>
    %239 = vector.broadcast %238 : vector<2x8x1xf32> to vector<2x8x16xf32>
    %240 = arith.mulf %229, %239 : vector<2x8x16xf32>
    %241 = vector.broadcast %238 : vector<2x8x1xf32> to vector<2x8x8xf32>
    %242 = arith.mulf %232, %241 : vector<2x8x8xf32>
    "tpu.trace_start"() <{level = 10 : i32, message = "bqk,bkd->bqd"}> : () -> ()
    %cst_125 = arith.constant dense<0.000000e+00> : vector<2x8x16xf32>
    %243 = tpu.matmul %240, %218, %cst_125 {dimension_numbers = #tpu.dot_dimension_numbers<[2], [1], [1], [2], [0, 0, 0, 1, 1, 2], [0], [0]>} : vector<2x8x16xf32>, vector<2x16x16xf32>, vector<2x8x16xf32> -> vector<2x8x16xf32>
    %cst_126 = arith.constant dense<0.000000e+00> : vector<2x8x16xf32>
    %244 = tpu.matmul %242, %219, %cst_126 {dimension_numbers = #tpu.dot_dimension_numbers<[2], [1], [1], [2], [0, 0, 0, 1, 1, 2], [0], [0]>} : vector<2x8x8xf32>, vector<2x8x16xf32>, vector<2x8x16xf32> -> vector<2x8x16xf32>
    "tpu.trace_stop"() : () -> ()
    %245 = arith.addf %243, %244 : vector<2x8x16xf32>
    %246 = vector.shape_cast %245 : vector<2x8x16xf32> to vector<16x16xf32>
    %cst_127 = arith.constant dense<0.000000e+00> : vector<16x64xf32>
    %247 = tpu.matmul %246, %207, %cst_127 {dimension_numbers = #tpu.dot_dimension_numbers<[1], [0], [0], [1], [0, 0, 1, 1], [], []>} : vector<16x16xf32>, vector<16x64xf32>, vector<16x64xf32> -> vector<16x64xf32>
    %248 = arith.addf %199, %247 : vector<16x64xf32>
    %249 = vector.shape_cast %248 : vector<16x64xf32> to vector<2x8x64xf32>
    %c0_128 = arith.constant 0 : index
    %c0_129 = arith.constant 0 : index
    %c0_130 = arith.constant 0 : index
    %250 = vector.load %arg11[%c0_128, %c0_129, %c0_130] : memref<2x8x64xf32, #tpu.memory_space<vmem>>, vector<2x8x64xf32>
    tpu.vector_store %arg11[%c0_128, %c0_129, %c0_130], %249 {strides = array<i32>} : memref<2x8x64xf32, #tpu.memory_space<vmem>>, vector<2x8x64xf32>,
    return
  }
  func.func @transform_0(%arg0: i32) -> (i32, i32, i32) {
    %c0_i32 = arith.constant 0 : i32
    %c0_i32_0 = arith.constant 0 : i32
    %c0_i32_1 = arith.constant 0 : i32
    return %arg0, %c0_i32, %c0_i32_0 : i32, i32, i32
  }
  func.func @transform_1(%arg0: i32) -> (i32, i32, i32) {
    %c0_i32 = arith.constant 0 : i32
    %c0_i32_0 = arith.constant 0 : i32
    %c0_i32_1 = arith.constant 0 : i32
    return %arg0, %c0_i32, %c0_i32_0 : i32, i32, i32
  }
  func.func @transform_2(%arg0: i32) -> (i32, i32) {
    %c0_i32 = arith.constant 0 : i32
    %c0_i32_0 = arith.constant 0 : i32
    %c0_i32_1 = arith.constant 0 : i32
    return %c0_i32, %c0_i32_0 : i32, i32
  }
  func.func @transform_3(%arg0: i32) -> (i32, i32) {
    %c0_i32 = arith.constant 0 : i32
    %c0_i32_0 = arith.constant 0 : i32
    %c0_i32_1 = arith.constant 0 : i32
    return %c0_i32, %c0_i32_0 : i32, i32
  }
  func.func @transform_4(%arg0: i32) -> (i32, i32) {
    %c0_i32 = arith.constant 0 : i32
    %c0_i32_0 = arith.constant 0 : i32
    %c0_i32_1 = arith.constant 0 : i32
    return %c0_i32, %c0_i32_0 : i32, i32
  }
  func.func @transform_5(%arg0: i32) -> (i32, i32) {
    %c0_i32 = arith.constant 0 : i32
    %c0_i32_0 = arith.constant 0 : i32
    %c0_i32_1 = arith.constant 0 : i32
    return %c0_i32, %c0_i32_0 : i32, i32
  }
  func.func @transform_6(%arg0: i32) -> (i32, i32, i32) {
    %c0_i32 = arith.constant 0 : i32
    %c0_i32_0 = arith.constant 0 : i32
    %c0_i32_1 = arith.constant 0 : i32
    %c0_i32_2 = arith.constant 0 : i32
    return %c0_i32, %c0_i32_0, %c0_i32_1 : i32, i32, i32
  }
  func.func @transform_7(%arg0: i32) -> (i32, i32, i32) {
    %c0_i32 = arith.constant 0 : i32
    %c0_i32_0 = arith.constant 0 : i32
    %c0_i32_1 = arith.constant 0 : i32
    %c0_i32_2 = arith.constant 0 : i32
    return %c0_i32, %c0_i32_0, %c0_i32_1 : i32, i32, i32
  }
  func.func @transform_8(%arg0: i32) -> (i32, i32, i32) {
    %c0_i32 = arith.constant 0 : i32
    %c0_i32_0 = arith.constant 0 : i32
    %c0_i32_1 = arith.constant 0 : i32
    %c0_i32_2 = arith.constant 0 : i32
    return %c0_i32, %c0_i32_0, %c0_i32_1 : i32, i32, i32
  }
  func.func @transform_9(%arg0: i32) -> (i32, i32, i32) {
    %c0_i32 = arith.constant 0 : i32
    %c0_i32_0 = arith.constant 0 : i32
    %c0_i32_1 = arith.constant 0 : i32
    %c0_i32_2 = arith.constant 0 : i32
    return %c0_i32, %c0_i32_0, %c0_i32_1 : i32, i32, i32
  }
  func.func @transform_10(%arg0: i32) -> (i32, i32, i32) {
    %c0_i32 = arith.constant 0 : i32
    %c0_i32_0 = arith.constant 0 : i32
    %c0_i32_1 = arith.constant 0 : i32
    return %arg0, %c0_i32, %c0_i32_0 : i32, i32, i32
  }
}

</mosaic_0001>

<llo_original>
// kernel: tpu_custom_call.1
$region0: #{tpu_custom_call.1}
  #allocation0 [shape = 'u32[]', space=smem, size = 0x4, offset = 0x4, fixed_abs, tag = 'smem constant byte address 0x4 - core index']
  #allocation1 [shape = 'u32[144,128]{1,0:T(1,128)}', space=vmem, size = 0x12000, scoped, tag = 'internal scratch']
  %s0 = inlined_call_operand.vmem [shape: f32[4,16,64], index: 0, kind: input, shape index: {}]
  %s1 = inlined_call_operand.vmem [shape: f32[4,8,64], index: 1, kind: input, shape index: {}]
  %s2 = inlined_call_operand.vmem [shape: f32[1,64], index: 2, kind: input, shape index: {}]
  %s3 = inlined_call_operand.vmem [shape: f32[1,64], index: 3, kind: input, shape index: {}]
  %s4 = inlined_call_operand.vmem [shape: f32[1,64], index: 4, kind: input, shape index: {}]
  %s5 = inlined_call_operand.vmem [shape: f32[1,64], index: 5, kind: input, shape index: {}]
  %s6 = inlined_call_operand.vmem [shape: f32[4,64,16], index: 6, kind: input, shape index: {}]
  %s7 = inlined_call_operand.vmem [shape: f32[4,64,16], index: 7, kind: input, shape index: {}]
  %s8 = inlined_call_operand.vmem [shape: f32[4,64,16], index: 8, kind: input, shape index: {}]
  %s9 = inlined_call_operand.vmem [shape: f32[4,16,64], index: 9, kind: input, shape index: {}]
  %s10 = inlined_call_operand.hbm [shape: f32[4,8,64], index: 10, kind: output, shape index: {}]
  %s11 = sld [smem:[#allocation0]]
  $region73: #{tpu_custom_call.1} parent=0
    _
  %s13 = ssub.s32 1, %s11
  %s14 = scalar_select 0, %s13, %s11
  $region1: #{tpu_custom_call.1} parent=0
    #allocation2 [shape = 'u8[16384]{0}', space=vmem, size = 0x4000, scoped, tag = 'output window, operand 0']
    #allocation3 [shape = 's32[2]{0}', space=sflag, size = 0x8, scoped, tag = 'scoped memory for tpu_custom_call.1']
    %15 = vsyncpa [#allocation3], 0
    %s16 = scalar_lea.sflag [#allocation3], 1
    %17 = vsyncpa %s16, 0
    loop: start=0, step=1, limit=4
    $region2: #{tpu_custom_call.1} parent=1 // loop_pre_header
      _
    $region3: #{tpu_custom_call.1} parent=1 // loop_header
      %s19 = sphi 0, %s23
      %p20 = scmp.ge.s32.totalorder %s19, 4
      %s29 = sphi 0, %s31
      %s32 = sphi 0, %s29
      %s33 = sphi 0, %s32
      %s49 = sphi 0, %s33
      %s55 = sphi 0, %s57
      %s58 = sphi 0, %s55
      %s59 = sphi 0, %s58
      %s75 = sphi 0, %s59
      %s79 = sphi 0, %s79
      %s81 = sphi 0, %s79
      %s82 = sphi 0, %s81
      %s96 = sphi 0, %s82
      %s100 = sphi 0, %s100
      %s102 = sphi 0, %s100
      %s103 = sphi 0, %s102
      %s117 = sphi 0, %s103
      %s121 = sphi 0, %s121
      %s123 = sphi 0, %s121
      %s124 = sphi 0, %s123
      %s138 = sphi 0, %s124
      %s142 = sphi 0, %s142
      %s144 = sphi 0, %s142
      %s145 = sphi 0, %s144
      %s159 = sphi 0, %s145
      %s163 = sphi 0, %s163
      %s165 = sphi 0, %s163
      %s166 = sphi 0, %s165
      %s180 = sphi 0, %s166
      %s184 = sphi 0, %s184
      %s186 = sphi 0, %s184
      %s187 = sphi 0, %s186
      %s201 = sphi 0, %s187
      %s205 = sphi 0, %s205
      %s207 = sphi 0, %s205
      %s208 = sphi 0, %s207
      %s222 = sphi 0, %s208
      %s226 = sphi 0, %s226
      %s228 = sphi 0, %s226
      %s229 = sphi 0, %s228
      %s243 = sphi 0, %s229
      %s249 = sphi 0, %s251
      %s252 = sphi 0, %s249
      %s253 = sphi 0, %s252
      %s269 = sphi 0, %s253
    $region4: #{tpu_custom_call.1} parent=1 // loop_header_branch
      %22 = sbr.rel (%p20) target = $region8
    $region5: #{tpu_custom_call.1} parent=1 // loop_body
      %s24 = ssub.s32 %s19, 1
      %s25 = ssub.s32 %s19, 2
      %s26 = sadd.s32 %s19, 1
      %s27 = ssub.s32 %s19, %s26
      %p28 = scmp.eq.s32.totalorder %s27, 0
      %s30 = sadd.s32 %s29, 1
      %s31 = scalar_select %p28, %s29, %s30
      %p34 = pneg %p28
      %p35 = scmp.eq.s32.totalorder %s19, 1
      %p36 = por %p34, %p35
      %p37 = scmp.ne.s32.totalorder %s29, %s32
      %p38 = scmp.eq.s32.totalorder %s19, 0
      %p39 = por %p37, %p38
      %p40 = scmp.ne.s32.totalorder %s29, %s32
      %p41 = scmp.eq.s32.totalorder %s24, 1
      %p42 = por %p40, %p41
      %p43 = scmp.ne.s32.totalorder %s32, %s33
      %p44 = scmp.eq.s32.totalorder %s24, 0
      %p45 = por %p43, %p44
      %p46 = scmp.ne.s32.totalorder %s32, %s33
      %p47 = scmp.eq.s32.totalorder %s25, 1
      %p48 = por %p46, %p47
      %p50 = scmp.ne.s32.totalorder %s33, %s49
      %p51 = scmp.eq.s32.totalorder %s25, 0
      %p52 = por %p50, %p51
      %s53 = ssub.s32 %s19, %s26
      %p54 = scmp.eq.s32.totalorder %s53, 0
      %s56 = sadd.s32 %s55, 1
      %s57 = scalar_select %p54, %s55, %s56
      %p60 = pneg %p54
      %p61 = scmp.eq.s32.totalorder %s19, 1
      %p62 = por %p60, %p61
      %p63 = scmp.ne.s32.totalorder %s55, %s58
      %p64 = scmp.eq.s32.totalorder %s19, 0
      %p65 = por %p63, %p64
      %p66 = scmp.ne.s32.totalorder %s55, %s58
      %p67 = scmp.eq.s32.totalorder %s24, 1
      %p68 = por %p66, %p67
      %p69 = scmp.ne.s32.totalorder %s58, %s59
      %p70 = scmp.eq.s32.totalorder %s24, 0
      %p71 = por %p69, %p70
      %p72 = scmp.ne.s32.totalorder %s58, %s59
      %p73 = scmp.eq.s32.totalorder %s25, 1
      %p74 = por %p72, %p73
      %p76 = scmp.ne.s32.totalorder %s59, %s75
      %p77 = scmp.eq.s32.totalorder %s25, 0
      %p78 = por %p76, %p77
      %s80 = sadd.s32 %s79, 1
      %p83 = scmp.eq.s32.totalorder %s19, 1
      %p84 = scmp.ne.s32.totalorder %s79, %s81
      %p85 = scmp.eq.s32.totalorder %s19, 0
      %p86 = por %p84, %p85
      %p87 = scmp.ne.s32.totalorder %s79, %s81
      %p88 = scmp.eq.s32.totalorder %s24, 1
      %p89 = por %p87, %p88
      %p90 = scmp.ne.s32.totalorder %s81, %s82
      %p91 = scmp.eq.s32.totalorder %s24, 0
      %p92 = por %p90, %p91
      %p93 = scmp.ne.s32.totalorder %s81, %s82
      %p94 = scmp.eq.s32.totalorder %s25, 1
      %p95 = por %p93, %p94
      %p97 = scmp.ne.s32.totalorder %s82, %s96
      %p98 = scmp.eq.s32.totalorder %s25, 0
      %p99 = por %p97, %p98
      %s101 = sadd.s32 %s100, 1
      %p104 = scmp.eq.s32.totalorder %s19, 1
      %p105 = scmp.ne.s32.totalorder %s100, %s102
      %p106 = scmp.eq.s32.totalorder %s19, 0
      %p107 = por %p105, %p106
      %p108 = scmp.ne.s32.totalorder %s100, %s102
      %p109 = scmp.eq.s32.totalorder %s24, 1
      %p110 = por %p108, %p109
      %p111 = scmp.ne.s32.totalorder %s102, %s103
      %p112 = scmp.eq.s32.totalorder %s24, 0
      %p113 = por %p111, %p112
      %p114 = scmp.ne.s32.totalorder %s102, %s103
      %p115 = scmp.eq.s32.totalorder %s25, 1
      %p116 = por %p114, %p115
      %p118 = scmp.ne.s32.totalorder %s103, %s117
      %p119 = scmp.eq.s32.totalorder %s25, 0
      %p120 = por %p118, %p119
      %s122 = sadd.s32 %s121, 1
      %p125 = scmp.eq.s32.totalorder %s19, 1
      %p126 = scmp.ne.s32.totalorder %s121, %s123
      %p127 = scmp.eq.s32.totalorder %s19, 0
      %p128 = por %p126, %p127
      %p129 = scmp.ne.s32.totalorder %s121, %s123
      %p130 = scmp.eq.s32.totalorder %s24, 1
      %p131 = por %p129, %p130
      %p132 = scmp.ne.s32.totalorder %s123, %s124
      %p133 = scmp.eq.s32.totalorder %s24, 0
      %p134 = por %p132, %p133
      %p135 = scmp.ne.s32.totalorder %s123, %s124
      %p136 = scmp.eq.s32.totalorder %s25, 1
      %p137 = por %p135, %p136
      %p139 = scmp.ne.s32.totalorder %s124, %s138
      %p140 = scmp.eq.s32.totalorder %s25, 0
      %p141 = por %p139, %p140
      %s143 = sadd.s32 %s142, 1
      %p146 = scmp.eq.s32.totalorder %s19, 1
      %p147 = scmp.ne.s32.totalorder %s142, %s144
      %p148 = scmp.eq.s32.totalorder %s19, 0
      %p149 = por %p147, %p148
      %p150 = scmp.ne.s32.totalorder %s142, %s144
      %p151 = scmp.eq.s32.totalorder %s24, 1
      %p152 = por %p150, %p151
      %p153 = scmp.ne.s32.totalorder %s144, %s145
      %p154 = scmp.eq.s32.totalorder %s24, 0
      %p155 = por %p153, %p154
      %p156 = scmp.ne.s32.totalorder %s144, %s145
      %p157 = scmp.eq.s32.totalorder %s25, 1
      %p158 = por %p156, %p157
      %p160 = scmp.ne.s32.totalorder %s145, %s159
      %p161 = scmp.eq.s32.totalorder %s25, 0
      %p162 = por %p160, %p161
      %s164 = sadd.s32 %s163, 1
      %p167 = scmp.eq.s32.totalorder %s19, 1
      %p168 = scmp.ne.s32.totalorder %s163, %s165
      %p169 = scmp.eq.s32.totalorder %s19, 0
      %p170 = por %p168, %p169
      %p171 = scmp.ne.s32.totalorder %s163, %s165
      %p172 = scmp.eq.s32.totalorder %s24, 1
      %p173 = por %p171, %p172
      %p174 = scmp.ne.s32.totalorder %s165, %s166
      %p175 = scmp.eq.s32.totalorder %s24, 0
      %p176 = por %p174, %p175
      %p177 = scmp.ne.s32.totalorder %s165, %s166
      %p178 = scmp.eq.s32.totalorder %s25, 1
      %p179 = por %p177, %p178
      %p181 = scmp.ne.s32.totalorder %s166, %s180
      %p182 = scmp.eq.s32.totalorder %s25, 0
      %p183 = por %p181, %p182
      %s185 = sadd.s32 %s184, 1
      %p188 = scmp.eq.s32.totalorder %s19, 1
      %p189 = scmp.ne.s32.totalorder %s184, %s186
      %p190 = scmp.eq.s32.totalorder %s19, 0
      %p191 = por %p189, %p190
      %p192 = scmp.ne.s32.totalorder %s184, %s186
      %p193 = scmp.eq.s32.totalorder %s24, 1
      %p194 = por %p192, %p193
      %p195 = scmp.ne.s32.totalorder %s186, %s187
      %p196 = scmp.eq.s32.totalorder %s24, 0
      %p197 = por %p195, %p196
      %p198 = scmp.ne.s32.totalorder %s186, %s187
      %p199 = scmp.eq.s32.totalorder %s25, 1
      %p200 = por %p198, %p199
      %p202 = scmp.ne.s32.totalorder %s187, %s201
      %p203 = scmp.eq.s32.totalorder %s25, 0
      %p204 = por %p202, %p203
      %s206 = sadd.s32 %s205, 1
      %p209 = scmp.eq.s32.totalorder %s19, 1
      %p210 = scmp.ne.s32.totalorder %s205, %s207
      %p211 = scmp.eq.s32.totalorder %s19, 0
      %p212 = por %p210, %p211
      %p213 = scmp.ne.s32.totalorder %s205, %s207
      %p214 = scmp.eq.s32.totalorder %s24, 1
      %p215 = por %p213, %p214
      %p216 = scmp.ne.s32.totalorder %s207, %s208
      %p217 = scmp.eq.s32.totalorder %s24, 0
      %p218 = por %p216, %p217
      %p219 = scmp.ne.s32.totalorder %s207, %s208
      %p220 = scmp.eq.s32.totalorder %s25, 1
      %p221 = por %p219, %p220
      %p223 = scmp.ne.s32.totalorder %s208, %s222
      %p224 = scmp.eq.s32.totalorder %s25, 0
      %p225 = por %p223, %p224
      %s227 = sadd.s32 %s226, 1
      %p230 = scmp.eq.s32.totalorder %s19, 1
      %p231 = scmp.ne.s32.totalorder %s226, %s228
      %p232 = scmp.eq.s32.totalorder %s19, 0
      %p233 = por %p231, %p232
      %p234 = scmp.ne.s32.totalorder %s226, %s228
      %p235 = scmp.eq.s32.totalorder %s24, 1
      %p236 = por %p234, %p235
      %p237 = scmp.ne.s32.totalorder %s228, %s229
      %p238 = scmp.eq.s32.totalorder %s24, 0
      %p239 = por %p237, %p238
      %p240 = scmp.ne.s32.totalorder %s228, %s229
      %p241 = scmp.eq.s32.totalorder %s25, 1
      %p242 = por %p240, %p241
      %p244 = scmp.ne.s32.totalorder %s229, %s243
      %p245 = scmp.eq.s32.totalorder %s25, 0
      %p246 = por %p244, %p245
      %s247 = ssub.s32 %s19, %s26
      %p248 = scmp.eq.s32.totalorder %s247, 0
      %s250 = sadd.s32 %s249, 1
      %s251 = scalar_select %p248, %s249, %s250
      %p254 = pneg %p248
      %p255 = scmp.eq.s32.totalorder %s19, 1
      %p256 = por %p254, %p255
      %p257 = scmp.ne.s32.totalorder %s249, %s252
      %p258 = scmp.eq.s32.totalorder %s19, 0
      %p259 = por %p257, %p258
      %p260 = scmp.ne.s32.totalorder %s249, %s252
      %p261 = scmp.eq.s32.totalorder %s24, 1
      %p262 = por %p260, %p261
      %p263 = scmp.ne.s32.totalorder %s252, %s253
      %p264 = scmp.eq.s32.totalorder %s24, 0
      %p265 = por %p263, %p264
      %p266 = scmp.ne.s32.totalorder %s252, %s253
      %p267 = scmp.eq.s32.totalorder %s25, 1
      %p268 = por %p266, %p267
      %p270 = scmp.ne.s32.totalorder %s253, %s269
      %p271 = scmp.eq.s32.totalorder %s25, 0
      %p272 = por %p270, %p271
      %p273 = scmp.le.s32.totalorder 1, %s19
      %p274 = scmp.lt.s32.totalorder %s19, 3
      %p275 = pnand %p273, %p274
      %p276 = pneg %p275
      // Predicated region
      $region9: #{tpu_custom_call.1} parent=5 // pred_check
        _
      $region10: #{tpu_custom_call.1} parent=5 // pred_check_branch
        %278 = sbr.rel (%p275) target = $region12
      $region11: #{tpu_custom_call.1} parent=5 // pred_region
        %s279 = ssub.s32 %s19, 1
        // Predicated region
        $region13: #{tpu_custom_call.1} parent=11 // pred_check
          %p280 = pneg %p92
        $region14: #{tpu_custom_call.1} parent=11 // pred_check_branch
          %282 = sbr.rel (%p280) target = $region16
        $region15: #{tpu_custom_call.1} parent=11 // pred_region
          _
        $region16: #{tpu_custom_call.1} parent=11 // pred_fallthru
          _
        // Predicated region
        $region17: #{tpu_custom_call.1} parent=11 // pred_check
          %p283 = pneg %p113
        $region18: #{tpu_custom_call.1} parent=11 // pred_check_branch
          %285 = sbr.rel (%p283) target = $region20
        $region19: #{tpu_custom_call.1} parent=11 // pred_region
          _
        $region20: #{tpu_custom_call.1} parent=11 // pred_fallthru
          _
        // Predicated region
        $region21: #{tpu_custom_call.1} parent=11 // pred_check
          %p286 = pneg %p134
        $region22: #{tpu_custom_call.1} parent=11 // pred_check_branch
          %288 = sbr.rel (%p286) target = $region24
        $region23: #{tpu_custom_call.1} parent=11 // pred_region
          _
        $region24: #{tpu_custom_call.1} parent=11 // pred_fallthru
          _
        // Predicated region
        $region25: #{tpu_custom_call.1} parent=11 // pred_check
          %p289 = pneg %p155
        $region26: #{tpu_custom_call.1} parent=11 // pred_check_branch
          %291 = sbr.rel (%p289) target = $region28
        $region27: #{tpu_custom_call.1} parent=11 // pred_region
          _
        $region28: #{tpu_custom_call.1} parent=11 // pred_fallthru
          _
        // Predicated region
        $region29: #{tpu_custom_call.1} parent=11 // pred_check
          %p292 = pneg %p176
        $region30: #{tpu_custom_call.1} parent=11 // pred_check_branch
          %294 = sbr.rel (%p292) target = $region32
        $region31: #{tpu_custom_call.1} parent=11 // pred_region
          _
        $region32: #{tpu_custom_call.1} parent=11 // pred_fallthru
          _
        // Predicated region
        $region33: #{tpu_custom_call.1} parent=11 // pred_check
          %p295 = pneg %p197
        $region34: #{tpu_custom_call.1} parent=11 // pred_check_branch
          %297 = sbr.rel (%p295) target = $region36
        $region35: #{tpu_custom_call.1} parent=11 // pred_region
          _
        $region36: #{tpu_custom_call.1} parent=11 // pred_fallthru
          _
        // Predicated region
        $region37: #{tpu_custom_call.1} parent=11 // pred_check
          %p298 = pneg %p218
        $region38: #{tpu_custom_call.1} parent=11 // pred_check_branch
          %300 = sbr.rel (%p298) target = $region40
        $region39: #{tpu_custom_call.1} parent=11 // pred_region
          _
        $region40: #{tpu_custom_call.1} parent=11 // pred_fallthru
          _
        // Predicated region
        $region41: #{tpu_custom_call.1} parent=11 // pred_check
          %p301 = pneg %p239
        $region42: #{tpu_custom_call.1} parent=11 // pred_check_branch
          %303 = sbr.rel (%p301) target = $region44
        $region43: #{tpu_custom_call.1} parent=11 // pred_region
          _
        $region44: #{tpu_custom_call.1} parent=11 // pred_fallthru
          _
      $region12: #{tpu_custom_call.1} parent=5 // pred_fallthru
        _
      %p304 = scmp.lt.s32.totalorder %s19, 2
      // Predicated region
      $region45: #{tpu_custom_call.1} parent=5 // pred_check
        %p305 = pneg %p304
      $region46: #{tpu_custom_call.1} parent=5 // pred_check_branch
        %307 = sbr.rel (%p305) target = $region48
      $region47: #{tpu_custom_call.1} parent=5 // pred_region
        // Predicated region
        $region49: #{tpu_custom_call.1} parent=47 // pred_check
          %p308 = pneg %p39
        $region50: #{tpu_custom_call.1} parent=47 // pred_check_branch
          %310 = sbr.rel (%p308) target = $region52
        $region51: #{tpu_custom_call.1} parent=47 // pred_region
          %s311 = smul.u32 2, %s19
          %p312 = scmp.lt.s32.totalorder %s311, 3
          %s313 = scalar_select %p312, %s311, 3
          %s314 = smul.addr %s313, 2
          %s315 = smul.addr %s314, 8
          %s316 = scalar_lea.vmem %s0, %s315
          %s317 = smul.u32 2, %s19
        $region52: #{tpu_custom_call.1} parent=47 // pred_fallthru
          _
        // Predicated region
        $region53: #{tpu_custom_call.1} parent=47 // pred_check
          %p318 = pneg %p65
        $region54: #{tpu_custom_call.1} parent=47 // pred_check_branch
          %320 = sbr.rel (%p318) target = $region56
        $region55: #{tpu_custom_call.1} parent=47 // pred_region
          %s321 = smul.u32 2, %s19
          %p322 = scmp.lt.s32.totalorder %s321, 3
          %s323 = scalar_select %p322, %s321, 3
          %s324 = smul.addr %s323, 8
          %s325 = scalar_lea.vmem %s1, %s324
          %s326 = smul.u32 2, %s19
        $region56: #{tpu_custom_call.1} parent=47 // pred_fallthru
          _
      $region48: #{tpu_custom_call.1} parent=5 // pred_fallthru
        _
      %p327 = scmp.le.s32.totalorder 1, %s19
      %p328 = scmp.lt.s32.totalorder %s19, 3
      %p329 = pnand %p327, %p328
      %p330 = pneg %p329
      // Predicated region
      $region57: #{tpu_custom_call.1} parent=5 // pred_check
        _
      $region58: #{tpu_custom_call.1} parent=5 // pred_check_branch
        %332 = sbr.rel (%p329) target = $region60
      $region59: #{tpu_custom_call.1} parent=5 // pred_region
        %s333 = ssub.s32 %s19, 1
        %s334 = smul.u32 2, %s24
        %p335 = scmp.lt.s32.totalorder %s334, 3
        %s336 = scalar_select %p335, %s334, 3
        %s337 = smul.addr %s336, 2
        %s338 = smul.addr %s337, 8
        %s339 = scalar_lea.vmem %s0, %s338
        %p340 = pneg %p45
        %p341 = pneg %p42
        %s342 = smul.u32 2, %s24
        %p343 = scmp.lt.s32.totalorder %s342, 3
        %s344 = scalar_select %p343, %s342, 3
        %s345 = smul.addr %s344, 8
        %s346 = scalar_lea.vmem %s1, %s345
        %p347 = pneg %p71
        %p348 = pneg %p68
        %p349 = pneg %p92
        %p350 = pneg %p89
        %p351 = pneg %p113
        %p352 = pneg %p110
        %p353 = pneg %p134
        %p354 = pneg %p131
        %p355 = pneg %p155
        %p356 = pneg %p152
        %p357 = pneg %p176
        %p358 = pneg %p173
        %p359 = pneg %p197
        %p360 = pneg %p194
        %p361 = pneg %p218
        %p362 = pneg %p215
        %p363 = pneg %p239
        %p364 = pneg %p236
        %p365 = pneg %p265
        %p366 = pneg %p262
        %s367 = sand.u32 %s252, 1
        %s368 = scalar_lea.sflag [#allocation3], %s367
        %s369 = sand.u32 %s252, 1
        %s370 = smul.addr %s369, 16
        %s371 = scalar_lea.vmem [#allocation2], %s370
        %s372 = smul.u32 2, %s24
        %p373 = scmp.lt.s32.totalorder %s372, 3
        %s374 = scalar_select %p373, %s372, 3
        %s375 = smul.addr %s374, 2
        %s376 = smul.addr %s375, 8
        %s377 = scalar_lea.vmem %s0, %s376
        %s378 = smul.u32 2, %s24
        %s379 = smul.u32 2, %s24
        %p380 = scmp.lt.s32.totalorder %s379, 3
        %s381 = scalar_select %p380, %s379, 3
        %s382 = smul.addr %s381, 8
        %s383 = scalar_lea.vmem %s1, %s382
        %s384 = smul.u32 2, %s24
        %s385 = smul.u32 2, %s24
        %v386 = vld [vmem:[%s377] sm:$0xff]
        %v387 = vld [vmem:[%s377 + $0x8] sm:$0xff]
        %v388 = vld [vmem:[%s377 + $0x10] sm:$0xff]
        %v389 = vld [vmem:[%s377 + $0x18] sm:$0xff]
        %v390 = vld [vmem:[%s383] sm:$0xff]
        %v391 = vld [vmem:[%s383 + $0x8] sm:$0xff]
        %v392 = vld [vmem:[%s2] sm:$0x1]
        %v393 = vld [vmem:[%s3] sm:$0x1]
        %vm394 = vcmask 523264
        %v395 = vsel %vm394, %v386, 0.0
        %396 = vadd.xlane.f32.xlu0 %v395
        %v397 = vpop.xlane.xlu0 %396
        %v398 = vsel %vm394, %v387, 0.0
        %399 = vadd.xlane.f32.xlu0 %v398
        %v400 = vpop.xlane.xlu0 %399
        %v401 = vsel %vm394, %v388, 0.0
        %402 = vadd.xlane.f32.xlu0 %v401
        %v403 = vpop.xlane.xlu0 %402
        %v404 = vsel %vm394, %v389, 0.0
        %405 = vadd.xlane.f32.xlu0 %v404
        %v406 = vpop.xlane.xlu0 %405
        %v407 = vrcp.pop 64.0
        %v408 = vmul.f32 %v397, %v407
        %v409 = vmul.f32 %v400, %v407
        %v410 = vmul.f32 %v403, %v407
        %v411 = vmul.f32 %v406, %v407
        %v412 = vsub.f32 %v386, %v408
        %v413 = vsub.f32 %v387, %v409
        %v414 = vsub.f32 %v388, %v410
        %v415 = vsub.f32 %v389, %v411
        %v416 = vmul.f32 %v412, %v412
        %v417 = vmul.f32 %v413, %v413
        %v418 = vmul.f32 %v414, %v414
        %v419 = vmul.f32 %v415, %v415
        %v420 = vsel %vm394, %v416, 0.0
        %421 = vadd.xlane.f32.xlu0 %v420
        %v422 = vpop.xlane.xlu0 %421
        %v423 = vsel %vm394, %v417, 0.0
        %424 = vadd.xlane.f32.xlu0 %v423
        %v425 = vpop.xlane.xlu0 %424
        %v426 = vsel %vm394, %v418, 0.0
        %427 = vadd.xlane.f32.xlu0 %v426
        %v428 = vpop.xlane.xlu0 %427
        %v429 = vsel %vm394, %v419, 0.0
        %430 = vadd.xlane.f32.xlu0 %v429
        %v431 = vpop.xlane.xlu0 %430
        %v432 = vmul.f32 %v422, %v407
        %v433 = vmul.f32 %v425, %v407
        %v434 = vmul.f32 %v428, %v407
        %v435 = vmul.f32 %v431, %v407
        %v436 = vadd.f32 %v432, 1e-05
        %v437 = vadd.f32 %v433, 1e-05
        %v438 = vadd.f32 %v434, 1e-05
        %v439 = vadd.f32 %v435, 1e-05
        %v440 = vrsqrt.pop %v436
        %v441 = vrsqrt.pop %v437
        %v442 = vrsqrt.pop %v438
        %v443 = vrsqrt.pop %v439
        %v444 = vmul.f32 %v412, %v440
        %v445 = vmul.f32 %v413, %v441
        %v446 = vmul.f32 %v414, %v442
        %v447 = vmul.f32 %v415, %v443
        %v449 = vlaneseq
        %v450 = vshrl.u32 %v449, 7
        %v451 = vsub.s32 0, %v450
        %v452 = vrot.slane %v392, %v451
        %v454 = vmul.f32 %v444, %v452
        %v455 = vmul.f32 %v445, %v452
        %v456 = vmul.f32 %v446, %v452
        %v457 = vmul.f32 %v447, %v452
        %v459 = vlaneseq
        %v460 = vshrl.u32 %v459, 7
        %v461 = vsub.s32 0, %v460
        %v462 = vrot.slane %v393, %v461
        %v464 = vadd.f32 %v454, %v462
        %v465 = vadd.f32 %v455, %v462
        %v466 = vadd.f32 %v456, %v462
        %v467 = vadd.f32 %v457, %v462
        %v468 = vld [vmem:[%s4] sm:$0x1]
        %v469 = vld [vmem:[%s5] sm:$0x1]
        %v470 = vsel %vm394, %v390, 0.0
        %471 = vadd.xlane.f32.xlu0 %v470
        %v472 = vpop.xlane.xlu0 %471
        %v473 = vsel %vm394, %v391, 0.0
        %474 = vadd.xlane.f32.xlu0 %v473
        %v475 = vpop.xlane.xlu0 %474
        %v476 = vmul.f32 %v472, %v407
        %v477 = vmul.f32 %v475, %v407
        %v478 = vsub.f32 %v390, %v476
        %v479 = vsub.f32 %v391, %v477
        %v480 = vmul.f32 %v478, %v478
        %v481 = vmul.f32 %v479, %v479
        %v482 = vsel %vm394, %v480, 0.0
        %483 = vadd.xlane.f32.xlu0 %v482
        %v484 = vpop.xlane.xlu0 %483
        %v485 = vsel %vm394, %v481, 0.0
        %486 = vadd.xlane.f32.xlu0 %v485
        %v487 = vpop.xlane.xlu0 %486
        %v488 = vmul.f32 %v484, %v407
        %v489 = vmul.f32 %v487, %v407
        %v490 = vadd.f32 %v488, 1e-05
        %v491 = vadd.f32 %v489, 1e-05
        %v492 = vrsqrt.pop %v490
        %v493 = vrsqrt.pop %v491
        %v494 = vmul.f32 %v478, %v492
        %v495 = vmul.f32 %v479, %v493
        %v497 = vlaneseq
        %v498 = vshrl.u32 %v497, 7
        %v499 = vsub.s32 0, %v498
        %v500 = vrot.slane %v468, %v499
        %v502 = vmul.f32 %v494, %v500
        %v503 = vmul.f32 %v495, %v500
        %v505 = vlaneseq
        %v506 = vshrl.u32 %v505, 7
        %v507 = vsub.s32 0, %v506
        %v508 = vrot.slane %v469, %v507
        %v510 = vadd.f32 %v502, %v508
        %v511 = vadd.f32 %v503, %v508
        %v512 = vld [vmem:[%s6] sm:$0xff]
        %v513 = vld [vmem:[%s6 + $0x8] sm:$0xff]
        %v514 = vld [vmem:[%s6 + $0x10] sm:$0xff]
        %v515 = vld [vmem:[%s6 + $0x18] sm:$0xff]
        %v516 = vld [vmem:[%s6 + $0x20] sm:$0xff]
        %v517 = vld [vmem:[%s6 + $0x28] sm:$0xff]
        %v518 = vld [vmem:[%s6 + $0x30] sm:$0xff]
        %v519 = vld [vmem:[%s6 + $0x38] sm:$0xff]
        %v520 = vld [vmem:[%s7] sm:$0xff]
        %v521 = vld [vmem:[%s7 + $0x8] sm:$0xff]
        %v522 = vld [vmem:[%s7 + $0x10] sm:$0xff]
        %v523 = vld [vmem:[%s7 + $0x18] sm:$0xff]
        %v524 = vld [vmem:[%s7 + $0x20] sm:$0xff]
        %v525 = vld [vmem:[%s7 + $0x28] sm:$0xff]
        %v526 = vld [vmem:[%s7 + $0x30] sm:$0xff]
        %v527 = vld [vmem:[%s7 + $0x38] sm:$0xff]
        %v528 = vld [vmem:[%s8] sm:$0xff]
        %v529 = vld [vmem:[%s8 + $0x8] sm:$0xff]
        %v530 = vld [vmem:[%s8 + $0x10] sm:$0xff]
        %v531 = vld [vmem:[%s8 + $0x18] sm:$0xff]
        %v532 = vld [vmem:[%s8 + $0x20] sm:$0xff]
        %v533 = vld [vmem:[%s8 + $0x28] sm:$0xff]
        %v534 = vld [vmem:[%s8 + $0x30] sm:$0xff]
        %v535 = vld [vmem:[%s8 + $0x38] sm:$0xff]
        %v536 = vld [vmem:[%s9] sm:$0xff]
        %v537 = vld [vmem:[%s9 + $0x8] sm:$0xff]
        %v539 = vsel %vm394, %v510, 0
        %v542 = vsel %vm394, %v511, 0
        %544 = vmatprep.subr.mxu0 0.0
        %545 = vmatpush1.msra.mxu0 %v512
        %546 = vmatprep.subr.mxu0 0.0
        %547 = vmatpush1.msra.mxu0 %v513
        %548 = vmatprep.subr.mxu0 0.0
        %549 = vmatpush1.msra.mxu0 %v514
        %550 = vmatprep.subr.mxu0 0.0
        %551 = vmatpush1.msra.mxu0 %v515
        %552 = vmatprep.subr.mxu0 0.0
        %553 = vmatpush1.msra.mxu0 %v516
        %554 = vmatprep.subr.mxu0 0.0
        %555 = vmatpush1.msra.mxu0 %v517
        %556 = vmatprep.subr.mxu0 0.0
        %557 = vmatpush1.msra.mxu0 %v518
        %558 = vmatprep.subr.mxu0 0.0
        %559 = vmatpush1.msra.mxu0 %v519
        %560 = vmatprep.subr.mxu0 0.0
        %561 = vmatpush1.msra.mxu0 0.0
        %562 = vmatprep.subr.mxu0 0.0
        %563 = vmatpush1.msra.mxu0 0.0
        %564 = vmatprep.subr.mxu0 0.0
        %565 = vmatpush1.msra.mxu0 0.0
        %566 = vmatprep.subr.mxu0 0.0
        %567 = vmatpush1.msra.mxu0 0.0
        %568 = vmatprep.subr.mxu0 0.0
        %569 = vmatpush1.msra.mxu0 0.0
        %570 = vmatprep.subr.mxu0 0.0
        %571 = vmatpush1.msra.mxu0 0.0
        %572 = vmatprep.subr.mxu0 0.0
        %573 = vmatpush1.msra.mxu0 0.0
        %574 = vmatprep.subr.mxu0 0.0
        %575 = vmatpush1.msra.mxu0 0.0
        %576 = vmatprep.subr.mxu0 0.0
        %577 = vmatpush1.msra.mxu0 0.0
        %578 = vmatprep.subr.mxu0 0.0
        %579 = vmatpush1.msra.mxu0 0.0
        %580 = vmatprep.subr.mxu0 0.0
        %581 = vmatpush1.msra.mxu0 0.0
        %582 = vmatprep.subr.mxu0 0.0
        %583 = vmatpush1.msra.mxu0 0.0
        %584 = vmatprep.subr.mxu0 0.0
        %585 = vmatpush1.msra.mxu0 0.0
        %586 = vmatprep.subr.mxu0 0.0
        %587 = vmatpush1.msra.mxu0 0.0
        %588 = vmatprep.subr.mxu0 0.0
        %589 = vmatpush1.msra.mxu0 0.0
        %590 = vmatprep.subr.mxu0 0.0
        %591 = vmatpush1.msra.mxu0 0.0
        %592 = vmatprep.subr.mxu0 0.0
        %593 = vmatpush1.msra.mxu0 0.0
        %594 = vmatprep.subr.mxu0 0.0
        %595 = vmatpush1.msra.mxu0 0.0
        %596 = vmatprep.subr.mxu0 0.0
        %597 = vmatpush1.msra.mxu0 0.0
        %598 = vmatprep.subr.mxu0 0.0
        %599 = vmatpush1.msra.mxu0 0.0
        %600 = vmatprep.subr.mxu0 0.0
        %601 = vmatpush1.msra.mxu0 0.0
        %602 = vmatprep.subr.mxu0 0.0
        %603 = vmatpush1.msra.mxu0 0.0
        %604 = vmatprep.subr.mxu0 0.0
        %605 = vmatpush1.msra.mxu0 0.0
        %606 = vmatprep.subr.mxu0 0.0
        %607 = vmatpush1.msra.mxu0 0.0
        %608 = vmatprep.mubr.f32.mxu0 0.0
        %609 = vmatmul.mubr.f32.gmra.mrb[0].mxu0 %v539
        %v610 = vpop.f32.mrb[0].mxu0
        %v611 = vadd.f32 0.0, %v610
        %v612 = vpop.f32.mrb[0].mxu0
        %613 = vmatprep.mubr.f32.mxu0 0.0
        %614 = vmatmul.mubr.f32.gmra.mrb[0].mxu0 %v542
        %v615 = vpop.f32.mrb[0].mxu0
        %v616 = vadd.f32 0.0, %v615
        %v617 = vpop.f32.mrb[0].mxu0
        %618 = vdwg.mxu0
        %v619 = vmul.f32 %v611, 0.25
        %v620 = vmul.f32 %v616, 0.25
        %v622 = vsel %vm394, %v464, 0
        %v625 = vsel %vm394, %v465, 0
        %v628 = vsel %vm394, %v466, 0
        %v631 = vsel %vm394, %v467, 0
        %633 = vmatprep.subr.mxu0 0.0
        %634 = vmatpush1.msra.mxu0 %v520
        %635 = vmatprep.subr.mxu0 0.0
        %636 = vmatpush1.msra.mxu0 %v521
        %637 = vmatprep.subr.mxu0 0.0
        %638 = vmatpush1.msra.mxu0 %v522
        %639 = vmatprep.subr.mxu0 0.0
        %640 = vmatpush1.msra.mxu0 %v523
        %641 = vmatprep.subr.mxu0 0.0
        %642 = vmatpush1.msra.mxu0 %v524
        %643 = vmatprep.subr.mxu0 0.0
        %644 = vmatpush1.msra.mxu0 %v525
        %645 = vmatprep.subr.mxu0 0.0
        %646 = vmatpush1.msra.mxu0 %v526
        %647 = vmatprep.subr.mxu0 0.0
        %648 = vmatpush1.msra.mxu0 %v527
        %649 = vmatprep.subr.mxu0 0.0
        %650 = vmatpush1.msra.mxu0 0.0
        %651 = vmatprep.subr.mxu0 0.0
        %652 = vmatpush1.msra.mxu0 0.0
        %653 = vmatprep.subr.mxu0 0.0
        %654 = vmatpush1.msra.mxu0 0.0
        %655 = vmatprep.subr.mxu0 0.0
        %656 = vmatpush1.msra.mxu0 0.0
        %657 = vmatprep.subr.mxu0 0.0
        %658 = vmatpush1.msra.mxu0 0.0
        %659 = vmatprep.subr.mxu0 0.0
        %660 = vmatpush1.msra.mxu0 0.0
        %661 = vmatprep.subr.mxu0 0.0
        %662 = vmatpush1.msra.mxu0 0.0
        %663 = vmatprep.subr.mxu0 0.0
        %664 = vmatpush1.msra.mxu0 0.0
        %665 = vmatprep.subr.mxu0 0.0
        %666 = vmatpush1.msra.mxu0 0.0
        %667 = vmatprep.subr.mxu0 0.0
        %668 = vmatpush1.msra.mxu0 0.0
        %669 = vmatprep.subr.mxu0 0.0
        %670 = vmatpush1.msra.mxu0 0.0
        %671 = vmatprep.subr.mxu0 0.0
        %672 = vmatpush1.msra.mxu0 0.0
        %673 = vmatprep.subr.mxu0 0.0
        %674 = vmatpush1.msra.mxu0 0.0
        %675 = vmatprep.subr.mxu0 0.0
        %676 = vmatpush1.msra.mxu0 0.0
        %677 = vmatprep.subr.mxu0 0.0
        %678 = vmatpush1.msra.mxu0 0.0
        %679 = vmatprep.subr.mxu0 0.0
        %680 = vmatpush1.msra.mxu0 0.0
        %681 = vmatprep.subr.mxu0 0.0
        %682 = vmatpush1.msra.mxu0 0.0
        %683 = vmatprep.subr.mxu0 0.0
        %684 = vmatpush1.msra.mxu0 0.0
        %685 = vmatprep.subr.mxu0 0.0
        %686 = vmatpush1.msra.mxu0 0.0
        %687 = vmatprep.subr.mxu0 0.0
        %688 = vmatpush1.msra.mxu0 0.0
        %689 = vmatprep.subr.mxu0 0.0
        %690 = vmatpush1.msra.mxu0 0.0
        %691 = vmatprep.subr.mxu0 0.0
        %692 = vmatpush1.msra.mxu0 0.0
        %693 = vmatprep.subr.mxu0 0.0
        %694 = vmatpush1.msra.mxu0 0.0
        %695 = vmatprep.subr.mxu0 0.0
        %696 = vmatpush1.msra.mxu0 0.0
        %697 = vmatprep.mubr.f32.mxu0 0.0
        %698 = vmatmul.mubr.f32.gmra.mrb[0].mxu0 %v622
        %v699 = vpop.f32.mrb[0].mxu0
        %v700 = vadd.f32 0.0, %v699
        %v701 = vpop.f32.mrb[0].mxu0
        %702 = vmatprep.mubr.f32.mxu0 0.0
        %703 = vmatmul.mubr.f32.gmra.mrb[0].mxu0 %v625
        %v704 = vpop.f32.mrb[0].mxu0
        %v705 = vadd.f32 0.0, %v704
        %v706 = vpop.f32.mrb[0].mxu0
        %707 = vmatprep.mubr.f32.mxu0 0.0
        %708 = vmatmul.mubr.f32.gmra.mrb[0].mxu0 %v628
        %v709 = vpop.f32.mrb[0].mxu0
        %v710 = vadd.f32 0.0, %v709
        %v711 = vpop.f32.mrb[0].mxu0
        %712 = vmatprep.mubr.f32.mxu0 0.0
        %713 = vmatmul.mubr.f32.gmra.mrb[0].mxu0 %v631
        %v714 = vpop.f32.mrb[0].mxu0
        %v715 = vadd.f32 0.0, %v714
        %v716 = vpop.f32.mrb[0].mxu0
        %717 = vdwg.mxu0
        %718 = vmatprep.subr.mxu0 0.0
        %719 = vmatpush1.msra.mxu0 %v520
        %720 = vmatprep.subr.mxu0 0.0
        %721 = vmatpush1.msra.mxu0 %v521
        %722 = vmatprep.subr.mxu0 0.0
        %723 = vmatpush1.msra.mxu0 %v522
        %724 = vmatprep.subr.mxu0 0.0
        %725 = vmatpush1.msra.mxu0 %v523
        %726 = vmatprep.subr.mxu0 0.0
        %727 = vmatpush1.msra.mxu0 %v524
        %728 = vmatprep.subr.mxu0 0.0
        %729 = vmatpush1.msra.mxu0 %v525
        %730 = vmatprep.subr.mxu0 0.0
        %731 = vmatpush1.msra.mxu0 %v526
        %732 = vmatprep.subr.mxu0 0.0
        %733 = vmatpush1.msra.mxu0 %v527
        %734 = vmatprep.subr.mxu0 0.0
        %735 = vmatpush1.msra.mxu0 0.0
        %736 = vmatprep.subr.mxu0 0.0
        %737 = vmatpush1.msra.mxu0 0.0
        %738 = vmatprep.subr.mxu0 0.0
        %739 = vmatpush1.msra.mxu0 0.0
        %740 = vmatprep.subr.mxu0 0.0
        %741 = vmatpush1.msra.mxu0 0.0
        %742 = vmatprep.subr.mxu0 0.0
        %743 = vmatpush1.msra.mxu0 0.0
        %744 = vmatprep.subr.mxu0 0.0
        %745 = vmatpush1.msra.mxu0 0.0
        %746 = vmatprep.subr.mxu0 0.0
        %747 = vmatpush1.msra.mxu0 0.0
        %748 = vmatprep.subr.mxu0 0.0
        %749 = vmatpush1.msra.mxu0 0.0
        %750 = vmatprep.subr.mxu0 0.0
        %751 = vmatpush1.msra.mxu0 0.0
        %752 = vmatprep.subr.mxu0 0.0
        %753 = vmatpush1.msra.mxu0 0.0
        %754 = vmatprep.subr.mxu0 0.0
        %755 = vmatpush1.msra.mxu0 0.0
        %756 = vmatprep.subr.mxu0 0.0
        %757 = vmatpush1.msra.mxu0 0.0
        %758 = vmatprep.subr.mxu0 0.0
        %759 = vmatpush1.msra.mxu0 0.0
        %760 = vmatprep.subr.mxu0 0.0
        %761 = vmatpush1.msra.mxu0 0.0
        %762 = vmatprep.subr.mxu0 0.0
        %763 = vmatpush1.msra.mxu0 0.0
        %764 = vmatprep.subr.mxu0 0.0
        %765 = vmatpush1.msra.mxu0 0.0
        %766 = vmatprep.subr.mxu0 0.0
        %767 = vmatpush1.msra.mxu0 0.0
        %768 = vmatprep.subr.mxu0 0.0
        %769 = vmatpush1.msra.mxu0 0.0
        %770 = vmatprep.subr.mxu0 0.0
        %771 = vmatpush1.msra.mxu0 0.0
        %772 = vmatprep.subr.mxu0 0.0
        %773 = vmatpush1.msra.mxu0 0.0
        %774 = vmatprep.subr.mxu0 0.0
        %775 = vmatpush1.msra.mxu0 0.0
        %776 = vmatprep.subr.mxu0 0.0
        %777 = vmatpush1.msra.mxu0 0.0
        %778 = vmatprep.subr.mxu0 0.0
        %779 = vmatpush1.msra.mxu0 0.0
        %780 = vmatprep.subr.mxu0 0.0
        %781 = vmatpush1.msra.mxu0 0.0
        %782 = vmatprep.mubr.f32.mxu0 0.0
        %783 = vmatmul.mubr.f32.gmra.mrb[0].mxu0 %v539
        %v784 = vpop.f32.mrb[0].mxu0
        %v785 = vadd.f32 0.0, %v784
        %v786 = vpop.f32.mrb[0].mxu0
        %787 = vmatprep.mubr.f32.mxu0 0.0
        %788 = vmatmul.mubr.f32.gmra.mrb[0].mxu0 %v542
        %v789 = vpop.f32.mrb[0].mxu0
        %v790 = vadd.f32 0.0, %v789
        %v791 = vpop.f32.mrb[0].mxu0
        %792 = vdwg.mxu0
        %793 = vmatprep.subr.mxu0 0.0
        %794 = vmatpush1.msra.mxu0 %v528
        %795 = vmatprep.subr.mxu0 0.0
        %796 = vmatpush1.msra.mxu0 %v529
        %797 = vmatprep.subr.mxu0 0.0
        %798 = vmatpush1.msra.mxu0 %v530
        %799 = vmatprep.subr.mxu0 0.0
        %800 = vmatpush1.msra.mxu0 %v531
        %801 = vmatprep.subr.mxu0 0.0
        %802 = vmatpush1.msra.mxu0 %v532
        %803 = vmatprep.subr.mxu0 0.0
        %804 = vmatpush1.msra.mxu0 %v533
        %805 = vmatprep.subr.mxu0 0.0
        %806 = vmatpush1.msra.mxu0 %v534
        %807 = vmatprep.subr.mxu0 0.0
        %808 = vmatpush1.msra.mxu0 %v535
        %809 = vmatprep.subr.mxu0 0.0
        %810 = vmatpush1.msra.mxu0 0.0
        %811 = vmatprep.subr.mxu0 0.0
        %812 = vmatpush1.msra.mxu0 0.0
        %813 = vmatprep.subr.mxu0 0.0
        %814 = vmatpush1.msra.mxu0 0.0
        %815 = vmatprep.subr.mxu0 0.0
        %816 = vmatpush1.msra.mxu0 0.0
        %817 = vmatprep.subr.mxu0 0.0
        %818 = vmatpush1.msra.mxu0 0.0
        %819 = vmatprep.subr.mxu0 0.0
        %820 = vmatpush1.msra.mxu0 0.0
        %821 = vmatprep.subr.mxu0 0.0
        %822 = vmatpush1.msra.mxu0 0.0
        %823 = vmatprep.subr.mxu0 0.0
        %824 = vmatpush1.msra.mxu0 0.0
        %825 = vmatprep.subr.mxu0 0.0
        %826 = vmatpush1.msra.mxu0 0.0
        %827 = vmatprep.subr.mxu0 0.0
        %828 = vmatpush1.msra.mxu0 0.0
        %829 = vmatprep.subr.mxu0 0.0
        %830 = vmatpush1.msra.mxu0 0.0
        %831 = vmatprep.subr.mxu0 0.0
        %832 = vmatpush1.msra.mxu0 0.0
        %833 = vmatprep.subr.mxu0 0.0
        %834 = vmatpush1.msra.mxu0 0.0
        %835 = vmatprep.subr.mxu0 0.0
        %836 = vmatpush1.msra.mxu0 0.0
        %837 = vmatprep.subr.mxu0 0.0
        %838 = vmatpush1.msra.mxu0 0.0
        %839 = vmatprep.subr.mxu0 0.0
        %840 = vmatpush1.msra.mxu0 0.0
        %841 = vmatprep.subr.mxu0 0.0
        %842 = vmatpush1.msra.mxu0 0.0
        %843 = vmatprep.subr.mxu0 0.0
        %844 = vmatpush1.msra.mxu0 0.0
        %845 = vmatprep.subr.mxu0 0.0
        %846 = vmatpush1.msra.mxu0 0.0
        %847 = vmatprep.subr.mxu0 0.0
        %848 = vmatpush1.msra.mxu0 0.0
        %849 = vmatprep.subr.mxu0 0.0
        %850 = vmatpush1.msra.mxu0 0.0
        %851 = vmatprep.subr.mxu0 0.0
        %852 = vmatpush1.msra.mxu0 0.0
        %853 = vmatprep.subr.mxu0 0.0
        %854 = vmatpush1.msra.mxu0 0.0
        %855 = vmatprep.subr.mxu0 0.0
        %856 = vmatpush1.msra.mxu0 0.0
        %857 = vmatprep.mubr.f32.mxu0 0.0
        %858 = vmatmul.mubr.f32.gmra.mrb[0].mxu0 %v622
        %v859 = vpop.f32.mrb[0].mxu0
        %v860 = vadd.f32 0.0, %v859
        %v861 = vpop.f32.mrb[0].mxu0
        %862 = vmatprep.mubr.f32.mxu0 0.0
        %863 = vmatmul.mubr.f32.gmra.mrb[0].mxu0 %v625
        %v864 = vpop.f32.mrb[0].mxu0
        %v865 = vadd.f32 0.0, %v864
        %v866 = vpop.f32.mrb[0].mxu0
        %867 = vmatprep.mubr.f32.mxu0 0.0
        %868 = vmatmul.mubr.f32.gmra.mrb[0].mxu0 %v628
        %v869 = vpop.f32.mrb[0].mxu0
        %v870 = vadd.f32 0.0, %v869
        %v871 = vpop.f32.mrb[0].mxu0
        %872 = vmatprep.mubr.f32.mxu0 0.0
        %873 = vmatmul.mubr.f32.gmra.mrb[0].mxu0 %v631
        %v874 = vpop.f32.mrb[0].mxu0
        %v875 = vadd.f32 0.0, %v874
        %v876 = vpop.f32.mrb[0].mxu0
        %877 = vdwg.mxu0
        %878 = vmatprep.subr.mxu0 0.0
        %879 = vmatpush1.msra.mxu0 %v528
        %880 = vmatprep.subr.mxu0 0.0
        %881 = vmatpush1.msra.mxu0 %v529
        %882 = vmatprep.subr.mxu0 0.0
        %883 = vmatpush1.msra.mxu0 %v530
        %884 = vmatprep.subr.mxu0 0.0
        %885 = vmatpush1.msra.mxu0 %v531
        %886 = vmatprep.subr.mxu0 0.0
        %887 = vmatpush1.msra.mxu0 %v532
        %888 = vmatprep.subr.mxu0 0.0
        %889 = vmatpush1.msra.mxu0 %v533
        %890 = vmatprep.subr.mxu0 0.0
        %891 = vmatpush1.msra.mxu0 %v534
        %892 = vmatprep.subr.mxu0 0.0
        %893 = vmatpush1.msra.mxu0 %v535
        %894 = vmatprep.subr.mxu0 0.0
        %895 = vmatpush1.msra.mxu0 0.0
        %896 = vmatprep.subr.mxu0 0.0
        %897 = vmatpush1.msra.mxu0 0.0
        %898 = vmatprep.subr.mxu0 0.0
        %899 = vmatpush1.msra.mxu0 0.0
        %900 = vmatprep.subr.mxu0 0.0
        %901 = vmatpush1.msra.mxu0 0.0
        %902 = vmatprep.subr.mxu0 0.0
        %903 = vmatpush1.msra.mxu0 0.0
        %904 = vmatprep.subr.mxu0 0.0
        %905 = vmatpush1.msra.mxu0 0.0
        %906 = vmatprep.subr.mxu0 0.0
        %907 = vmatpush1.msra.mxu0 0.0
        %908 = vmatprep.subr.mxu0 0.0
        %909 = vmatpush1.msra.mxu0 0.0
        %910 = vmatprep.subr.mxu0 0.0
        %911 = vmatpush1.msra.mxu0 0.0
        %912 = vmatprep.subr.mxu0 0.0
        %913 = vmatpush1.msra.mxu0 0.0
        %914 = vmatprep.subr.mxu0 0.0
        %915 = vmatpush1.msra.mxu0 0.0
        %916 = vmatprep.subr.mxu0 0.0
        %917 = vmatpush1.msra.mxu0 0.0
        %918 = vmatprep.subr.mxu0 0.0
        %919 = vmatpush1.msra.mxu0 0.0
        %920 = vmatprep.subr.mxu0 0.0
        %921 = vmatpush1.msra.mxu0 0.0
        %922 = vmatprep.subr.mxu0 0.0
        %923 = vmatpush1.msra.mxu0 0.0
        %924 = vmatprep.subr.mxu0 0.0
        %925 = vmatpush1.msra.mxu0 0.0
        %926 = vmatprep.subr.mxu0 0.0
        %927 = vmatpush1.msra.mxu0 0.0
        %928 = vmatprep.subr.mxu0 0.0
        %929 = vmatpush1.msra.mxu0 0.0
        %930 = vmatprep.subr.mxu0 0.0
        %931 = vmatpush1.msra.mxu0 0.0
        %932 = vmatprep.subr.mxu0 0.0
        %933 = vmatpush1.msra.mxu0 0.0
        %934 = vmatprep.subr.mxu0 0.0
        %935 = vmatpush1.msra.mxu0 0.0
        %936 = vmatprep.subr.mxu0 0.0
        %937 = vmatpush1.msra.mxu0 0.0
        %938 = vmatprep.subr.mxu0 0.0
        %939 = vmatpush1.msra.mxu0 0.0
        %940 = vmatprep.subr.mxu0 0.0
        %941 = vmatpush1.msra.mxu0 0.0
        %942 = vmatprep.mubr.f32.mxu0 0.0
        %943 = vmatmul.mubr.f32.gmra.mrb[0].mxu0 %v539
        %v944 = vpop.f32.mrb[0].mxu0
        %v945 = vadd.f32 0.0, %v944
        %v946 = vpop.f32.mrb[0].mxu0
        %947 = vmatprep.mubr.f32.mxu0 0.0
        %948 = vmatmul.mubr.f32.gmra.mrb[0].mxu0 %v542
        %v949 = vpop.f32.mrb[0].mxu0
        %v950 = vadd.f32 0.0, %v949
        %v951 = vpop.f32.mrb[0].mxu0
        %952 = vdwg.mxu0
        %vm953 = vcmask 130048
        %v955 = vsel %vm953, %v619, 0
        %v958 = vsel %vm953, %v700, 0
        %v961 = vsel %vm953, %v705, 0
        %963 = vmatprep.subr.mxu0 0.0
        %964 = vmatpush1.xpose.msra.mxu0 %v958
        %965 = vmatprep.subr.mxu0 0.0
        %966 = vmatpush1.xpose.msra.mxu0 %v961
        %967 = vmatprep.subr.mxu0 0.0
        %968 = vmatpush1.xpose.msra.mxu0 0.0
        %969 = vmatprep.subr.mxu0 0.0
        %970 = vmatpush1.xpose.msra.mxu0 0.0
        %971 = vmatprep.subr.mxu0 0.0
        %972 = vmatpush1.xpose.msra.mxu0 0.0
        %973 = vmatprep.subr.mxu0 0.0
        %974 = vmatpush1.xpose.msra.mxu0 0.0
        %975 = vmatprep.subr.mxu0 0.0
        %976 = vmatpush1.xpose.msra.mxu0 0.0
        %977 = vmatprep.subr.mxu0 0.0
        %978 = vmatpush1.xpose.msra.mxu0 0.0
        %979 = vmatprep.subr.mxu0 0.0
        %980 = vmatpush1.xpose.msra.mxu0 0.0
        %981 = vmatprep.subr.mxu0 0.0
        %982 = vmatpush1.xpose.msra.mxu0 0.0
        %983 = vmatprep.subr.mxu0 0.0
        %984 = vmatpush1.xpose.msra.mxu0 0.0
        %985 = vmatprep.subr.mxu0 0.0
        %986 = vmatpush1.xpose.msra.mxu0 0.0
        %987 = vmatprep.subr.mxu0 0.0
        %988 = vmatpush1.xpose.msra.mxu0 0.0
        %989 = vmatprep.subr.mxu0 0.0
        %990 = vmatpush1.xpose.msra.mxu0 0.0
        %991 = vmatprep.subr.mxu0 0.0
        %992 = vmatpush1.xpose.msra.mxu0 0.0
        %993 = vmatprep.subr.mxu0 0.0
        %994 = vmatpush1.xpose.msra.mxu0 0.0
        %995 = vmatprep.subr.mxu0 0.0
        %996 = vmatpush1.xpose.msra.mxu0 0.0
        %997 = vmatprep.subr.mxu0 0.0
        %998 = vmatpush1.xpose.msra.mxu0 0.0
        %999 = vmatprep.subr.mxu0 0.0
        %1000 = vmatpush1.xpose.msra.mxu0 0.0
        %1001 = vmatprep.subr.mxu0 0.0
        %1002 = vmatpush1.xpose.msra.mxu0 0.0
        %1003 = vmatprep.subr.mxu0 0.0
        %1004 = vmatpush1.xpose.msra.mxu0 0.0
        %1005 = vmatprep.subr.mxu0 0.0
        %1006 = vmatpush1.xpose.msra.mxu0 0.0
        %1007 = vmatprep.subr.mxu0 0.0
        %1008 = vmatpush1.xpose.msra.mxu0 0.0
        %1009 = vmatprep.subr.mxu0 0.0
        %1010 = vmatpush1.xpose.msra.mxu0 0.0
        %1011 = vmatprep.subr.mxu0 0.0
        %1012 = vmatpush1.xpose.msra.mxu0 0.0
        %1013 = vmatprep.subr.mxu0 0.0
        %1014 = vmatpush1.xpose.msra.mxu0 0.0
        %1015 = vmatprep.subr.mxu0 0.0
        %1016 = vmatpush1.xpose.msra.mxu0 0.0
        %1017 = vmatprep.subr.mxu0 0.0
        %1018 = vmatpush1.xpose.msra.mxu0 0.0
        %1019 = vmatprep.subr.mxu0 0.0
        %1020 = vmatpush1.xpose.msra.mxu0 0.0
        %1021 = vmatprep.subr.mxu0 0.0
        %1022 = vmatpush1.xpose.msra.mxu0 0.0
        %1023 = vmatprep.subr.mxu0 0.0
        %1024 = vmatpush1.xpose.msra.mxu0 0.0
        %1025 = vmatprep.subr.mxu0 0.0
        %1026 = vmatpush1.xpose.msra.mxu0 0.0
        %1027 = vmatprep.mubr.f32.mxu0 0.0
        %1028 = vmatmul.mubr.f32.gmra.mrb[0].mxu0 %v955
        %v1029 = vpop.f32.mrb[0].mxu0
        %v1030 = vadd.f32 0.0, %v1029
        %v1031 = vpop.f32.mrb[0].mxu0
        %1032 = vdwg.mxu0
        %v1034 = vsel %vm953, %v620, 0
        %v1037 = vsel %vm953, %v710, 0
        %v1040 = vsel %vm953, %v715, 0
        %1042 = vmatprep.subr.mxu0 0.0
        %1043 = vmatpush1.xpose.msra.mxu0 %v1037
        %1044 = vmatprep.subr.mxu0 0.0
        %1045 = vmatpush1.xpose.msra.mxu0 %v1040
        %1046 = vmatprep.subr.mxu0 0.0
        %1047 = vmatpush1.xpose.msra.mxu0 0.0
        %1048 = vmatprep.subr.mxu0 0.0
        %1049 = vmatpush1.xpose.msra.mxu0 0.0
        %1050 = vmatprep.subr.mxu0 0.0
        %1051 = vmatpush1.xpose.msra.mxu0 0.0
        %1052 = vmatprep.subr.mxu0 0.0
        %1053 = vmatpush1.xpose.msra.mxu0 0.0
        %1054 = vmatprep.subr.mxu0 0.0
        %1055 = vmatpush1.xpose.msra.mxu0 0.0
        %1056 = vmatprep.subr.mxu0 0.0
        %1057 = vmatpush1.xpose.msra.mxu0 0.0
        %1058 = vmatprep.subr.mxu0 0.0
        %1059 = vmatpush1.xpose.msra.mxu0 0.0
        %1060 = vmatprep.subr.mxu0 0.0
        %1061 = vmatpush1.xpose.msra.mxu0 0.0
        %1062 = vmatprep.subr.mxu0 0.0
        %1063 = vmatpush1.xpose.msra.mxu0 0.0
        %1064 = vmatprep.subr.mxu0 0.0
        %1065 = vmatpush1.xpose.msra.mxu0 0.0
        %1066 = vmatprep.subr.mxu0 0.0
        %1067 = vmatpush1.xpose.msra.mxu0 0.0
        %1068 = vmatprep.subr.mxu0 0.0
        %1069 = vmatpush1.xpose.msra.mxu0 0.0
        %1070 = vmatprep.subr.mxu0 0.0
        %1071 = vmatpush1.xpose.msra.mxu0 0.0
        %1072 = vmatprep.subr.mxu0 0.0
        %1073 = vmatpush1.xpose.msra.mxu0 0.0
        %1074 = vmatprep.subr.mxu0 0.0
        %1075 = vmatpush1.xpose.msra.mxu0 0.0
        %1076 = vmatprep.subr.mxu0 0.0
        %1077 = vmatpush1.xpose.msra.mxu0 0.0
        %1078 = vmatprep.subr.mxu0 0.0
        %1079 = vmatpush1.xpose.msra.mxu0 0.0
        %1080 = vmatprep.subr.mxu0 0.0
        %1081 = vmatpush1.xpose.msra.mxu0 0.0
        %1082 = vmatprep.subr.mxu0 0.0
        %1083 = vmatpush1.xpose.msra.mxu0 0.0
        %1084 = vmatprep.subr.mxu0 0.0
        %1085 = vmatpush1.xpose.msra.mxu0 0.0
        %1086 = vmatprep.subr.mxu0 0.0
        %1087 = vmatpush1.xpose.msra.mxu0 0.0
        %1088 = vmatprep.subr.mxu0 0.0
        %1089 = vmatpush1.xpose.msra.mxu0 0.0
        %1090 = vmatprep.subr.mxu0 0.0
        %1091 = vmatpush1.xpose.msra.mxu0 0.0
        %1092 = vmatprep.subr.mxu0 0.0
        %1093 = vmatpush1.xpose.msra.mxu0 0.0
        %1094 = vmatprep.subr.mxu0 0.0
        %1095 = vmatpush1.xpose.msra.mxu0 0.0
        %1096 = vmatprep.subr.mxu0 0.0
        %1097 = vmatpush1.xpose.msra.mxu0 0.0
        %1098 = vmatprep.subr.mxu0 0.0
        %1099 = vmatpush1.xpose.msra.mxu0 0.0
        %1100 = vmatprep.subr.mxu0 0.0
        %1101 = vmatpush1.xpose.msra.mxu0 0.0
        %1102 = vmatprep.subr.mxu0 0.0
        %1103 = vmatpush1.xpose.msra.mxu0 0.0
        %1104 = vmatprep.subr.mxu0 0.0
        %1105 = vmatpush1.xpose.msra.mxu0 0.0
        %1106 = vmatprep.mubr.f32.mxu0 0.0
        %1107 = vmatmul.mubr.f32.gmra.mrb[0].mxu0 %v1034
        %v1108 = vpop.f32.mrb[0].mxu0
        %v1109 = vadd.f32 0.0, %v1108
        %v1110 = vpop.f32.mrb[0].mxu0
        %1111 = vdwg.mxu0
        %v1113 = vsel %vm953, %v785, 0
        %1115 = vmatprep.subr.mxu0 0.0
        %1116 = vmatpush1.xpose.msra.mxu0 %v1113
        %1117 = vmatprep.subr.mxu0 0.0
        %1118 = vmatpush1.xpose.msra.mxu0 0.0
        %1119 = vmatprep.subr.mxu0 0.0
        %1120 = vmatpush1.xpose.msra.mxu0 0.0
        %1121 = vmatprep.subr.mxu0 0.0
        %1122 = vmatpush1.xpose.msra.mxu0 0.0
        %1123 = vmatprep.subr.mxu0 0.0
        %1124 = vmatpush1.xpose.msra.mxu0 0.0
        %1125 = vmatprep.subr.mxu0 0.0
        %1126 = vmatpush1.xpose.msra.mxu0 0.0
        %1127 = vmatprep.subr.mxu0 0.0
        %1128 = vmatpush1.xpose.msra.mxu0 0.0
        %1129 = vmatprep.subr.mxu0 0.0
        %1130 = vmatpush1.xpose.msra.mxu0 0.0
        %1131 = vmatprep.subr.mxu0 0.0
        %1132 = vmatpush1.xpose.msra.mxu0 0.0
        %1133 = vmatprep.subr.mxu0 0.0
        %1134 = vmatpush1.xpose.msra.mxu0 0.0
        %1135 = vmatprep.subr.mxu0 0.0
        %1136 = vmatpush1.xpose.msra.mxu0 0.0
        %1137 = vmatprep.subr.mxu0 0.0
        %1138 = vmatpush1.xpose.msra.mxu0 0.0
        %1139 = vmatprep.subr.mxu0 0.0
        %1140 = vmatpush1.xpose.msra.mxu0 0.0
        %1141 = vmatprep.subr.mxu0 0.0
        %1142 = vmatpush1.xpose.msra.mxu0 0.0
        %1143 = vmatprep.subr.mxu0 0.0
        %1144 = vmatpush1.xpose.msra.mxu0 0.0
        %1145 = vmatprep.subr.mxu0 0.0
        %1146 = vmatpush1.xpose.msra.mxu0 0.0
        %1147 = vmatprep.subr.mxu0 0.0
        %1148 = vmatpush1.xpose.msra.mxu0 0.0
        %1149 = vmatprep.subr.mxu0 0.0
        %1150 = vmatpush1.xpose.msra.mxu0 0.0
        %1151 = vmatprep.subr.mxu0 0.0
        %1152 = vmatpush1.xpose.msra.mxu0 0.0
        %1153 = vmatprep.subr.mxu0 0.0
        %1154 = vmatpush1.xpose.msra.mxu0 0.0
        %1155 = vmatprep.subr.mxu0 0.0
        %1156 = vmatpush1.xpose.msra.mxu0 0.0
        %1157 = vmatprep.subr.mxu0 0.0
        %1158 = vmatpush1.xpose.msra.mxu0 0.0
        %1159 = vmatprep.subr.mxu0 0.0
        %1160 = vmatpush1.xpose.msra.mxu0 0.0
        %1161 = vmatprep.subr.mxu0 0.0
        %1162 = vmatpush1.xpose.msra.mxu0 0.0
        %1163 = vmatprep.subr.mxu0 0.0
        %1164 = vmatpush1.xpose.msra.mxu0 0.0
        %1165 = vmatprep.subr.mxu0 0.0
        %1166 = vmatpush1.xpose.msra.mxu0 0.0
        %1167 = vmatprep.subr.mxu0 0.0
        %1168 = vmatpush1.xpose.msra.mxu0 0.0
        %1169 = vmatprep.subr.mxu0 0.0
        %1170 = vmatpush1.xpose.msra.mxu0 0.0
        %1171 = vmatprep.subr.mxu0 0.0
        %1172 = vmatpush1.xpose.msra.mxu0 0.0
        %1173 = vmatprep.subr.mxu0 0.0
        %1174 = vmatpush1.xpose.msra.mxu0 0.0
        %1175 = vmatprep.subr.mxu0 0.0
        %1176 = vmatpush1.xpose.msra.mxu0 0.0
        %1177 = vmatprep.subr.mxu0 0.0
        %1178 = vmatpush1.xpose.msra.mxu0 0.0
        %1179 = vmatprep.mubr.f32.mxu0 0.0
        %1180 = vmatmul.mubr.f32.gmra.mrb[0].mxu0 %v955
        %v1181 = vpop.f32.mrb[0].mxu0
        %v1182 = vadd.f32 0.0, %v1181
        %v1183 = vpop.f32.mrb[0].mxu0
        %1184 = vdwg.mxu0
        %v1186 = vsel %vm953, %v790, 0
        %1188 = vmatprep.subr.mxu0 0.0
        %1189 = vmatpush1.xpose.msra.mxu0 %v1186
        %1190 = vmatprep.subr.mxu0 0.0
        %1191 = vmatpush1.xpose.msra.mxu0 0.0
        %1192 = vmatprep.subr.mxu0 0.0
        %1193 = vmatpush1.xpose.msra.mxu0 0.0
        %1194 = vmatprep.subr.mxu0 0.0
        %1195 = vmatpush1.xpose.msra.mxu0 0.0
        %1196 = vmatprep.subr.mxu0 0.0
        %1197 = vmatpush1.xpose.msra.mxu0 0.0
        %1198 = vmatprep.subr.mxu0 0.0
        %1199 = vmatpush1.xpose.msra.mxu0 0.0
        %1200 = vmatprep.subr.mxu0 0.0
        %1201 = vmatpush1.xpose.msra.mxu0 0.0
        %1202 = vmatprep.subr.mxu0 0.0
        %1203 = vmatpush1.xpose.msra.mxu0 0.0
        %1204 = vmatprep.subr.mxu0 0.0
        %1205 = vmatpush1.xpose.msra.mxu0 0.0
        %1206 = vmatprep.subr.mxu0 0.0
        %1207 = vmatpush1.xpose.msra.mxu0 0.0
        %1208 = vmatprep.subr.mxu0 0.0
        %1209 = vmatpush1.xpose.msra.mxu0 0.0
        %1210 = vmatprep.subr.mxu0 0.0
        %1211 = vmatpush1.xpose.msra.mxu0 0.0
        %1212 = vmatprep.subr.mxu0 0.0
        %1213 = vmatpush1.xpose.msra.mxu0 0.0
        %1214 = vmatprep.subr.mxu0 0.0
        %1215 = vmatpush1.xpose.msra.mxu0 0.0
        %1216 = vmatprep.subr.mxu0 0.0
        %1217 = vmatpush1.xpose.msra.mxu0 0.0
        %1218 = vmatprep.subr.mxu0 0.0
        %1219 = vmatpush1.xpose.msra.mxu0 0.0
        %1220 = vmatprep.subr.mxu0 0.0
        %1221 = vmatpush1.xpose.msra.mxu0 0.0
        %1222 = vmatprep.subr.mxu0 0.0
        %1223 = vmatpush1.xpose.msra.mxu0 0.0
        %1224 = vmatprep.subr.mxu0 0.0
        %1225 = vmatpush1.xpose.msra.mxu0 0.0
        %1226 = vmatprep.subr.mxu0 0.0
        %1227 = vmatpush1.xpose.msra.mxu0 0.0
        %1228 = vmatprep.subr.mxu0 0.0
        %1229 = vmatpush1.xpose.msra.mxu0 0.0
        %1230 = vmatprep.subr.mxu0 0.0
        %1231 = vmatpush1.xpose.msra.mxu0 0.0
        %1232 = vmatprep.subr.mxu0 0.0
        %1233 = vmatpush1.xpose.msra.mxu0 0.0
        %1234 = vmatprep.subr.mxu0 0.0
        %1235 = vmatpush1.xpose.msra.mxu0 0.0
        %1236 = vmatprep.subr.mxu0 0.0
        %1237 = vmatpush1.xpose.msra.mxu0 0.0
        %1238 = vmatprep.subr.mxu0 0.0
        %1239 = vmatpush1.xpose.msra.mxu0 0.0
        %1240 = vmatprep.subr.mxu0 0.0
        %1241 = vmatpush1.xpose.msra.mxu0 0.0
        %1242 = vmatprep.subr.mxu0 0.0
        %1243 = vmatpush1.xpose.msra.mxu0 0.0
        %1244 = vmatprep.subr.mxu0 0.0
        %1245 = vmatpush1.xpose.msra.mxu0 0.0
        %1246 = vmatprep.subr.mxu0 0.0
        %1247 = vmatpush1.xpose.msra.mxu0 0.0
        %1248 = vmatprep.subr.mxu0 0.0
        %1249 = vmatpush1.xpose.msra.mxu0 0.0
        %1250 = vmatprep.subr.mxu0 0.0
        %1251 = vmatpush1.xpose.msra.mxu0 0.0
        %1252 = vmatprep.mubr.f32.mxu0 0.0
        %1253 = vmatmul.mubr.f32.gmra.mrb[0].mxu0 %v1034
        %v1254 = vpop.f32.mrb[0].mxu0
        %v1255 = vadd.f32 0.0, %v1254
        %v1256 = vpop.f32.mrb[0].mxu0
        %1257 = vdwg.mxu0
        %v1258 = vsel %vm953, %v1030, -inf
        %1259 = vmax.xlane.f32.xlu0 %v1258
        %v1260 = vpop.xlane.xlu0 %1259
        %v1261 = vsel %vm953, %v1109, -inf
        %1262 = vmax.xlane.f32.xlu0 %v1261
        %v1263 = vpop.xlane.xlu0 %1262
        %vm1264 = vcmask 64512
        %v1265 = vsel %vm1264, %v1182, -inf
        %1266 = vmax.xlane.f32.xlu0 %v1265
        %v1267 = vpop.xlane.xlu0 %1266
        %v1268 = vsel %vm1264, %v1255, -inf
        %1269 = vmax.xlane.f32.xlu0 %v1268
        %v1270 = vpop.xlane.xlu0 %1269
        %v1271 = vmax.f32 %v1260, %v1267
        %v1272 = vmax.f32 %v1263, %v1270
        %v1273 = vsub.f32 %v1030, %v1271
        %v1274 = vsub.f32 %v1109, %v1272
        %v1275 = vmul.f32 %v1273, 1.442695
        %v1276 = vpow.pop %v1275
        %v1277 = vmul.f32 %v1274, 1.442695
        %v1278 = vpow.pop %v1277
        %v1279 = vsub.f32 %v1182, %v1271
        %v1280 = vsub.f32 %v1255, %v1272
        %v1281 = vmul.f32 %v1279, 1.442695
        %v1282 = vpow.pop %v1281
        %v1283 = vmul.f32 %v1280, 1.442695
        %v1284 = vpow.pop %v1283
        %v1285 = vsel %vm953, %v1276, 0.0
        %1286 = vadd.xlane.f32.xlu0 %v1285
        %v1287 = vpop.xlane.xlu0 %1286
        %v1288 = vsel %vm953, %v1278, 0.0
        %1289 = vadd.xlane.f32.xlu0 %v1288
        %v1290 = vpop.xlane.xlu0 %1289
        %v1291 = vsel %vm1264, %v1282, 0.0
        %1292 = vadd.xlane.f32.xlu0 %v1291
        %v1293 = vpop.xlane.xlu0 %1292
        %v1294 = vsel %vm1264, %v1284, 0.0
        %1295 = vadd.xlane.f32.xlu0 %v1294
        %v1296 = vpop.xlane.xlu0 %1295
        %v1297 = vadd.f32 %v1287, %v1293
        %v1298 = vadd.f32 %v1290, %v1296
        %v1299 = vrcp.pop %v1297
        %v1300 = vrcp.pop %v1298
        %v1301 = vmul.f32 %v1276, %v1299
        %v1302 = vmul.f32 %v1278, %v1300
        %v1303 = vmul.f32 %v1282, %v1299
        %v1304 = vmul.f32 %v1284, %v1300
        %v1306 = vsel %vm1264, %v1303, 0
        %1308 = vmatprep.subr.mxu0 0.0
        %1309 = vmatpush1.msra.mxu0 %v945
        %1310 = vmatprep.subr.mxu0 0.0
        %1311 = vmatpush1.msra.mxu0 0.0
        %1312 = vmatprep.subr.mxu0 0.0
        %1313 = vmatpush1.msra.mxu0 0.0
        %1314 = vmatprep.subr.mxu0 0.0
        %1315 = vmatpush1.msra.mxu0 0.0
        %1316 = vmatprep.subr.mxu0 0.0
        %1317 = vmatpush1.msra.mxu0 0.0
        %1318 = vmatprep.subr.mxu0 0.0
        %1319 = vmatpush1.msra.mxu0 0.0
        %1320 = vmatprep.subr.mxu0 0.0
        %1321 = vmatpush1.msra.mxu0 0.0
        %1322 = vmatprep.subr.mxu0 0.0
        %1323 = vmatpush1.msra.mxu0 0.0
        %1324 = vmatprep.subr.mxu0 0.0
        %1325 = vmatpush1.msra.mxu0 0.0
        %1326 = vmatprep.subr.mxu0 0.0
        %1327 = vmatpush1.msra.mxu0 0.0
        %1328 = vmatprep.subr.mxu0 0.0
        %1329 = vmatpush1.msra.mxu0 0.0
        %1330 = vmatprep.subr.mxu0 0.0
        %1331 = vmatpush1.msra.mxu0 0.0
        %1332 = vmatprep.subr.mxu0 0.0
        %1333 = vmatpush1.msra.mxu0 0.0
        %1334 = vmatprep.subr.mxu0 0.0
        %1335 = vmatpush1.msra.mxu0 0.0
        %1336 = vmatprep.subr.mxu0 0.0
        %1337 = vmatpush1.msra.mxu0 0.0
        %1338 = vmatprep.subr.mxu0 0.0
        %1339 = vmatpush1.msra.mxu0 0.0
        %1340 = vmatprep.subr.mxu0 0.0
        %1341 = vmatpush1.msra.mxu0 0.0
        %1342 = vmatprep.subr.mxu0 0.0
        %1343 = vmatpush1.msra.mxu0 0.0
        %1344 = vmatprep.subr.mxu0 0.0
        %1345 = vmatpush1.msra.mxu0 0.0
        %1346 = vmatprep.subr.mxu0 0.0
        %1347 = vmatpush1.msra.mxu0 0.0
        %1348 = vmatprep.subr.mxu0 0.0
        %1349 = vmatpush1.msra.mxu0 0.0
        %1350 = vmatprep.subr.mxu0 0.0
        %1351 = vmatpush1.msra.mxu0 0.0
        %1352 = vmatprep.subr.mxu0 0.0
        %1353 = vmatpush1.msra.mxu0 0.0
        %1354 = vmatprep.subr.mxu0 0.0
        %1355 = vmatpush1.msra.mxu0 0.0
        %1356 = vmatprep.subr.mxu0 0.0
        %1357 = vmatpush1.msra.mxu0 0.0
        %1358 = vmatprep.subr.mxu0 0.0
        %1359 = vmatpush1.msra.mxu0 0.0
        %1360 = vmatprep.subr.mxu0 0.0
        %1361 = vmatpush1.msra.mxu0 0.0
        %1362 = vmatprep.subr.mxu0 0.0
        %1363 = vmatpush1.msra.mxu0 0.0
        %1364 = vmatprep.subr.mxu0 0.0
        %1365 = vmatpush1.msra.mxu0 0.0
        %1366 = vmatprep.subr.mxu0 0.0
        %1367 = vmatpush1.msra.mxu0 0.0
        %1368 = vmatprep.subr.mxu0 0.0
        %1369 = vmatpush1.msra.mxu0 0.0
        %1370 = vmatprep.subr.mxu0 0.0
        %1371 = vmatpush1.msra.mxu0 0.0
        %1372 = vmatprep.mubr.f32.mxu0 0.0
        %1373 = vmatmul.mubr.f32.gmra.mrb[0].mxu0 %v1306
        %v1374 = vpop.f32.mrb[0].mxu0
        %v1375 = vadd.f32 0.0, %v1374
        %v1376 = vpop.f32.mrb[0].mxu0
        %1377 = vdwg.mxu0
        %v1379 = vsel %vm1264, %v1304, 0
        %1381 = vmatprep.subr.mxu0 0.0
        %1382 = vmatpush1.msra.mxu0 %v950
        %1383 = vmatprep.subr.mxu0 0.0
        %1384 = vmatpush1.msra.mxu0 0.0
        %1385 = vmatprep.subr.mxu0 0.0
        %1386 = vmatpush1.msra.mxu0 0.0
        %1387 = vmatprep.subr.mxu0 0.0
        %1388 = vmatpush1.msra.mxu0 0.0
        %1389 = vmatprep.subr.mxu0 0.0
        %1390 = vmatpush1.msra.mxu0 0.0
        %1391 = vmatprep.subr.mxu0 0.0
        %1392 = vmatpush1.msra.mxu0 0.0
        %1393 = vmatprep.subr.mxu0 0.0
        %1394 = vmatpush1.msra.mxu0 0.0
        %1395 = vmatprep.subr.mxu0 0.0
        %1396 = vmatpush1.msra.mxu0 0.0
        %1397 = vmatprep.subr.mxu0 0.0
        %1398 = vmatpush1.msra.mxu0 0.0
        %1399 = vmatprep.subr.mxu0 0.0
        %1400 = vmatpush1.msra.mxu0 0.0
        %1401 = vmatprep.subr.mxu0 0.0
        %1402 = vmatpush1.msra.mxu0 0.0
        %1403 = vmatprep.subr.mxu0 0.0
        %1404 = vmatpush1.msra.mxu0 0.0
        %1405 = vmatprep.subr.mxu0 0.0
        %1406 = vmatpush1.msra.mxu0 0.0
        %1407 = vmatprep.subr.mxu0 0.0
        %1408 = vmatpush1.msra.mxu0 0.0
        %1409 = vmatprep.subr.mxu0 0.0
        %1410 = vmatpush1.msra.mxu0 0.0
        %1411 = vmatprep.subr.mxu0 0.0
        %1412 = vmatpush1.msra.mxu0 0.0
        %1413 = vmatprep.subr.mxu0 0.0
        %1414 = vmatpush1.msra.mxu0 0.0
        %1415 = vmatprep.subr.mxu0 0.0
        %1416 = vmatpush1.msra.mxu0 0.0
        %1417 = vmatprep.subr.mxu0 0.0
        %1418 = vmatpush1.msra.mxu0 0.0
        %1419 = vmatprep.subr.mxu0 0.0
        %1420 = vmatpush1.msra.mxu0 0.0
        %1421 = vmatprep.subr.mxu0 0.0
        %1422 = vmatpush1.msra.mxu0 0.0
        %1423 = vmatprep.subr.mxu0 0.0
        %1424 = vmatpush1.msra.mxu0 0.0
        %1425 = vmatprep.subr.mxu0 0.0
        %1426 = vmatpush1.msra.mxu0 0.0
        %1427 = vmatprep.subr.mxu0 0.0
        %1428 = vmatpush1.msra.mxu0 0.0
        %1429 = vmatprep.subr.mxu0 0.0
        %1430 = vmatpush1.msra.mxu0 0.0
        %1431 = vmatprep.subr.mxu0 0.0
        %1432 = vmatpush1.msra.mxu0 0.0
        %1433 = vmatprep.subr.mxu0 0.0
        %1434 = vmatpush1.msra.mxu0 0.0
        %1435 = vmatprep.subr.mxu0 0.0
        %1436 = vmatpush1.msra.mxu0 0.0
        %1437 = vmatprep.subr.mxu0 0.0
        %1438 = vmatpush1.msra.mxu0 0.0
        %1439 = vmatprep.subr.mxu0 0.0
        %1440 = vmatpush1.msra.mxu0 0.0
        %1441 = vmatprep.subr.mxu0 0.0
        %1442 = vmatpush1.msra.mxu0 0.0
        %1443 = vmatprep.subr.mxu0 0.0
        %1444 = vmatpush1.msra.mxu0 0.0
        %1445 = vmatprep.mubr.f32.mxu0 0.0
        %1446 = vmatmul.mubr.f32.gmra.mrb[0].mxu0 %v1379
        %v1447 = vpop.f32.mrb[0].mxu0
        %v1448 = vadd.f32 0.0, %v1447
        %v1449 = vpop.f32.mrb[0].mxu0
        %1450 = vdwg.mxu0
        %v1452 = vsel %vm953, %v1301, 0
        %1454 = vmatprep.subr.mxu0 0.0
        %1455 = vmatpush1.msra.mxu0 %v860
        %1456 = vmatprep.subr.mxu0 0.0
        %1457 = vmatpush1.msra.mxu0 %v865
        %1458 = vmatprep.subr.mxu0 0.0
        %1459 = vmatpush1.msra.mxu0 0.0
        %1460 = vmatprep.subr.mxu0 0.0
        %1461 = vmatpush1.msra.mxu0 0.0
        %1462 = vmatprep.subr.mxu0 0.0
        %1463 = vmatpush1.msra.mxu0 0.0
        %1464 = vmatprep.subr.mxu0 0.0
        %1465 = vmatpush1.msra.mxu0 0.0
        %1466 = vmatprep.subr.mxu0 0.0
        %1467 = vmatpush1.msra.mxu0 0.0
        %1468 = vmatprep.subr.mxu0 0.0
        %1469 = vmatpush1.msra.mxu0 0.0
        %1470 = vmatprep.subr.mxu0 0.0
        %1471 = vmatpush1.msra.mxu0 0.0
        %1472 = vmatprep.subr.mxu0 0.0
        %1473 = vmatpush1.msra.mxu0 0.0
        %1474 = vmatprep.subr.mxu0 0.0
        %1475 = vmatpush1.msra.mxu0 0.0
        %1476 = vmatprep.subr.mxu0 0.0
        %1477 = vmatpush1.msra.mxu0 0.0
        %1478 = vmatprep.subr.mxu0 0.0
        %1479 = vmatpush1.msra.mxu0 0.0
        %1480 = vmatprep.subr.mxu0 0.0
        %1481 = vmatpush1.msra.mxu0 0.0
        %1482 = vmatprep.subr.mxu0 0.0
        %1483 = vmatpush1.msra.mxu0 0.0
        %1484 = vmatprep.subr.mxu0 0.0
        %1485 = vmatpush1.msra.mxu0 0.0
        %1486 = vmatprep.subr.mxu0 0.0
        %1487 = vmatpush1.msra.mxu0 0.0
        %1488 = vmatprep.subr.mxu0 0.0
        %1489 = vmatpush1.msra.mxu0 0.0
        %1490 = vmatprep.subr.mxu0 0.0
        %1491 = vmatpush1.msra.mxu0 0.0
        %1492 = vmatprep.subr.mxu0 0.0
        %1493 = vmatpush1.msra.mxu0 0.0
        %1494 = vmatprep.subr.mxu0 0.0
        %1495 = vmatpush1.msra.mxu0 0.0
        %1496 = vmatprep.subr.mxu0 0.0
        %1497 = vmatpush1.msra.mxu0 0.0
        %1498 = vmatprep.subr.mxu0 0.0
        %1499 = vmatpush1.msra.mxu0 0.0
        %1500 = vmatprep.subr.mxu0 0.0
        %1501 = vmatpush1.msra.mxu0 0.0
        %1502 = vmatprep.subr.mxu0 0.0
        %1503 = vmatpush1.msra.mxu0 0.0
        %1504 = vmatprep.subr.mxu0 0.0
        %1505 = vmatpush1.msra.mxu0 0.0
        %1506 = vmatprep.subr.mxu0 0.0
        %1507 = vmatpush1.msra.mxu0 0.0
        %1508 = vmatprep.subr.mxu0 0.0
        %1509 = vmatpush1.msra.mxu0 0.0
        %1510 = vmatprep.subr.mxu0 0.0
        %1511 = vmatpush1.msra.mxu0 0.0
        %1512 = vmatprep.subr.mxu0 0.0
        %1513 = vmatpush1.msra.mxu0 0.0
        %1514 = vmatprep.subr.mxu0 0.0
        %1515 = vmatpush1.msra.mxu0 0.0
        %1516 = vmatprep.subr.mxu0 0.0
        %1517 = vmatpush1.msra.mxu0 0.0
        %1518 = vmatprep.mubr.f32.mxu0 0.0
        %1519 = vmatmul.mubr.f32.gmra.mrb[0].mxu0 %v1452
        %v1520 = vpop.f32.mrb[0].mxu0
        %v1521 = vadd.f32 %v1375, %v1520
        %v1522 = vpop.f32.mrb[0].mxu0
        %1523 = vdwg.mxu0
        %v1525 = vsel %vm953, %v1302, 0
        %1527 = vmatprep.subr.mxu0 0.0
        %1528 = vmatpush1.msra.mxu0 %v870
        %1529 = vmatprep.subr.mxu0 0.0
        %1530 = vmatpush1.msra.mxu0 %v875
        %1531 = vmatprep.subr.mxu0 0.0
        %1532 = vmatpush1.msra.mxu0 0.0
        %1533 = vmatprep.subr.mxu0 0.0
        %1534 = vmatpush1.msra.mxu0 0.0
        %1535 = vmatprep.subr.mxu0 0.0
        %1536 = vmatpush1.msra.mxu0 0.0
        %1537 = vmatprep.subr.mxu0 0.0
        %1538 = vmatpush1.msra.mxu0 0.0
        %1539 = vmatprep.subr.mxu0 0.0
        %1540 = vmatpush1.msra.mxu0 0.0
        %1541 = vmatprep.subr.mxu0 0.0
        %1542 = vmatpush1.msra.mxu0 0.0
        %1543 = vmatprep.subr.mxu0 0.0
        %1544 = vmatpush1.msra.mxu0 0.0
        %1545 = vmatprep.subr.mxu0 0.0
        %1546 = vmatpush1.msra.mxu0 0.0
        %1547 = vmatprep.subr.mxu0 0.0
        %1548 = vmatpush1.msra.mxu0 0.0
        %1549 = vmatprep.subr.mxu0 0.0
        %1550 = vmatpush1.msra.mxu0 0.0
        %1551 = vmatprep.subr.mxu0 0.0
        %1552 = vmatpush1.msra.mxu0 0.0
        %1553 = vmatprep.subr.mxu0 0.0
        %1554 = vmatpush1.msra.mxu0 0.0
        %1555 = vmatprep.subr.mxu0 0.0
        %1556 = vmatpush1.msra.mxu0 0.0
        %1557 = vmatprep.subr.mxu0 0.0
        %1558 = vmatpush1.msra.mxu0 0.0
        %1559 = vmatprep.subr.mxu0 0.0
        %1560 = vmatpush1.msra.mxu0 0.0
        %1561 = vmatprep.subr.mxu0 0.0
        %1562 = vmatpush1.msra.mxu0 0.0
        %1563 = vmatprep.subr.mxu0 0.0
        %1564 = vmatpush1.msra.mxu0 0.0
        %1565 = vmatprep.subr.mxu0 0.0
        %1566 = vmatpush1.msra.mxu0 0.0
        %1567 = vmatprep.subr.mxu0 0.0
        %1568 = vmatpush1.msra.mxu0 0.0
        %1569 = vmatprep.subr.mxu0 0.0
        %1570 = vmatpush1.msra.mxu0 0.0
        %1571 = vmatprep.subr.mxu0 0.0
        %1572 = vmatpush1.msra.mxu0 0.0
        %1573 = vmatprep.subr.mxu0 0.0
        %1574 = vmatpush1.msra.mxu0 0.0
        %1575 = vmatprep.subr.mxu0 0.0
        %1576 = vmatpush1.msra.mxu0 0.0
        %1577 = vmatprep.subr.mxu0 0.0
        %1578 = vmatpush1.msra.mxu0 0.0
        %1579 = vmatprep.subr.mxu0 0.0
        %1580 = vmatpush1.msra.mxu0 0.0
        %1581 = vmatprep.subr.mxu0 0.0
        %1582 = vmatpush1.msra.mxu0 0.0
        %1583 = vmatprep.subr.mxu0 0.0
        %1584 = vmatpush1.msra.mxu0 0.0
        %1585 = vmatprep.subr.mxu0 0.0
        %1586 = vmatpush1.msra.mxu0 0.0
        %1587 = vmatprep.subr.mxu0 0.0
        %1588 = vmatpush1.msra.mxu0 0.0
        %1589 = vmatprep.subr.mxu0 0.0
        %1590 = vmatpush1.msra.mxu0 0.0
        %1591 = vmatprep.mubr.f32.mxu0 0.0
        %1592 = vmatmul.mubr.f32.gmra.mrb[0].mxu0 %v1525
        %v1593 = vpop.f32.mrb[0].mxu0
        %v1594 = vadd.f32 %v1448, %v1593
        %v1595 = vpop.f32.mrb[0].mxu0
        %1596 = vdwg.mxu0
        %s1597 = scalar_lea.vmem %s6, 64
        %v1598 = vld [vmem:[%s1597] sm:$0xff]
        %v1599 = vld [vmem:[%s1597 + $0x8] sm:$0xff]
        %v1600 = vld [vmem:[%s1597 + $0x10] sm:$0xff]
        %v1601 = vld [vmem:[%s1597 + $0x18] sm:$0xff]
        %v1602 = vld [vmem:[%s1597 + $0x20] sm:$0xff]
        %v1603 = vld [vmem:[%s1597 + $0x28] sm:$0xff]
        %v1604 = vld [vmem:[%s1597 + $0x30] sm:$0xff]
        %v1605 = vld [vmem:[%s1597 + $0x38] sm:$0xff]
        %s1606 = scalar_lea.vmem %s7, 64
        %v1607 = vld [vmem:[%s1606] sm:$0xff]
        %v1608 = vld [vmem:[%s1606 + $0x8] sm:$0xff]
        %v1609 = vld [vmem:[%s1606 + $0x10] sm:$0xff]
        %v1610 = vld [vmem:[%s1606 + $0x18] sm:$0xff]
        %v1611 = vld [vmem:[%s1606 + $0x20] sm:$0xff]
        %v1612 = vld [vmem:[%s1606 + $0x28] sm:$0xff]
        %v1613 = vld [vmem:[%s1606 + $0x30] sm:$0xff]
        %v1614 = vld [vmem:[%s1606 + $0x38] sm:$0xff]
        %s1615 = scalar_lea.vmem %s8, 64
        %v1616 = vld [vmem:[%s1615] sm:$0xff]
        %v1617 = vld [vmem:[%s1615 + $0x8] sm:$0xff]
        %v1618 = vld [vmem:[%s1615 + $0x10] sm:$0xff]
        %v1619 = vld [vmem:[%s1615 + $0x18] sm:$0xff]
        %v1620 = vld [vmem:[%s1615 + $0x20] sm:$0xff]
        %v1621 = vld [vmem:[%s1615 + $0x28] sm:$0xff]
        %v1622 = vld [vmem:[%s1615 + $0x30] sm:$0xff]
        %v1623 = vld [vmem:[%s1615 + $0x38] sm:$0xff]
        %s1624 = scalar_lea.vmem %s9, 16
        %v1625 = vld [vmem:[%s1624] sm:$0xff]
        %v1626 = vld [vmem:[%s1624 + $0x8] sm:$0xff]
        %1627 = vmatprep.subr.mxu0 0.0
        %1628 = vmatpush1.msra.mxu0 %v1598
        %1629 = vmatprep.subr.mxu0 0.0
        %1630 = vmatpush1.msra.mxu0 %v1599
        %1631 = vmatprep.subr.mxu0 0.0
        %1632 = vmatpush1.msra.mxu0 %v1600
        %1633 = vmatprep.subr.mxu0 0.0
        %1634 = vmatpush1.msra.mxu0 %v1601
        %1635 = vmatprep.subr.mxu0 0.0
        %1636 = vmatpush1.msra.mxu0 %v1602
        %1637 = vmatprep.subr.mxu0 0.0
        %1638 = vmatpush1.msra.mxu0 %v1603
        %1639 = vmatprep.subr.mxu0 0.0
        %1640 = vmatpush1.msra.mxu0 %v1604
        %1641 = vmatprep.subr.mxu0 0.0
        %1642 = vmatpush1.msra.mxu0 %v1605
        %1643 = vmatprep.subr.mxu0 0.0
        %1644 = vmatpush1.msra.mxu0 0.0
        %1645 = vmatprep.subr.mxu0 0.0
        %1646 = vmatpush1.msra.mxu0 0.0
        %1647 = vmatprep.subr.mxu0 0.0
        %1648 = vmatpush1.msra.mxu0 0.0
        %1649 = vmatprep.subr.mxu0 0.0
        %1650 = vmatpush1.msra.mxu0 0.0
        %1651 = vmatprep.subr.mxu0 0.0
        %1652 = vmatpush1.msra.mxu0 0.0
        %1653 = vmatprep.subr.mxu0 0.0
        %1654 = vmatpush1.msra.mxu0 0.0
        %1655 = vmatprep.subr.mxu0 0.0
        %1656 = vmatpush1.msra.mxu0 0.0
        %1657 = vmatprep.subr.mxu0 0.0
        %1658 = vmatpush1.msra.mxu0 0.0
        %1659 = vmatprep.subr.mxu0 0.0
        %1660 = vmatpush1.msra.mxu0 0.0
        %1661 = vmatprep.subr.mxu0 0.0
        %1662 = vmatpush1.msra.mxu0 0.0
        %1663 = vmatprep.subr.mxu0 0.0
        %1664 = vmatpush1.msra.mxu0 0.0
        %1665 = vmatprep.subr.mxu0 0.0
        %1666 = vmatpush1.msra.mxu0 0.0
        %1667 = vmatprep.subr.mxu0 0.0
        %1668 = vmatpush1.msra.mxu0 0.0
        %1669 = vmatprep.subr.mxu0 0.0
        %1670 = vmatpush1.msra.mxu0 0.0
        %1671 = vmatprep.subr.mxu0 0.0
        %1672 = vmatpush1.msra.mxu0 0.0
        %1673 = vmatprep.subr.mxu0 0.0
        %1674 = vmatpush1.msra.mxu0 0.0
        %1675 = vmatprep.subr.mxu0 0.0
        %1676 = vmatpush1.msra.mxu0 0.0
        %1677 = vmatprep.subr.mxu0 0.0
        %1678 = vmatpush1.msra.mxu0 0.0
        %1679 = vmatprep.subr.mxu0 0.0
        %1680 = vmatpush1.msra.mxu0 0.0
        %1681 = vmatprep.subr.mxu0 0.0
        %1682 = vmatpush1.msra.mxu0 0.0
        %1683 = vmatprep.subr.mxu0 0.0
        %1684 = vmatpush1.msra.mxu0 0.0
        %1685 = vmatprep.subr.mxu0 0.0
        %1686 = vmatpush1.msra.mxu0 0.0
        %1687 = vmatprep.subr.mxu0 0.0
        %1688 = vmatpush1.msra.mxu0 0.0
        %1689 = vmatprep.subr.mxu0 0.0
        %1690 = vmatpush1.msra.mxu0 0.0
        %1691 = vmatprep.mubr.f32.mxu0 0.0
        %1692 = vmatmul.mubr.f32.gmra.mrb[0].mxu0 %v539
        %v1693 = vpop.f32.mrb[0].mxu0
        %v1694 = vadd.f32 0.0, %v1693
        %v1695 = vpop.f32.mrb[0].mxu0
        %1696 = vmatprep.mubr.f32.mxu0 0.0
        %1697 = vmatmul.mubr.f32.gmra.mrb[0].mxu0 %v542
        %v1698 = vpop.f32.mrb[0].mxu0
        %v1699 = vadd.f32 0.0, %v1698
        %v1700 = vpop.f32.mrb[0].mxu0
        %1701 = vdwg.mxu0
        %v1702 = vmul.f32 %v1694, 0.25
        %v1703 = vmul.f32 %v1699, 0.25
        %1704 = vmatprep.subr.mxu0 0.0
        %1705 = vmatpush1.msra.mxu0 %v1607
        %1706 = vmatprep.subr.mxu0 0.0
        %1707 = vmatpush1.msra.mxu0 %v1608
        %1708 = vmatprep.subr.mxu0 0.0
        %1709 = vmatpush1.msra.mxu0 %v1609
        %1710 = vmatprep.subr.mxu0 0.0
        %1711 = vmatpush1.msra.mxu0 %v1610
        %1712 = vmatprep.subr.mxu0 0.0
        %1713 = vmatpush1.msra.mxu0 %v1611
        %1714 = vmatprep.subr.mxu0 0.0
        %1715 = vmatpush1.msra.mxu0 %v1612
        %1716 = vmatprep.subr.mxu0 0.0
        %1717 = vmatpush1.msra.mxu0 %v1613
        %1718 = vmatprep.subr.mxu0 0.0
        %1719 = vmatpush1.msra.mxu0 %v1614
        %1720 = vmatprep.subr.mxu0 0.0
        %1721 = vmatpush1.msra.mxu0 0.0
        %1722 = vmatprep.subr.mxu0 0.0
        %1723 = vmatpush1.msra.mxu0 0.0
        %1724 = vmatprep.subr.mxu0 0.0
        %1725 = vmatpush1.msra.mxu0 0.0
        %1726 = vmatprep.subr.mxu0 0.0
        %1727 = vmatpush1.msra.mxu0 0.0
        %1728 = vmatprep.subr.mxu0 0.0
        %1729 = vmatpush1.msra.mxu0 0.0
        %1730 = vmatprep.subr.mxu0 0.0
        %1731 = vmatpush1.msra.mxu0 0.0
        %1732 = vmatprep.subr.mxu0 0.0
        %1733 = vmatpush1.msra.mxu0 0.0
        %1734 = vmatprep.subr.mxu0 0.0
        %1735 = vmatpush1.msra.mxu0 0.0
        %1736 = vmatprep.subr.mxu0 0.0
        %1737 = vmatpush1.msra.mxu0 0.0
        %1738 = vmatprep.subr.mxu0 0.0
        %1739 = vmatpush1.msra.mxu0 0.0
        %1740 = vmatprep.subr.mxu0 0.0
        %1741 = vmatpush1.msra.mxu0 0.0
        %1742 = vmatprep.subr.mxu0 0.0
        %1743 = vmatpush1.msra.mxu0 0.0
        %1744 = vmatprep.subr.mxu0 0.0
        %1745 = vmatpush1.msra.mxu0 0.0
        %1746 = vmatprep.subr.mxu0 0.0
        %1747 = vmatpush1.msra.mxu0 0.0
        %1748 = vmatprep.subr.mxu0 0.0
        %1749 = vmatpush1.msra.mxu0 0.0
        %1750 = vmatprep.subr.mxu0 0.0
        %1751 = vmatpush1.msra.mxu0 0.0
        %1752 = vmatprep.subr.mxu0 0.0
        %1753 = vmatpush1.msra.mxu0 0.0
        %1754 = vmatprep.subr.mxu0 0.0
        %1755 = vmatpush1.msra.mxu0 0.0
        %1756 = vmatprep.subr.mxu0 0.0
        %1757 = vmatpush1.msra.mxu0 0.0
        %1758 = vmatprep.subr.mxu0 0.0
        %1759 = vmatpush1.msra.mxu0 0.0
        %1760 = vmatprep.subr.mxu0 0.0
        %1761 = vmatpush1.msra.mxu0 0.0
        %1762 = vmatprep.subr.mxu0 0.0
        %1763 = vmatpush1.msra.mxu0 0.0
        %1764 = vmatprep.subr.mxu0 0.0
        %1765 = vmatpush1.msra.mxu0 0.0
        %1766 = vmatprep.subr.mxu0 0.0
        %1767 = vmatpush1.msra.mxu0 0.0
        %1768 = vmatprep.mubr.f32.mxu0 0.0
        %1769 = vmatmul.mubr.f32.gmra.mrb[0].mxu0 %v622
        %v1770 = vpop.f32.mrb[0].mxu0
        %v1771 = vadd.f32 0.0, %v1770
        %v1772 = vpop.f32.mrb[0].mxu0
        %1773 = vmatprep.mubr.f32.mxu0 0.0
        %1774 = vmatmul.mubr.f32.gmra.mrb[0].mxu0 %v625
        %v1775 = vpop.f32.mrb[0].mxu0
        %v1776 = vadd.f32 0.0, %v1775
        %v1777 = vpop.f32.mrb[0].mxu0
        %1778 = vmatprep.mubr.f32.mxu0 0.0
        %1779 = vmatmul.mubr.f32.gmra.mrb[0].mxu0 %v628
        %v1780 = vpop.f32.mrb[0].mxu0
        %v1781 = vadd.f32 0.0, %v1780
        %v1782 = vpop.f32.mrb[0].mxu0
        %1783 = vmatprep.mubr.f32.mxu0 0.0
        %1784 = vmatmul.mubr.f32.gmra.mrb[0].mxu0 %v631
        %v1785 = vpop.f32.mrb[0].mxu0
        %v1786 = vadd.f32 0.0, %v1785
        %v1787 = vpop.f32.mrb[0].mxu0
        %1788 = vdwg.mxu0
        %1789 = vmatprep.subr.mxu0 0.0
        %1790 = vmatpush1.msra.mxu0 %v1607
        %1791 = vmatprep.subr.mxu0 0.0
        %1792 = vmatpush1.msra.mxu0 %v1608
        %1793 = vmatprep.subr.mxu0 0.0
        %1794 = vmatpush1.msra.mxu0 %v1609
        %1795 = vmatprep.subr.mxu0 0.0
        %1796 = vmatpush1.msra.mxu0 %v1610
        %1797 = vmatprep.subr.mxu0 0.0
        %1798 = vmatpush1.msra.mxu0 %v1611
        %1799 = vmatprep.subr.mxu0 0.0
        %1800 = vmatpush1.msra.mxu0 %v1612
        %1801 = vmatprep.subr.mxu0 0.0
        %1802 = vmatpush1.msra.mxu0 %v1613
        %1803 = vmatprep.subr.mxu0 0.0
        %1804 = vmatpush1.msra.mxu0 %v1614
        %1805 = vmatprep.subr.mxu0 0.0
        %1806 = vmatpush1.msra.mxu0 0.0
        %1807 = vmatprep.subr.mxu0 0.0
        %1808 = vmatpush1.msra.mxu0 0.0
        %1809 = vmatprep.subr.mxu0 0.0
        %1810 = vmatpush1.msra.mxu0 0.0
        %1811 = vmatprep.subr.mxu0 0.0
        %1812 = vmatpush1.msra.mxu0 0.0
        %1813 = vmatprep.subr.mxu0 0.0
        %1814 = vmatpush1.msra.mxu0 0.0
        %1815 = vmatprep.subr.mxu0 0.0
        %1816 = vmatpush1.msra.mxu0 0.0
        %1817 = vmatprep.subr.mxu0 0.0
        %1818 = vmatpush1.msra.mxu0 0.0
        %1819 = vmatprep.subr.mxu0 0.0
        %1820 = vmatpush1.msra.mxu0 0.0
        %1821 = vmatprep.subr.mxu0 0.0
        %1822 = vmatpush1.msra.mxu0 0.0
        %1823 = vmatprep.subr.mxu0 0.0
        %1824 = vmatpush1.msra.mxu0 0.0
        %1825 = vmatprep.subr.mxu0 0.0
        %1826 = vmatpush1.msra.mxu0 0.0
        %1827 = vmatprep.subr.mxu0 0.0
        %1828 = vmatpush1.msra.mxu0 0.0
        %1829 = vmatprep.subr.mxu0 0.0
        %1830 = vmatpush1.msra.mxu0 0.0
        %1831 = vmatprep.subr.mxu0 0.0
        %1832 = vmatpush1.msra.mxu0 0.0
        %1833 = vmatprep.subr.mxu0 0.0
        %1834 = vmatpush1.msra.mxu0 0.0
        %1835 = vmatprep.subr.mxu0 0.0
        %1836 = vmatpush1.msra.mxu0 0.0
        %1837 = vmatprep.subr.mxu0 0.0
        %1838 = vmatpush1.msra.mxu0 0.0
        %1839 = vmatprep.subr.mxu0 0.0
        %1840 = vmatpush1.msra.mxu0 0.0
        %1841 = vmatprep.subr.mxu0 0.0
        %1842 = vmatpush1.msra.mxu0 0.0
        %1843 = vmatprep.subr.mxu0 0.0
        %1844 = vmatpush1.msra.mxu0 0.0
        %1845 = vmatprep.subr.mxu0 0.0
        %1846 = vmatpush1.msra.mxu0 0.0
        %1847 = vmatprep.subr.mxu0 0.0
        %1848 = vmatpush1.msra.mxu0 0.0
        %1849 = vmatprep.subr.mxu0 0.0
        %1850 = vmatpush1.msra.mxu0 0.0
        %1851 = vmatprep.subr.mxu0 0.0
        %1852 = vmatpush1.msra.mxu0 0.0
        %1853 = vmatprep.mubr.f32.mxu0 0.0
        %1854 = vmatmul.mubr.f32.gmra.mrb[0].mxu0 %v539
        %v1855 = vpop.f32.mrb[0].mxu0
        %v1856 = vadd.f32 0.0, %v1855
        %v1857 = vpop.f32.mrb[0].mxu0
        %1858 = vmatprep.mubr.f32.mxu0 0.0
        %1859 = vmatmul.mubr.f32.gmra.mrb[0].mxu0 %v542
        %v1860 = vpop.f32.mrb[0].mxu0
        %v1861 = vadd.f32 0.0, %v1860
        %v1862 = vpop.f32.mrb[0].mxu0
        %1863 = vdwg.mxu0
        %1864 = vmatprep.subr.mxu0 0.0
        %1865 = vmatpush1.msra.mxu0 %v1616
        %1866 = vmatprep.subr.mxu0 0.0
        %1867 = vmatpush1.msra.mxu0 %v1617
        %1868 = vmatprep.subr.mxu0 0.0
        %1869 = vmatpush1.msra.mxu0 %v1618
        %1870 = vmatprep.subr.mxu0 0.0
        %1871 = vmatpush1.msra.mxu0 %v1619
        %1872 = vmatprep.subr.mxu0 0.0
        %1873 = vmatpush1.msra.mxu0 %v1620
        %1874 = vmatprep.subr.mxu0 0.0
        %1875 = vmatpush1.msra.mxu0 %v1621
        %1876 = vmatprep.subr.mxu0 0.0
        %1877 = vmatpush1.msra.mxu0 %v1622
        %1878 = vmatprep.subr.mxu0 0.0
        %1879 = vmatpush1.msra.mxu0 %v1623
        %1880 = vmatprep.subr.mxu0 0.0
        %1881 = vmatpush1.msra.mxu0 0.0
        %1882 = vmatprep.subr.mxu0 0.0
        %1883 = vmatpush1.msra.mxu0 0.0
        %1884 = vmatprep.subr.mxu0 0.0
        %1885 = vmatpush1.msra.mxu0 0.0
        %1886 = vmatprep.subr.mxu0 0.0
        %1887 = vmatpush1.msra.mxu0 0.0
        %1888 = vmatprep.subr.mxu0 0.0
        %1889 = vmatpush1.msra.mxu0 0.0
        %1890 = vmatprep.subr.mxu0 0.0
        %1891 = vmatpush1.msra.mxu0 0.0
        %1892 = vmatprep.subr.mxu0 0.0
        %1893 = vmatpush1.msra.mxu0 0.0
        %1894 = vmatprep.subr.mxu0 0.0
        %1895 = vmatpush1.msra.mxu0 0.0
        %1896 = vmatprep.subr.mxu0 0.0
        %1897 = vmatpush1.msra.mxu0 0.0
        %1898 = vmatprep.subr.mxu0 0.0
        %1899 = vmatpush1.msra.mxu0 0.0
        %1900 = vmatprep.subr.mxu0 0.0
        %1901 = vmatpush1.msra.mxu0 0.0
        %1902 = vmatprep.subr.mxu0 0.0
        %1903 = vmatpush1.msra.mxu0 0.0
        %1904 = vmatprep.subr.mxu0 0.0
        %1905 = vmatpush1.msra.mxu0 0.0
        %1906 = vmatprep.subr.mxu0 0.0
        %1907 = vmatpush1.msra.mxu0 0.0
        %1908 = vmatprep.subr.mxu0 0.0
        %1909 = vmatpush1.msra.mxu0 0.0
        %1910 = vmatprep.subr.mxu0 0.0
        %1911 = vmatpush1.msra.mxu0 0.0
        %1912 = vmatprep.subr.mxu0 0.0
        %1913 = vmatpush1.msra.mxu0 0.0
        %1914 = vmatprep.subr.mxu0 0.0
        %1915 = vmatpush1.msra.mxu0 0.0
        %1916 = vmatprep.subr.mxu0 0.0
        %1917 = vmatpush1.msra.mxu0 0.0
        %1918 = vmatprep.subr.mxu0 0.0
        %1919 = vmatpush1.msra.mxu0 0.0
        %1920 = vmatprep.subr.mxu0 0.0
        %1921 = vmatpush1.msra.mxu0 0.0
        %1922 = vmatprep.subr.mxu0 0.0
        %1923 = vmatpush1.msra.mxu0 0.0
        %1924 = vmatprep.subr.mxu0 0.0
        %1925 = vmatpush1.msra.mxu0 0.0
        %1926 = vmatprep.subr.mxu0 0.0
        %1927 = vmatpush1.msra.mxu0 0.0
        %1928 = vmatprep.mubr.f32.mxu0 0.0
        %1929 = vmatmul.mubr.f32.gmra.mrb[0].mxu0 %v622
        %v1930 = vpop.f32.mrb[0].mxu0
        %v1931 = vadd.f32 0.0, %v1930
        %v1932 = vpop.f32.mrb[0].mxu0
        %1933 = vmatprep.mubr.f32.mxu0 0.0
        %1934 = vmatmul.mubr.f32.gmra.mrb[0].mxu0 %v625
        %v1935 = vpop.f32.mrb[0].mxu0
        %v1936 = vadd.f32 0.0, %v1935
        %v1937 = vpop.f32.mrb[0].mxu0
        %1938 = vmatprep.mubr.f32.mxu0 0.0
        %1939 = vmatmul.mubr.f32.gmra.mrb[0].mxu0 %v628
        %v1940 = vpop.f32.mrb[0].mxu0
        %v1941 = vadd.f32 0.0, %v1940
        %v1942 = vpop.f32.mrb[0].mxu0
        %1943 = vmatprep.mubr.f32.mxu0 0.0
        %1944 = vmatmul.mubr.f32.gmra.mrb[0].mxu0 %v631
        %v1945 = vpop.f32.mrb[0].mxu0
        %v1946 = vadd.f32 0.0, %v1945
        %v1947 = vpop.f32.mrb[0].mxu0
        %1948 = vdwg.mxu0
        %1949 = vmatprep.subr.mxu0 0.0
        %1950 = vmatpush1.msra.mxu0 %v1616
        %1951 = vmatprep.subr.mxu0 0.0
        %1952 = vmatpush1.msra.mxu0 %v1617
        %1953 = vmatprep.subr.mxu0 0.0
        %1954 = vmatpush1.msra.mxu0 %v1618
        %1955 = vmatprep.subr.mxu0 0.0
        %1956 = vmatpush1.msra.mxu0 %v1619
        %1957 = vmatprep.subr.mxu0 0.0
        %1958 = vmatpush1.msra.mxu0 %v1620
        %1959 = vmatprep.subr.mxu0 0.0
        %1960 = vmatpush1.msra.mxu0 %v1621
        %1961 = vmatprep.subr.mxu0 0.0
        %1962 = vmatpush1.msra.mxu0 %v1622
        %1963 = vmatprep.subr.mxu0 0.0
        %1964 = vmatpush1.msra.mxu0 %v1623
        %1965 = vmatprep.subr.mxu0 0.0
        %1966 = vmatpush1.msra.mxu0 0.0
        %1967 = vmatprep.subr.mxu0 0.0
        %1968 = vmatpush1.msra.mxu0 0.0
        %1969 = vmatprep.subr.mxu0 0.0
        %1970 = vmatpush1.msra.mxu0 0.0
        %1971 = vmatprep.subr.mxu0 0.0
        %1972 = vmatpush1.msra.mxu0 0.0
        %1973 = vmatprep.subr.mxu0 0.0
        %1974 = vmatpush1.msra.mxu0 0.0
        %1975 = vmatprep.subr.mxu0 0.0
        %1976 = vmatpush1.msra.mxu0 0.0
        %1977 = vmatprep.subr.mxu0 0.0
        %1978 = vmatpush1.msra.mxu0 0.0
        %1979 = vmatprep.subr.mxu0 0.0
        %1980 = vmatpush1.msra.mxu0 0.0
        %1981 = vmatprep.subr.mxu0 0.0
        %1982 = vmatpush1.msra.mxu0 0.0
        %1983 = vmatprep.subr.mxu0 0.0
        %1984 = vmatpush1.msra.mxu0 0.0
        %1985 = vmatprep.subr.mxu0 0.0
        %1986 = vmatpush1.msra.mxu0 0.0
        %1987 = vmatprep.subr.mxu0 0.0
        %1988 = vmatpush1.msra.mxu0 0.0
        %1989 = vmatprep.subr.mxu0 0.0
        %1990 = vmatpush1.msra.mxu0 0.0
        %1991 = vmatprep.subr.mxu0 0.0
        %1992 = vmatpush1.msra.mxu0 0.0
        %1993 = vmatprep.subr.mxu0 0.0
        %1994 = vmatpush1.msra.mxu0 0.0
        %1995 = vmatprep.subr.mxu0 0.0
        %1996 = vmatpush1.msra.mxu0 0.0
        %1997 = vmatprep.subr.mxu0 0.0
        %1998 = vmatpush1.msra.mxu0 0.0
        %1999 = vmatprep.subr.mxu0 0.0
        %2000 = vmatpush1.msra.mxu0 0.0
        %2001 = vmatprep.subr.mxu0 0.0
        %2002 = vmatpush1.msra.mxu0 0.0
        %2003 = vmatprep.subr.mxu0 0.0
        %2004 = vmatpush1.msra.mxu0 0.0
        %2005 = vmatprep.subr.mxu0 0.0
        %2006 = vmatpush1.msra.mxu0 0.0
        %2007 = vmatprep.subr.mxu0 0.0
        %2008 = vmatpush1.msra.mxu0 0.0
        %2009 = vmatprep.subr.mxu0 0.0
        %2010 = vmatpush1.msra.mxu0 0.0
        %2011 = vmatprep.subr.mxu0 0.0
        %2012 = vmatpush1.msra.mxu0 0.0
        %2013 = vmatprep.mubr.f32.mxu0 0.0
        %2014 = vmatmul.mubr.f32.gmra.mrb[0].mxu0 %v539
        %v2015 = vpop.f32.mrb[0].mxu0
        %v2016 = vadd.f32 0.0, %v2015
        %v2017 = vpop.f32.mrb[0].mxu0
        %2018 = vmatprep.mubr.f32.mxu0 0.0
        %2019 = vmatmul.mubr.f32.gmra.mrb[0].mxu0 %v542
        %v2020 = vpop.f32.mrb[0].mxu0
        %v2021 = vadd.f32 0.0, %v2020
        %v2022 = vpop.f32.mrb[0].mxu0
        %2023 = vdwg.mxu0
        %v2025 = vsel %vm953, %v1702, 0
        %v2028 = vsel %vm953, %v1771, 0
        %v2031 = vsel %vm953, %v1776, 0
        %2033 = vmatprep.subr.mxu0 0.0
        %2034 = vmatpush1.xpose.msra.mxu0 %v2028
        %2035 = vmatprep.subr.mxu0 0.0
        %2036 = vmatpush1.xpose.msra.mxu0 %v2031
        %2037 = vmatprep.subr.mxu0 0.0
        %2038 = vmatpush1.xpose.msra.mxu0 0.0
        %2039 = vmatprep.subr.mxu0 0.0
        %2040 = vmatpush1.xpose.msra.mxu0 0.0
        %2041 = vmatprep.subr.mxu0 0.0
        %2042 = vmatpush1.xpose.msra.mxu0 0.0
        %2043 = vmatprep.subr.mxu0 0.0
        %2044 = vmatpush1.xpose.msra.mxu0 0.0
        %2045 = vmatprep.subr.mxu0 0.0
        %2046 = vmatpush1.xpose.msra.mxu0 0.0
        %2047 = vmatprep.subr.mxu0 0.0
        %2048 = vmatpush1.xpose.msra.mxu0 0.0
        %2049 = vmatprep.subr.mxu0 0.0
        %2050 = vmatpush1.xpose.msra.mxu0 0.0
        %2051 = vmatprep.subr.mxu0 0.0
        %2052 = vmatpush1.xpose.msra.mxu0 0.0
        %2053 = vmatprep.subr.mxu0 0.0
        %2054 = vmatpush1.xpose.msra.mxu0 0.0
        %2055 = vmatprep.subr.mxu0 0.0
        %2056 = vmatpush1.xpose.msra.mxu0 0.0
        %2057 = vmatprep.subr.mxu0 0.0
        %2058 = vmatpush1.xpose.msra.mxu0 0.0
        %2059 = vmatprep.subr.mxu0 0.0
        %2060 = vmatpush1.xpose.msra.mxu0 0.0
        %2061 = vmatprep.subr.mxu0 0.0
        %2062 = vmatpush1.xpose.msra.mxu0 0.0
        %2063 = vmatprep.subr.mxu0 0.0
        %2064 = vmatpush1.xpose.msra.mxu0 0.0
        %2065 = vmatprep.subr.mxu0 0.0
        %2066 = vmatpush1.xpose.msra.mxu0 0.0
        %2067 = vmatprep.subr.mxu0 0.0
        %2068 = vmatpush1.xpose.msra.mxu0 0.0
        %2069 = vmatprep.subr.mxu0 0.0
        %2070 = vmatpush1.xpose.msra.mxu0 0.0
        %2071 = vmatprep.subr.mxu0 0.0
        %2072 = vmatpush1.xpose.msra.mxu0 0.0
        %2073 = vmatprep.subr.mxu0 0.0
        %2074 = vmatpush1.xpose.msra.mxu0 0.0
        %2075 = vmatprep.subr.mxu0 0.0
        %2076 = vmatpush1.xpose.msra.mxu0 0.0
        %2077 = vmatprep.subr.mxu0 0.0
        %2078 = vmatpush1.xpose.msra.mxu0 0.0
        %2079 = vmatprep.subr.mxu0 0.0
        %2080 = vmatpush1.xpose.msra.mxu0 0.0
        %2081 = vmatprep.subr.mxu0 0.0
        %2082 = vmatpush1.xpose.msra.mxu0 0.0
        %2083 = vmatprep.subr.mxu0 0.0
        %2084 = vmatpush1.xpose.msra.mxu0 0.0
        %2085 = vmatprep.subr.mxu0 0.0
        %2086 = vmatpush1.xpose.msra.mxu0 0.0
        %2087 = vmatprep.subr.mxu0 0.0
        %2088 = vmatpush1.xpose.msra.mxu0 0.0
        %2089 = vmatprep.subr.mxu0 0.0
        %2090 = vmatpush1.xpose.msra.mxu0 0.0
        %2091 = vmatprep.subr.mxu0 0.0
        %2092 = vmatpush1.xpose.msra.mxu0 0.0
        %2093 = vmatprep.subr.mxu0 0.0
        %2094 = vmatpush1.xpose.msra.mxu0 0.0
        %2095 = vmatprep.subr.mxu0 0.0
        %2096 = vmatpush1.xpose.msra.mxu0 0.0
        %2097 = vmatprep.mubr.f32.mxu0 0.0
        %2098 = vmatmul.mubr.f32.gmra.mrb[0].mxu0 %v2025
        %v2099 = vpop.f32.mrb[0].mxu0
        %v2100 = vadd.f32 0.0, %v2099
        %v2101 = vpop.f32.mrb[0].mxu0
        %2102 = vdwg.mxu0
        %v2104 = vsel %vm953, %v1703, 0
        %v2107 = vsel %vm953, %v1781, 0
        %v2110 = vsel %vm953, %v1786, 0
        %2112 = vmatprep.subr.mxu0 0.0
        %2113 = vmatpush1.xpose.msra.mxu0 %v2107
        %2114 = vmatprep.subr.mxu0 0.0
        %2115 = vmatpush1.xpose.msra.mxu0 %v2110
        %2116 = vmatprep.subr.mxu0 0.0
        %2117 = vmatpush1.xpose.msra.mxu0 0.0
        %2118 = vmatprep.subr.mxu0 0.0
        %2119 = vmatpush1.xpose.msra.mxu0 0.0
        %2120 = vmatprep.subr.mxu0 0.0
        %2121 = vmatpush1.xpose.msra.mxu0 0.0
        %2122 = vmatprep.subr.mxu0 0.0
        %2123 = vmatpush1.xpose.msra.mxu0 0.0
        %2124 = vmatprep.subr.mxu0 0.0
        %2125 = vmatpush1.xpose.msra.mxu0 0.0
        %2126 = vmatprep.subr.mxu0 0.0
        %2127 = vmatpush1.xpose.msra.mxu0 0.0
        %2128 = vmatprep.subr.mxu0 0.0
        %2129 = vmatpush1.xpose.msra.mxu0 0.0
        %2130 = vmatprep.subr.mxu0 0.0
        %2131 = vmatpush1.xpose.msra.mxu0 0.0
        %2132 = vmatprep.subr.mxu0 0.0
        %2133 = vmatpush1.xpose.msra.mxu0 0.0
        %2134 = vmatprep.subr.mxu0 0.0
        %2135 = vmatpush1.xpose.msra.mxu0 0.0
        %2136 = vmatprep.subr.mxu0 0.0
        %2137 = vmatpush1.xpose.msra.mxu0 0.0
        %2138 = vmatprep.subr.mxu0 0.0
        %2139 = vmatpush1.xpose.msra.mxu0 0.0
        %2140 = vmatprep.subr.mxu0 0.0
        %2141 = vmatpush1.xpose.msra.mxu0 0.0
        %2142 = vmatprep.subr.mxu0 0.0
        %2143 = vmatpush1.xpose.msra.mxu0 0.0
        %2144 = vmatprep.subr.mxu0 0.0
        %2145 = vmatpush1.xpose.msra.mxu0 0.0
        %2146 = vmatprep.subr.mxu0 0.0
        %2147 = vmatpush1.xpose.msra.mxu0 0.0
        %2148 = vmatprep.subr.mxu0 0.0
        %2149 = vmatpush1.xpose.msra.mxu0 0.0
        %2150 = vmatprep.subr.mxu0 0.0
        %2151 = vmatpush1.xpose.msra.mxu0 0.0
        %2152 = vmatprep.subr.mxu0 0.0
        %2153 = vmatpush1.xpose.msra.mxu0 0.0
        %2154 = vmatprep.subr.mxu0 0.0
        %2155 = vmatpush1.xpose.msra.mxu0 0.0
        %2156 = vmatprep.subr.mxu0 0.0
        %2157 = vmatpush1.xpose.msra.mxu0 0.0
        %2158 = vmatprep.subr.mxu0 0.0
        %2159 = vmatpush1.xpose.msra.mxu0 0.0
        %2160 = vmatprep.subr.mxu0 0.0
        %2161 = vmatpush1.xpose.msra.mxu0 0.0
        %2162 = vmatprep.subr.mxu0 0.0
        %2163 = vmatpush1.xpose.msra.mxu0 0.0
        %2164 = vmatprep.subr.mxu0 0.0
        %2165 = vmatpush1.xpose.msra.mxu0 0.0
        %2166 = vmatprep.subr.mxu0 0.0
        %2167 = vmatpush1.xpose.msra.mxu0 0.0
        %2168 = vmatprep.subr.mxu0 0.0
        %2169 = vmatpush1.xpose.msra.mxu0 0.0
        %2170 = vmatprep.subr.mxu0 0.0
        %2171 = vmatpush1.xpose.msra.mxu0 0.0
        %2172 = vmatprep.subr.mxu0 0.0
        %2173 = vmatpush1.xpose.msra.mxu0 0.0
        %2174 = vmatprep.subr.mxu0 0.0
        %2175 = vmatpush1.xpose.msra.mxu0 0.0
        %2176 = vmatprep.mubr.f32.mxu0 0.0
        %2177 = vmatmul.mubr.f32.gmra.mrb[0].mxu0 %v2104
        %v2178 = vpop.f32.mrb[0].mxu0
        %v2179 = vadd.f32 0.0, %v2178
        %v2180 = vpop.f32.mrb[0].mxu0
        %2181 = vdwg.mxu0
        %v2183 = vsel %vm953, %v1856, 0
        %2185 = vmatprep.subr.mxu0 0.0
        %2186 = vmatpush1.xpose.msra.mxu0 %v2183
        %2187 = vmatprep.subr.mxu0 0.0
        %2188 = vmatpush1.xpose.msra.mxu0 0.0
        %2189 = vmatprep.subr.mxu0 0.0
        %2190 = vmatpush1.xpose.msra.mxu0 0.0
        %2191 = vmatprep.subr.mxu0 0.0
        %2192 = vmatpush1.xpose.msra.mxu0 0.0
        %2193 = vmatprep.subr.mxu0 0.0
        %2194 = vmatpush1.xpose.msra.mxu0 0.0
        %2195 = vmatprep.subr.mxu0 0.0
        %2196 = vmatpush1.xpose.msra.mxu0 0.0
        %2197 = vmatprep.subr.mxu0 0.0
        %2198 = vmatpush1.xpose.msra.mxu0 0.0
        %2199 = vmatprep.subr.mxu0 0.0
        %2200 = vmatpush1.xpose.msra.mxu0 0.0
        %2201 = vmatprep.subr.mxu0 0.0
        %2202 = vmatpush1.xpose.msra.mxu0 0.0
        %2203 = vmatprep.subr.mxu0 0.0
        %2204 = vmatpush1.xpose.msra.mxu0 0.0
        %2205 = vmatprep.subr.mxu0 0.0
        %2206 = vmatpush1.xpose.msra.mxu0 0.0
        %2207 = vmatprep.subr.mxu0 0.0
        %2208 = vmatpush1.xpose.msra.mxu0 0.0
        %2209 = vmatprep.subr.mxu0 0.0
        %2210 = vmatpush1.xpose.msra.mxu0 0.0
        %2211 = vmatprep.subr.mxu0 0.0
        %2212 = vmatpush1.xpose.msra.mxu0 0.0
        %2213 = vmatprep.subr.mxu0 0.0
        %2214 = vmatpush1.xpose.msra.mxu0 0.0
        %2215 = vmatprep.subr.mxu0 0.0
        %2216 = vmatpush1.xpose.msra.mxu0 0.0
        %2217 = vmatprep.subr.mxu0 0.0
        %2218 = vmatpush1.xpose.msra.mxu0 0.0
        %2219 = vmatprep.subr.mxu0 0.0
        %2220 = vmatpush1.xpose.msra.mxu0 0.0
        %2221 = vmatprep.subr.mxu0 0.0
        %2222 = vmatpush1.xpose.msra.mxu0 0.0
        %2223 = vmatprep.subr.mxu0 0.0
        %2224 = vmatpush1.xpose.msra.mxu0 0.0
        %2225 = vmatprep.subr.mxu0 0.0
        %2226 = vmatpush1.xpose.msra.mxu0 0.0
        %2227 = vmatprep.subr.mxu0 0.0
        %2228 = vmatpush1.xpose.msra.mxu0 0.0
        %2229 = vmatprep.subr.mxu0 0.0
        %2230 = vmatpush1.xpose.msra.mxu0 0.0
        %2231 = vmatprep.subr.mxu0 0.0
        %2232 = vmatpush1.xpose.msra.mxu0 0.0
        %2233 = vmatprep.subr.mxu0 0.0
        %2234 = vmatpush1.xpose.msra.mxu0 0.0
        %2235 = vmatprep.subr.mxu0 0.0
        %2236 = vmatpush1.xpose.msra.mxu0 0.0
        %2237 = vmatprep.subr.mxu0 0.0
        %2238 = vmatpush1.xpose.msra.mxu0 0.0
        %2239 = vmatprep.subr.mxu0 0.0
        %2240 = vmatpush1.xpose.msra.mxu0 0.0
        %2241 = vmatprep.subr.mxu0 0.0
        %2242 = vmatpush1.xpose.msra.mxu0 0.0
        %2243 = vmatprep.subr.mxu0 0.0
        %2244 = vmatpush1.xpose.msra.mxu0 0.0
        %2245 = vmatprep.subr.mxu0 0.0
        %2246 = vmatpush1.xpose.msra.mxu0 0.0
        %2247 = vmatprep.subr.mxu0 0.0
        %2248 = vmatpush1.xpose.msra.mxu0 0.0
        %2249 = vmatprep.mubr.f32.mxu0 0.0
        %2250 = vmatmul.mubr.f32.gmra.mrb[0].mxu0 %v2025
        %v2251 = vpop.f32.mrb[0].mxu0
        %v2252 = vadd.f32 0.0, %v2251
        %v2253 = vpop.f32.mrb[0].mxu0
        %2254 = vdwg.mxu0
        %v2256 = vsel %vm953, %v1861, 0
        %2258 = vmatprep.subr.mxu0 0.0
        %2259 = vmatpush1.xpose.msra.mxu0 %v2256
        %2260 = vmatprep.subr.mxu0 0.0
        %2261 = vmatpush1.xpose.msra.mxu0 0.0
        %2262 = vmatprep.subr.mxu0 0.0
        %2263 = vmatpush1.xpose.msra.mxu0 0.0
        %2264 = vmatprep.subr.mxu0 0.0
        %2265 = vmatpush1.xpose.msra.mxu0 0.0
        %2266 = vmatprep.subr.mxu0 0.0
        %2267 = vmatpush1.xpose.msra.mxu0 0.0
        %2268 = vmatprep.subr.mxu0 0.0
        %2269 = vmatpush1.xpose.msra.mxu0 0.0
        %2270 = vmatprep.subr.mxu0 0.0
        %2271 = vmatpush1.xpose.msra.mxu0 0.0
        %2272 = vmatprep.subr.mxu0 0.0
        %2273 = vmatpush1.xpose.msra.mxu0 0.0
        %2274 = vmatprep.subr.mxu0 0.0
        %2275 = vmatpush1.xpose.msra.mxu0 0.0
        %2276 = vmatprep.subr.mxu0 0.0
        %2277 = vmatpush1.xpose.msra.mxu0 0.0
        %2278 = vmatprep.subr.mxu0 0.0
        %2279 = vmatpush1.xpose.msra.mxu0 0.0
        %2280 = vmatprep.subr.mxu0 0.0
        %2281 = vmatpush1.xpose.msra.mxu0 0.0
        %2282 = vmatprep.subr.mxu0 0.0
        %2283 = vmatpush1.xpose.msra.mxu0 0.0
        %2284 = vmatprep.subr.mxu0 0.0
        %2285 = vmatpush1.xpose.msra.mxu0 0.0
        %2286 = vmatprep.subr.mxu0 0.0
        %2287 = vmatpush1.xpose.msra.mxu0 0.0
        %2288 = vmatprep.subr.mxu0 0.0
        %2289 = vmatpush1.xpose.msra.mxu0 0.0
        %2290 = vmatprep.subr.mxu0 0.0
        %2291 = vmatpush1.xpose.msra.mxu0 0.0
        %2292 = vmatprep.subr.mxu0 0.0
        %2293 = vmatpush1.xpose.msra.mxu0 0.0
        %2294 = vmatprep.subr.mxu0 0.0
        %2295 = vmatpush1.xpose.msra.mxu0 0.0
        %2296 = vmatprep.subr.mxu0 0.0
        %2297 = vmatpush1.xpose.msra.mxu0 0.0
        %2298 = vmatprep.subr.mxu0 0.0
        %2299 = vmatpush1.xpose.msra.mxu0 0.0
        %2300 = vmatprep.subr.mxu0 0.0
        %2301 = vmatpush1.xpose.msra.mxu0 0.0
        %2302 = vmatprep.subr.mxu0 0.0
        %2303 = vmatpush1.xpose.msra.mxu0 0.0
        %2304 = vmatprep.subr.mxu0 0.0
        %2305 = vmatpush1.xpose.msra.mxu0 0.0
        %2306 = vmatprep.subr.mxu0 0.0
        %2307 = vmatpush1.xpose.msra.mxu0 0.0
        %2308 = vmatprep.subr.mxu0 0.0
        %2309 = vmatpush1.xpose.msra.mxu0 0.0
        %2310 = vmatprep.subr.mxu0 0.0
        %2311 = vmatpush1.xpose.msra.mxu0 0.0
        %2312 = vmatprep.subr.mxu0 0.0
        %2313 = vmatpush1.xpose.msra.mxu0 0.0
        %2314 = vmatprep.subr.mxu0 0.0
        %2315 = vmatpush1.xpose.msra.mxu0 0.0
        %2316 = vmatprep.subr.mxu0 0.0
        %2317 = vmatpush1.xpose.msra.mxu0 0.0
        %2318 = vmatprep.subr.mxu0 0.0
        %2319 = vmatpush1.xpose.msra.mxu0 0.0
        %2320 = vmatprep.subr.mxu0 0.0
        %2321 = vmatpush1.xpose.msra.mxu0 0.0
        %2322 = vmatprep.mubr.f32.mxu0 0.0
        %2323 = vmatmul.mubr.f32.gmra.mrb[0].mxu0 %v2104
        %v2324 = vpop.f32.mrb[0].mxu0
        %v2325 = vadd.f32 0.0, %v2324
        %v2326 = vpop.f32.mrb[0].mxu0
        %2327 = vdwg.mxu0
        %v2328 = vsel %vm953, %v2100, -inf
        %2329 = vmax.xlane.f32.xlu0 %v2328
        %v2330 = vpop.xlane.xlu0 %2329
        %v2331 = vsel %vm953, %v2179, -inf
        %2332 = vmax.xlane.f32.xlu0 %v2331
        %v2333 = vpop.xlane.xlu0 %2332
        %v2334 = vsel %vm1264, %v2252, -inf
        %2335 = vmax.xlane.f32.xlu0 %v2334
        %v2336 = vpop.xlane.xlu0 %2335
        %v2337 = vsel %vm1264, %v2325, -inf
        %2338 = vmax.xlane.f32.xlu0 %v2337
        %v2339 = vpop.xlane.xlu0 %2338
        %v2340 = vmax.f32 %v2330, %v2336
        %v2341 = vmax.f32 %v2333, %v2339
        %v2342 = vsub.f32 %v2100, %v2340
        %v2343 = vsub.f32 %v2179, %v2341
        %v2344 = vmul.f32 %v2342, 1.442695
        %v2345 = vpow.pop %v2344
        %v2346 = vmul.f32 %v2343, 1.442695
        %v2347 = vpow.pop %v2346
        %v2348 = vsub.f32 %v2252, %v2340
        %v2349 = vsub.f32 %v2325, %v2341
        %v2350 = vmul.f32 %v2348, 1.442695
        %v2351 = vpow.pop %v2350
        %v2352 = vmul.f32 %v2349, 1.442695
        %v2353 = vpow.pop %v2352
        %v2354 = vsel %vm953, %v2345, 0.0
        %2355 = vadd.xlane.f32.xlu0 %v2354
        %v2356 = vpop.xlane.xlu0 %2355
        %v2357 = vsel %vm953, %v2347, 0.0
        %2358 = vadd.xlane.f32.xlu0 %v2357
        %v2359 = vpop.xlane.xlu0 %2358
        %v2360 = vsel %vm1264, %v2351, 0.0
        %2361 = vadd.xlane.f32.xlu0 %v2360
        %v2362 = vpop.xlane.xlu0 %2361
        %v2363 = vsel %vm1264, %v2353, 0.0
        %2364 = vadd.xlane.f32.xlu0 %v2363
        %v2365 = vpop.xlane.xlu0 %2364
        %v2366 = vadd.f32 %v2356, %v2362
        %v2367 = vadd.f32 %v2359, %v2365
        %v2368 = vrcp.pop %v2366
        %v2369 = vrcp.pop %v2367
        %v2370 = vmul.f32 %v2345, %v2368
        %v2371 = vmul.f32 %v2347, %v2369
        %v2372 = vmul.f32 %v2351, %v2368
        %v2373 = vmul.f32 %v2353, %v2369
        %v2375 = vsel %vm1264, %v2372, 0
        %2377 = vmatprep.subr.mxu0 0.0
        %2378 = vmatpush1.msra.mxu0 %v2016
        %2379 = vmatprep.subr.mxu0 0.0
        %2380 = vmatpush1.msra.mxu0 0.0
        %2381 = vmatprep.subr.mxu0 0.0
        %2382 = vmatpush1.msra.mxu0 0.0
        %2383 = vmatprep.subr.mxu0 0.0
        %2384 = vmatpush1.msra.mxu0 0.0
        %2385 = vmatprep.subr.mxu0 0.0
        %2386 = vmatpush1.msra.mxu0 0.0
        %2387 = vmatprep.subr.mxu0 0.0
        %2388 = vmatpush1.msra.mxu0 0.0
        %2389 = vmatprep.subr.mxu0 0.0
        %2390 = vmatpush1.msra.mxu0 0.0
        %2391 = vmatprep.subr.mxu0 0.0
        %2392 = vmatpush1.msra.mxu0 0.0
        %2393 = vmatprep.subr.mxu0 0.0
        %2394 = vmatpush1.msra.mxu0 0.0
        %2395 = vmatprep.subr.mxu0 0.0
        %2396 = vmatpush1.msra.mxu0 0.0
        %2397 = vmatprep.subr.mxu0 0.0
        %2398 = vmatpush1.msra.mxu0 0.0
        %2399 = vmatprep.subr.mxu0 0.0
        %2400 = vmatpush1.msra.mxu0 0.0
        %2401 = vmatprep.subr.mxu0 0.0
        %2402 = vmatpush1.msra.mxu0 0.0
        %2403 = vmatprep.subr.mxu0 0.0
        %2404 = vmatpush1.msra.mxu0 0.0
        %2405 = vmatprep.subr.mxu0 0.0
        %2406 = vmatpush1.msra.mxu0 0.0
        %2407 = vmatprep.subr.mxu0 0.0
        %2408 = vmatpush1.msra.mxu0 0.0
        %2409 = vmatprep.subr.mxu0 0.0
        %2410 = vmatpush1.msra.mxu0 0.0
        %2411 = vmatprep.subr.mxu0 0.0
        %2412 = vmatpush1.msra.mxu0 0.0
        %2413 = vmatprep.subr.mxu0 0.0
        %2414 = vmatpush1.msra.mxu0 0.0
        %2415 = vmatprep.subr.mxu0 0.0
        %2416 = vmatpush1.msra.mxu0 0.0
        %2417 = vmatprep.subr.mxu0 0.0
        %2418 = vmatpush1.msra.mxu0 0.0
        %2419 = vmatprep.subr.mxu0 0.0
        %2420 = vmatpush1.msra.mxu0 0.0
        %2421 = vmatprep.subr.mxu0 0.0
        %2422 = vmatpush1.msra.mxu0 0.0
        %2423 = vmatprep.subr.mxu0 0.0
        %2424 = vmatpush1.msra.mxu0 0.0
        %2425 = vmatprep.subr.mxu0 0.0
        %2426 = vmatpush1.msra.mxu0 0.0
        %2427 = vmatprep.subr.mxu0 0.0
        %2428 = vmatpush1.msra.mxu0 0.0
        %2429 = vmatprep.subr.mxu0 0.0
        %2430 = vmatpush1.msra.mxu0 0.0
        %2431 = vmatprep.subr.mxu0 0.0
        %2432 = vmatpush1.msra.mxu0 0.0
        %2433 = vmatprep.subr.mxu0 0.0
        %2434 = vmatpush1.msra.mxu0 0.0
        %2435 = vmatprep.subr.mxu0 0.0
        %2436 = vmatpush1.msra.mxu0 0.0
        %2437 = vmatprep.subr.mxu0 0.0
        %2438 = vmatpush1.msra.mxu0 0.0
        %2439 = vmatprep.subr.mxu0 0.0
        %2440 = vmatpush1.msra.mxu0 0.0
        %2441 = vmatprep.mubr.f32.mxu0 0.0
        %2442 = vmatmul.mubr.f32.gmra.mrb[0].mxu0 %v2375
        %v2443 = vpop.f32.mrb[0].mxu0
        %v2444 = vadd.f32 0.0, %v2443
        %v2445 = vpop.f32.mrb[0].mxu0
        %2446 = vdwg.mxu0
        %v2448 = vsel %vm1264, %v2373, 0
        %2450 = vmatprep.subr.mxu0 0.0
        %2451 = vmatpush1.msra.mxu0 %v2021
        %2452 = vmatprep.subr.mxu0 0.0
        %2453 = vmatpush1.msra.mxu0 0.0
        %2454 = vmatprep.subr.mxu0 0.0
        %2455 = vmatpush1.msra.mxu0 0.0
        %2456 = vmatprep.subr.mxu0 0.0
        %2457 = vmatpush1.msra.mxu0 0.0
        %2458 = vmatprep.subr.mxu0 0.0
        %2459 = vmatpush1.msra.mxu0 0.0
        %2460 = vmatprep.subr.mxu0 0.0
        %2461 = vmatpush1.msra.mxu0 0.0
        %2462 = vmatprep.subr.mxu0 0.0
        %2463 = vmatpush1.msra.mxu0 0.0
        %2464 = vmatprep.subr.mxu0 0.0
        %2465 = vmatpush1.msra.mxu0 0.0
        %2466 = vmatprep.subr.mxu0 0.0
        %2467 = vmatpush1.msra.mxu0 0.0
        %2468 = vmatprep.subr.mxu0 0.0
        %2469 = vmatpush1.msra.mxu0 0.0
        %2470 = vmatprep.subr.mxu0 0.0
        %2471 = vmatpush1.msra.mxu0 0.0
        %2472 = vmatprep.subr.mxu0 0.0
        %2473 = vmatpush1.msra.mxu0 0.0
        %2474 = vmatprep.subr.mxu0 0.0
        %2475 = vmatpush1.msra.mxu0 0.0
        %2476 = vmatprep.subr.mxu0 0.0
        %2477 = vmatpush1.msra.mxu0 0.0
        %2478 = vmatprep.subr.mxu0 0.0
        %2479 = vmatpush1.msra.mxu0 0.0
        %2480 = vmatprep.subr.mxu0 0.0
        %2481 = vmatpush1.msra.mxu0 0.0
        %2482 = vmatprep.subr.mxu0 0.0
        %2483 = vmatpush1.msra.mxu0 0.0
        %2484 = vmatprep.subr.mxu0 0.0
        %2485 = vmatpush1.msra.mxu0 0.0
        %2486 = vmatprep.subr.mxu0 0.0
        %2487 = vmatpush1.msra.mxu0 0.0
        %2488 = vmatprep.subr.mxu0 0.0
        %2489 = vmatpush1.msra.mxu0 0.0
        %2490 = vmatprep.subr.mxu0 0.0
        %2491 = vmatpush1.msra.mxu0 0.0
        %2492 = vmatprep.subr.mxu0 0.0
        %2493 = vmatpush1.msra.mxu0 0.0
        %2494 = vmatprep.subr.mxu0 0.0
        %2495 = vmatpush1.msra.mxu0 0.0
        %2496 = vmatprep.subr.mxu0 0.0
        %2497 = vmatpush1.msra.mxu0 0.0
        %2498 = vmatprep.subr.mxu0 0.0
        %2499 = vmatpush1.msra.mxu0 0.0
        %2500 = vmatprep.subr.mxu0 0.0
        %2501 = vmatpush1.msra.mxu0 0.0
        %2502 = vmatprep.subr.mxu0 0.0
        %2503 = vmatpush1.msra.mxu0 0.0
        %2504 = vmatprep.subr.mxu0 0.0
        %2505 = vmatpush1.msra.mxu0 0.0
        %2506 = vmatprep.subr.mxu0 0.0
        %2507 = vmatpush1.msra.mxu0 0.0
        %2508 = vmatprep.subr.mxu0 0.0
        %2509 = vmatpush1.msra.mxu0 0.0
        %2510 = vmatprep.subr.mxu0 0.0
        %2511 = vmatpush1.msra.mxu0 0.0
        %2512 = vmatprep.subr.mxu0 0.0
        %2513 = vmatpush1.msra.mxu0 0.0
        %2514 = vmatprep.mubr.f32.mxu0 0.0
        %2515 = vmatmul.mubr.f32.gmra.mrb[0].mxu0 %v2448
        %v2516 = vpop.f32.mrb[0].mxu0
        %v2517 = vadd.f32 0.0, %v2516
        %v2518 = vpop.f32.mrb[0].mxu0
        %2519 = vdwg.mxu0
        %v2521 = vsel %vm953, %v2370, 0
        %2523 = vmatprep.subr.mxu0 0.0
        %2524 = vmatpush1.msra.mxu0 %v1931
        %2525 = vmatprep.subr.mxu0 0.0
        %2526 = vmatpush1.msra.mxu0 %v1936
        %2527 = vmatprep.subr.mxu0 0.0
        %2528 = vmatpush1.msra.mxu0 0.0
        %2529 = vmatprep.subr.mxu0 0.0
        %2530 = vmatpush1.msra.mxu0 0.0
        %2531 = vmatprep.subr.mxu0 0.0
        %2532 = vmatpush1.msra.mxu0 0.0
        %2533 = vmatprep.subr.mxu0 0.0
        %2534 = vmatpush1.msra.mxu0 0.0
        %2535 = vmatprep.subr.mxu0 0.0
        %2536 = vmatpush1.msra.mxu0 0.0
        %2537 = vmatprep.subr.mxu0 0.0
        %2538 = vmatpush1.msra.mxu0 0.0
        %2539 = vmatprep.subr.mxu0 0.0
        %2540 = vmatpush1.msra.mxu0 0.0
        %2541 = vmatprep.subr.mxu0 0.0
        %2542 = vmatpush1.msra.mxu0 0.0
        %2543 = vmatprep.subr.mxu0 0.0
        %2544 = vmatpush1.msra.mxu0 0.0
        %2545 = vmatprep.subr.mxu0 0.0
        %2546 = vmatpush1.msra.mxu0 0.0
        %2547 = vmatprep.subr.mxu0 0.0
        %2548 = vmatpush1.msra.mxu0 0.0
        %2549 = vmatprep.subr.mxu0 0.0
        %2550 = vmatpush1.msra.mxu0 0.0
        %2551 = vmatprep.subr.mxu0 0.0
        %2552 = vmatpush1.msra.mxu0 0.0
        %2553 = vmatprep.subr.mxu0 0.0
        %2554 = vmatpush1.msra.mxu0 0.0
        %2555 = vmatprep.subr.mxu0 0.0
        %2556 = vmatpush1.msra.mxu0 0.0
        %2557 = vmatprep.subr.mxu0 0.0
        %2558 = vmatpush1.msra.mxu0 0.0
        %2559 = vmatprep.subr.mxu0 0.0
        %2560 = vmatpush1.msra.mxu0 0.0
        %2561 = vmatprep.subr.mxu0 0.0
        %2562 = vmatpush1.msra.mxu0 0.0
        %2563 = vmatprep.subr.mxu0 0.0
        %2564 = vmatpush1.msra.mxu0 0.0
        %2565 = vmatprep.subr.mxu0 0.0
        %2566 = vmatpush1.msra.mxu0 0.0
        %2567 = vmatprep.subr.mxu0 0.0
        %2568 = vmatpush1.msra.mxu0 0.0
        %2569 = vmatprep.subr.mxu0 0.0
        %2570 = vmatpush1.msra.mxu0 0.0
        %2571 = vmatprep.subr.mxu0 0.0
        %2572 = vmatpush1.msra.mxu0 0.0
        %2573 = vmatprep.subr.mxu0 0.0
        %2574 = vmatpush1.msra.mxu0 0.0
        %2575 = vmatprep.subr.mxu0 0.0
        %2576 = vmatpush1.msra.mxu0 0.0
        %2577 = vmatprep.subr.mxu0 0.0
        %2578 = vmatpush1.msra.mxu0 0.0
        %2579 = vmatprep.subr.mxu0 0.0
        %2580 = vmatpush1.msra.mxu0 0.0
        %2581 = vmatprep.subr.mxu0 0.0
        %2582 = vmatpush1.msra.mxu0 0.0
        %2583 = vmatprep.subr.mxu0 0.0
        %2584 = vmatpush1.msra.mxu0 0.0
        %2585 = vmatprep.subr.mxu0 0.0
        %2586 = vmatpush1.msra.mxu0 0.0
        %2587 = vmatprep.mubr.f32.mxu0 0.0
        %2588 = vmatmul.mubr.f32.gmra.mrb[0].mxu0 %v2521
        %v2589 = vpop.f32.mrb[0].mxu0
        %v2590 = vadd.f32 %v2444, %v2589
        %v2591 = vpop.f32.mrb[0].mxu0
        %2592 = vdwg.mxu0
        %v2594 = vsel %vm953, %v2371, 0
        %2596 = vmatprep.subr.mxu0 0.0
        %2597 = vmatpush1.msra.mxu0 %v1941
        %2598 = vmatprep.subr.mxu0 0.0
        %2599 = vmatpush1.msra.mxu0 %v1946
        %2600 = vmatprep.subr.mxu0 0.0
        %2601 = vmatpush1.msra.mxu0 0.0
        %2602 = vmatprep.subr.mxu0 0.0
        %2603 = vmatpush1.msra.mxu0 0.0
        %2604 = vmatprep.subr.mxu0 0.0
        %2605 = vmatpush1.msra.mxu0 0.0
        %2606 = vmatprep.subr.mxu0 0.0
        %2607 = vmatpush1.msra.mxu0 0.0
        %2608 = vmatprep.subr.mxu0 0.0
        %2609 = vmatpush1.msra.mxu0 0.0
        %2610 = vmatprep.subr.mxu0 0.0
        %2611 = vmatpush1.msra.mxu0 0.0
        %2612 = vmatprep.subr.mxu0 0.0
        %2613 = vmatpush1.msra.mxu0 0.0
        %2614 = vmatprep.subr.mxu0 0.0
        %2615 = vmatpush1.msra.mxu0 0.0
        %2616 = vmatprep.subr.mxu0 0.0
        %2617 = vmatpush1.msra.mxu0 0.0
        %2618 = vmatprep.subr.mxu0 0.0
        %2619 = vmatpush1.msra.mxu0 0.0
        %2620 = vmatprep.subr.mxu0 0.0
        %2621 = vmatpush1.msra.mxu0 0.0
        %2622 = vmatprep.subr.mxu0 0.0
        %2623 = vmatpush1.msra.mxu0 0.0
        %2624 = vmatprep.subr.mxu0 0.0
        %2625 = vmatpush1.msra.mxu0 0.0
        %2626 = vmatprep.subr.mxu0 0.0
        %2627 = vmatpush1.msra.mxu0 0.0
        %2628 = vmatprep.subr.mxu0 0.0
        %2629 = vmatpush1.msra.mxu0 0.0
        %2630 = vmatprep.subr.mxu0 0.0
        %2631 = vmatpush1.msra.mxu0 0.0
        %2632 = vmatprep.subr.mxu0 0.0
        %2633 = vmatpush1.msra.mxu0 0.0
        %2634 = vmatprep.subr.mxu0 0.0
        %2635 = vmatpush1.msra.mxu0 0.0
        %2636 = vmatprep.subr.mxu0 0.0
        %2637 = vmatpush1.msra.mxu0 0.0
        %2638 = vmatprep.subr.mxu0 0.0
        %2639 = vmatpush1.msra.mxu0 0.0
        %2640 = vmatprep.subr.mxu0 0.0
        %2641 = vmatpush1.msra.mxu0 0.0
        %2642 = vmatprep.subr.mxu0 0.0
        %2643 = vmatpush1.msra.mxu0 0.0
        %2644 = vmatprep.subr.mxu0 0.0
        %2645 = vmatpush1.msra.mxu0 0.0
        %2646 = vmatprep.subr.mxu0 0.0
        %2647 = vmatpush1.msra.mxu0 0.0
        %2648 = vmatprep.subr.mxu0 0.0
        %2649 = vmatpush1.msra.mxu0 0.0
        %2650 = vmatprep.subr.mxu0 0.0
        %2651 = vmatpush1.msra.mxu0 0.0
        %2652 = vmatprep.subr.mxu0 0.0
        %2653 = vmatpush1.msra.mxu0 0.0
        %2654 = vmatprep.subr.mxu0 0.0
        %2655 = vmatpush1.msra.mxu0 0.0
        %2656 = vmatprep.subr.mxu0 0.0
        %2657 = vmatpush1.msra.mxu0 0.0
        %2658 = vmatprep.subr.mxu0 0.0
        %2659 = vmatpush1.msra.mxu0 0.0
        %2660 = vmatprep.mubr.f32.mxu0 0.0
        %2661 = vmatmul.mubr.f32.gmra.mrb[0].mxu0 %v2594
        %v2662 = vpop.f32.mrb[0].mxu0
        %v2663 = vadd.f32 %v2517, %v2662
        %v2664 = vpop.f32.mrb[0].mxu0
        %2665 = vdwg.mxu0
        %v2667 = vsel %vm953, %v2590, 0
        %v2670 = vsel %vm953, %v2663, 0
        %2672 = vmatprep.subr.mxu0 0.0
        %2673 = vmatpush1.msra.mxu0 %v1625
        %2674 = vmatprep.subr.mxu0 0.0
        %2675 = vmatpush1.msra.mxu0 %v1626
        %2676 = vmatprep.subr.mxu0 0.0
        %2677 = vmatpush1.msra.mxu0 0.0
        %2678 = vmatprep.subr.mxu0 0.0
        %2679 = vmatpush1.msra.mxu0 0.0
        %2680 = vmatprep.subr.mxu0 0.0
        %2681 = vmatpush1.msra.mxu0 0.0
        %2682 = vmatprep.subr.mxu0 0.0
        %2683 = vmatpush1.msra.mxu0 0.0
        %2684 = vmatprep.subr.mxu0 0.0
        %2685 = vmatpush1.msra.mxu0 0.0
        %2686 = vmatprep.subr.mxu0 0.0
        %2687 = vmatpush1.msra.mxu0 0.0
        %2688 = vmatprep.subr.mxu0 0.0
        %2689 = vmatpush1.msra.mxu0 0.0
        %2690 = vmatprep.subr.mxu0 0.0
        %2691 = vmatpush1.msra.mxu0 0.0
        %2692 = vmatprep.subr.mxu0 0.0
        %2693 = vmatpush1.msra.mxu0 0.0
        %2694 = vmatprep.subr.mxu0 0.0
        %2695 = vmatpush1.msra.mxu0 0.0
        %2696 = vmatprep.subr.mxu0 0.0
        %2697 = vmatpush1.msra.mxu0 0.0
        %2698 = vmatprep.subr.mxu0 0.0
        %2699 = vmatpush1.msra.mxu0 0.0
        %2700 = vmatprep.subr.mxu0 0.0
        %2701 = vmatpush1.msra.mxu0 0.0
        %2702 = vmatprep.subr.mxu0 0.0
        %2703 = vmatpush1.msra.mxu0 0.0
        %2704 = vmatprep.subr.mxu0 0.0
        %2705 = vmatpush1.msra.mxu0 0.0
        %2706 = vmatprep.subr.mxu0 0.0
        %2707 = vmatpush1.msra.mxu0 0.0
        %2708 = vmatprep.subr.mxu0 0.0
        %2709 = vmatpush1.msra.mxu0 0.0
        %2710 = vmatprep.subr.mxu0 0.0
        %2711 = vmatpush1.msra.mxu0 0.0
        %2712 = vmatprep.subr.mxu0 0.0
        %2713 = vmatpush1.msra.mxu0 0.0
        %2714 = vmatprep.subr.mxu0 0.0
        %2715 = vmatpush1.msra.mxu0 0.0
        %2716 = vmatprep.subr.mxu0 0.0
        %2717 = vmatpush1.msra.mxu0 0.0
        %2718 = vmatprep.subr.mxu0 0.0
        %2719 = vmatpush1.msra.mxu0 0.0
        %2720 = vmatprep.subr.mxu0 0.0
        %2721 = vmatpush1.msra.mxu0 0.0
        %2722 = vmatprep.subr.mxu0 0.0
        %2723 = vmatpush1.msra.mxu0 0.0
        %2724 = vmatprep.subr.mxu0 0.0
        %2725 = vmatpush1.msra.mxu0 0.0
        %2726 = vmatprep.subr.mxu0 0.0
        %2727 = vmatpush1.msra.mxu0 0.0
        %2728 = vmatprep.subr.mxu0 0.0
        %2729 = vmatpush1.msra.mxu0 0.0
        %2730 = vmatprep.subr.mxu0 0.0
        %2731 = vmatpush1.msra.mxu0 0.0
        %2732 = vmatprep.subr.mxu0 0.0
        %2733 = vmatpush1.msra.mxu0 0.0
        %2734 = vmatprep.subr.mxu0 0.0
        %2735 = vmatpush1.msra.mxu0 0.0
        %2736 = vmatprep.mubr.f32.mxu0 0.0
        %2737 = vmatmul.mubr.f32.gmra.mrb[0].mxu0 %v2667
        %v2738 = vpop.f32.mrb[0].mxu0
        %v2739 = vadd.f32 0.0, %v2738
        %v2740 = vpop.f32.mrb[0].mxu0
        %2741 = vmatprep.mubr.f32.mxu0 0.0
        %2742 = vmatmul.mubr.f32.gmra.mrb[0].mxu0 %v2670
        %v2743 = vpop.f32.mrb[0].mxu0
        %v2744 = vadd.f32 0.0, %v2743
        %v2745 = vpop.f32.mrb[0].mxu0
        %2746 = vdwg.mxu0
        %v2748 = vsel %vm953, %v1521, 0
        %v2751 = vsel %vm953, %v1594, 0
        %2753 = vmatprep.subr.mxu0 0.0
        %2754 = vmatpush1.msra.mxu0 %v536
        %2755 = vmatprep.subr.mxu0 0.0
        %2756 = vmatpush1.msra.mxu0 %v537
        %2757 = vmatprep.subr.mxu0 0.0
        %2758 = vmatpush1.msra.mxu0 0.0
        %2759 = vmatprep.subr.mxu0 0.0
        %2760 = vmatpush1.msra.mxu0 0.0
        %2761 = vmatprep.subr.mxu0 0.0
        %2762 = vmatpush1.msra.mxu0 0.0
        %2763 = vmatprep.subr.mxu0 0.0
        %2764 = vmatpush1.msra.mxu0 0.0
        %2765 = vmatprep.subr.mxu0 0.0
        %2766 = vmatpush1.msra.mxu0 0.0
        %2767 = vmatprep.subr.mxu0 0.0
        %2768 = vmatpush1.msra.mxu0 0.0
        %2769 = vmatprep.subr.mxu0 0.0
        %2770 = vmatpush1.msra.mxu0 0.0
        %2771 = vmatprep.subr.mxu0 0.0
        %2772 = vmatpush1.msra.mxu0 0.0
        %2773 = vmatprep.subr.mxu0 0.0
        %2774 = vmatpush1.msra.mxu0 0.0
        %2775 = vmatprep.subr.mxu0 0.0
        %2776 = vmatpush1.msra.mxu0 0.0
        %2777 = vmatprep.subr.mxu0 0.0
        %2778 = vmatpush1.msra.mxu0 0.0
        %2779 = vmatprep.subr.mxu0 0.0
        %2780 = vmatpush1.msra.mxu0 0.0
        %2781 = vmatprep.subr.mxu0 0.0
        %2782 = vmatpush1.msra.mxu0 0.0
        %2783 = vmatprep.subr.mxu0 0.0
        %2784 = vmatpush1.msra.mxu0 0.0
        %2785 = vmatprep.subr.mxu0 0.0
        %2786 = vmatpush1.msra.mxu0 0.0
        %2787 = vmatprep.subr.mxu0 0.0
        %2788 = vmatpush1.msra.mxu0 0.0
        %2789 = vmatprep.subr.mxu0 0.0
        %2790 = vmatpush1.msra.mxu0 0.0
        %2791 = vmatprep.subr.mxu0 0.0
        %2792 = vmatpush1.msra.mxu0 0.0
        %2793 = vmatprep.subr.mxu0 0.0
        %2794 = vmatpush1.msra.mxu0 0.0
        %2795 = vmatprep.subr.mxu0 0.0
        %2796 = vmatpush1.msra.mxu0 0.0
        %2797 = vmatprep.subr.mxu0 0.0
        %2798 = vmatpush1.msra.mxu0 0.0
        %2799 = vmatprep.subr.mxu0 0.0
        %2800 = vmatpush1.msra.mxu0 0.0
        %2801 = vmatprep.subr.mxu0 0.0
        %2802 = vmatpush1.msra.mxu0 0.0
        %2803 = vmatprep.subr.mxu0 0.0
        %2804 = vmatpush1.msra.mxu0 0.0
        %2805 = vmatprep.subr.mxu0 0.0
        %2806 = vmatpush1.msra.mxu0 0.0
        %2807 = vmatprep.subr.mxu0 0.0
        %2808 = vmatpush1.msra.mxu0 0.0
        %2809 = vmatprep.subr.mxu0 0.0
        %2810 = vmatpush1.msra.mxu0 0.0
        %2811 = vmatprep.subr.mxu0 0.0
        %2812 = vmatpush1.msra.mxu0 0.0
        %2813 = vmatprep.subr.mxu0 0.0
        %2814 = vmatpush1.msra.mxu0 0.0
        %2815 = vmatprep.subr.mxu0 0.0
        %2816 = vmatpush1.msra.mxu0 0.0
        %2817 = vmatprep.mubr.f32.mxu0 0.0
        %2818 = vmatmul.mubr.f32.gmra.mrb[0].mxu0 %v2748
        %v2819 = vpop.f32.mrb[0].mxu0
        %v2820 = vadd.f32 %v2739, %v2819
        %v2821 = vpop.f32.mrb[0].mxu0
        %2822 = vmatprep.mubr.f32.mxu0 0.0
        %2823 = vmatmul.mubr.f32.gmra.mrb[0].mxu0 %v2751
        %v2824 = vpop.f32.mrb[0].mxu0
        %v2825 = vadd.f32 %v2744, %v2824
        %v2826 = vpop.f32.mrb[0].mxu0
        %2827 = vdwg.mxu0
        %s2828 = scalar_lea.vmem %s6, 128
        %v2829 = vld [vmem:[%s2828] sm:$0xff]
        %v2830 = vld [vmem:[%s2828 + $0x8] sm:$0xff]
        %v2831 = vld [vmem:[%s2828 + $0x10] sm:$0xff]
        %v2832 = vld [vmem:[%s2828 + $0x18] sm:$0xff]
        %v2833 = vld [vmem:[%s2828 + $0x20] sm:$0xff]
        %v2834 = vld [vmem:[%s2828 + $0x28] sm:$0xff]
        %v2835 = vld [vmem:[%s2828 + $0x30] sm:$0xff]
        %v2836 = vld [vmem:[%s2828 + $0x38] sm:$0xff]
        %s2837 = scalar_lea.vmem %s7, 128
        %v2838 = vld [vmem:[%s2837] sm:$0xff]
        %v2839 = vld [vmem:[%s2837 + $0x8] sm:$0xff]
        %v2840 = vld [vmem:[%s2837 + $0x10] sm:$0xff]
        %v2841 = vld [vmem:[%s2837 + $0x18] sm:$0xff]
        %v2842 = vld [vmem:[%s2837 + $0x20] sm:$0xff]
        %v2843 = vld [vmem:[%s2837 + $0x28] sm:$0xff]
        %v2844 = vld [vmem:[%s2837 + $0x30] sm:$0xff]
        %v2845 = vld [vmem:[%s2837 + $0x38] sm:$0xff]
        %s2846 = scalar_lea.vmem %s8, 128
        %v2847 = vld [vmem:[%s2846] sm:$0xff]
        %v2848 = vld [vmem:[%s2846 + $0x8] sm:$0xff]
        %v2849 = vld [vmem:[%s2846 + $0x10] sm:$0xff]
        %v2850 = vld [vmem:[%s2846 + $0x18] sm:$0xff]
        %v2851 = vld [vmem:[%s2846 + $0x20] sm:$0xff]
        %v2852 = vld [vmem:[%s2846 + $0x28] sm:$0xff]
        %v2853 = vld [vmem:[%s2846 + $0x30] sm:$0xff]
        %v2854 = vld [vmem:[%s2846 + $0x38] sm:$0xff]
        %s2855 = scalar_lea.vmem %s9, 32
        %v2856 = vld [vmem:[%s2855] sm:$0xff]
        %v2857 = vld [vmem:[%s2855 + $0x8] sm:$0xff]
        %2858 = vmatprep.subr.mxu0 0.0
        %2859 = vmatpush1.msra.mxu0 %v2829
        %2860 = vmatprep.subr.mxu0 0.0
        %2861 = vmatpush1.msra.mxu0 %v2830
        %2862 = vmatprep.subr.mxu0 0.0
        %2863 = vmatpush1.msra.mxu0 %v2831
        %2864 = vmatprep.subr.mxu0 0.0
        %2865 = vmatpush1.msra.mxu0 %v2832
        %2866 = vmatprep.subr.mxu0 0.0
        %2867 = vmatpush1.msra.mxu0 %v2833
        %2868 = vmatprep.subr.mxu0 0.0
        %2869 = vmatpush1.msra.mxu0 %v2834
        %2870 = vmatprep.subr.mxu0 0.0
        %2871 = vmatpush1.msra.mxu0 %v2835
        %2872 = vmatprep.subr.mxu0 0.0
        %2873 = vmatpush1.msra.mxu0 %v2836
        %2874 = vmatprep.subr.mxu0 0.0
        %2875 = vmatpush1.msra.mxu0 0.0
        %2876 = vmatprep.subr.mxu0 0.0
        %2877 = vmatpush1.msra.mxu0 0.0
        %2878 = vmatprep.subr.mxu0 0.0
        %2879 = vmatpush1.msra.mxu0 0.0
        %2880 = vmatprep.subr.mxu0 0.0
        %2881 = vmatpush1.msra.mxu0 0.0
        %2882 = vmatprep.subr.mxu0 0.0
        %2883 = vmatpush1.msra.mxu0 0.0
        %2884 = vmatprep.subr.mxu0 0.0
        %2885 = vmatpush1.msra.mxu0 0.0
        %2886 = vmatprep.subr.mxu0 0.0
        %2887 = vmatpush1.msra.mxu0 0.0
        %2888 = vmatprep.subr.mxu0 0.0
        %2889 = vmatpush1.msra.mxu0 0.0
        %2890 = vmatprep.subr.mxu0 0.0
        %2891 = vmatpush1.msra.mxu0 0.0
        %2892 = vmatprep.subr.mxu0 0.0
        %2893 = vmatpush1.msra.mxu0 0.0
        %2894 = vmatprep.subr.mxu0 0.0
        %2895 = vmatpush1.msra.mxu0 0.0
        %2896 = vmatprep.subr.mxu0 0.0
        %2897 = vmatpush1.msra.mxu0 0.0
        %2898 = vmatprep.subr.mxu0 0.0
        %2899 = vmatpush1.msra.mxu0 0.0
        %2900 = vmatprep.subr.mxu0 0.0
        %2901 = vmatpush1.msra.mxu0 0.0
        %2902 = vmatprep.subr.mxu0 0.0
        %2903 = vmatpush1.msra.mxu0 0.0
        %2904 = vmatprep.subr.mxu0 0.0
        %2905 = vmatpush1.msra.mxu0 0.0
        %2906 = vmatprep.subr.mxu0 0.0
        %2907 = vmatpush1.msra.mxu0 0.0
        %2908 = vmatprep.subr.mxu0 0.0
        %2909 = vmatpush1.msra.mxu0 0.0
        %2910 = vmatprep.subr.mxu0 0.0
        %2911 = vmatpush1.msra.mxu0 0.0
        %2912 = vmatprep.subr.mxu0 0.0
        %2913 = vmatpush1.msra.mxu0 0.0
        %2914 = vmatprep.subr.mxu0 0.0
        %2915 = vmatpush1.msra.mxu0 0.0
        %2916 = vmatprep.subr.mxu0 0.0
        %2917 = vmatpush1.msra.mxu0 0.0
        %2918 = vmatprep.subr.mxu0 0.0
        %2919 = vmatpush1.msra.mxu0 0.0
        %2920 = vmatprep.subr.mxu0 0.0
        %2921 = vmatpush1.msra.mxu0 0.0
        %2922 = vmatprep.mubr.f32.mxu0 0.0
        %2923 = vmatmul.mubr.f32.gmra.mrb[0].mxu0 %v539
        %v2924 = vpop.f32.mrb[0].mxu0
        %v2925 = vadd.f32 0.0, %v2924
        %v2926 = vpop.f32.mrb[0].mxu0
        %2927 = vmatprep.mubr.f32.mxu0 0.0
        %2928 = vmatmul.mubr.f32.gmra.mrb[0].mxu0 %v542
        %v2929 = vpop.f32.mrb[0].mxu0
        %v2930 = vadd.f32 0.0, %v2929
        %v2931 = vpop.f32.mrb[0].mxu0
        %2932 = vdwg.mxu0
        %v2933 = vmul.f32 %v2925, 0.25
        %v2934 = vmul.f32 %v2930, 0.25
        %2935 = vmatprep.subr.mxu0 0.0
        %2936 = vmatpush1.msra.mxu0 %v2838
        %2937 = vmatprep.subr.mxu0 0.0
        %2938 = vmatpush1.msra.mxu0 %v2839
        %2939 = vmatprep.subr.mxu0 0.0
        %2940 = vmatpush1.msra.mxu0 %v2840
        %2941 = vmatprep.subr.mxu0 0.0
        %2942 = vmatpush1.msra.mxu0 %v2841
        %2943 = vmatprep.subr.mxu0 0.0
        %2944 = vmatpush1.msra.mxu0 %v2842
        %2945 = vmatprep.subr.mxu0 0.0
        %2946 = vmatpush1.msra.mxu0 %v2843
        %2947 = vmatprep.subr.mxu0 0.0
        %2948 = vmatpush1.msra.mxu0 %v2844
        %2949 = vmatprep.subr.mxu0 0.0
        %2950 = vmatpush1.msra.mxu0 %v2845
        %2951 = vmatprep.subr.mxu0 0.0
        %2952 = vmatpush1.msra.mxu0 0.0
        %2953 = vmatprep.subr.mxu0 0.0
        %2954 = vmatpush1.msra.mxu0 0.0
        %2955 = vmatprep.subr.mxu0 0.0
        %2956 = vmatpush1.msra.mxu0 0.0
        %2957 = vmatprep.subr.mxu0 0.0
        %2958 = vmatpush1.msra.mxu0 0.0
        %2959 = vmatprep.subr.mxu0 0.0
        %2960 = vmatpush1.msra.mxu0 0.0
        %2961 = vmatprep.subr.mxu0 0.0
        %2962 = vmatpush1.msra.mxu0 0.0
        %2963 = vmatprep.subr.mxu0 0.0
        %2964 = vmatpush1.msra.mxu0 0.0
        %2965 = vmatprep.subr.mxu0 0.0
        %2966 = vmatpush1.msra.mxu0 0.0
        %2967 = vmatprep.subr.mxu0 0.0
        %2968 = vmatpush1.msra.mxu0 0.0
        %2969 = vmatprep.subr.mxu0 0.0
        %2970 = vmatpush1.msra.mxu0 0.0
        %2971 = vmatprep.subr.mxu0 0.0
        %2972 = vmatpush1.msra.mxu0 0.0
        %2973 = vmatprep.subr.mxu0 0.0
        %2974 = vmatpush1.msra.mxu0 0.0
        %2975 = vmatprep.subr.mxu0 0.0
        %2976 = vmatpush1.msra.mxu0 0.0
        %2977 = vmatprep.subr.mxu0 0.0
        %2978 = vmatpush1.msra.mxu0 0.0
        %2979 = vmatprep.subr.mxu0 0.0
        %2980 = vmatpush1.msra.mxu0 0.0
        %2981 = vmatprep.subr.mxu0 0.0
        %2982 = vmatpush1.msra.mxu0 0.0
        %2983 = vmatprep.subr.mxu0 0.0
        %2984 = vmatpush1.msra.mxu0 0.0
        %2985 = vmatprep.subr.mxu0 0.0
        %2986 = vmatpush1.msra.mxu0 0.0
        %2987 = vmatprep.subr.mxu0 0.0
        %2988 = vmatpush1.msra.mxu0 0.0
        %2989 = vmatprep.subr.mxu0 0.0
        %2990 = vmatpush1.msra.mxu0 0.0
        %2991 = vmatprep.subr.mxu0 0.0
        %2992 = vmatpush1.msra.mxu0 0.0
        %2993 = vmatprep.subr.mxu0 0.0
        %2994 = vmatpush1.msra.mxu0 0.0
        %2995 = vmatprep.subr.mxu0 0.0
        %2996 = vmatpush1.msra.mxu0 0.0
        %2997 = vmatprep.subr.mxu0 0.0
        %2998 = vmatpush1.msra.mxu0 0.0
        %2999 = vmatprep.mubr.f32.mxu0 0.0
        %3000 = vmatmul.mubr.f32.gmra.mrb[0].mxu0 %v622
        %v3001 = vpop.f32.mrb[0].mxu0
        %v3002 = vadd.f32 0.0, %v3001
        %v3003 = vpop.f32.mrb[0].mxu0
        %3004 = vmatprep.mubr.f32.mxu0 0.0
        %3005 = vmatmul.mubr.f32.gmra.mrb[0].mxu0 %v625
        %v3006 = vpop.f32.mrb[0].mxu0
        %v3007 = vadd.f32 0.0, %v3006
        %v3008 = vpop.f32.mrb[0].mxu0
        %3009 = vmatprep.mubr.f32.mxu0 0.0
        %3010 = vmatmul.mubr.f32.gmra.mrb[0].mxu0 %v628
        %v3011 = vpop.f32.mrb[0].mxu0
        %v3012 = vadd.f32 0.0, %v3011
        %v3013 = vpop.f32.mrb[0].mxu0
        %3014 = vmatprep.mubr.f32.mxu0 0.0
        %3015 = vmatmul.mubr.f32.gmra.mrb[0].mxu0 %v631
        %v3016 = vpop.f32.mrb[0].mxu0
        %v3017 = vadd.f32 0.0, %v3016
        %v3018 = vpop.f32.mrb[0].mxu0
        %3019 = vdwg.mxu0
        %3020 = vmatprep.subr.mxu0 0.0
        %3021 = vmatpush1.msra.mxu0 %v2838
        %3022 = vmatprep.subr.mxu0 0.0
        %3023 = vmatpush1.msra.mxu0 %v2839
        %3024 = vmatprep.subr.mxu0 0.0
        %3025 = vmatpush1.msra.mxu0 %v2840
        %3026 = vmatprep.subr.mxu0 0.0
        %3027 = vmatpush1.msra.mxu0 %v2841
        %3028 = vmatprep.subr.mxu0 0.0
        %3029 = vmatpush1.msra.mxu0 %v2842
        %3030 = vmatprep.subr.mxu0 0.0
        %3031 = vmatpush1.msra.mxu0 %v2843
        %3032 = vmatprep.subr.mxu0 0.0
        %3033 = vmatpush1.msra.mxu0 %v2844
        %3034 = vmatprep.subr.mxu0 0.0
        %3035 = vmatpush1.msra.mxu0 %v2845
        %3036 = vmatprep.subr.mxu0 0.0
        %3037 = vmatpush1.msra.mxu0 0.0
        %3038 = vmatprep.subr.mxu0 0.0
        %3039 = vmatpush1.msra.mxu0 0.0
        %3040 = vmatprep.subr.mxu0 0.0
        %3041 = vmatpush1.msra.mxu0 0.0
        %3042 = vmatprep.subr.mxu0 0.0
        %3043 = vmatpush1.msra.mxu0 0.0
        %3044 = vmatprep.subr.mxu0 0.0
        %3045 = vmatpush1.msra.mxu0 0.0
        %3046 = vmatprep.subr.mxu0 0.0
        %3047 = vmatpush1.msra.mxu0 0.0
        %3048 = vmatprep.subr.mxu0 0.0
        %3049 = vmatpush1.msra.mxu0 0.0
        %3050 = vmatprep.subr.mxu0 0.0
        %3051 = vmatpush1.msra.mxu0 0.0
        %3052 = vmatprep.subr.mxu0 0.0
        %3053 = vmatpush1.msra.mxu0 0.0
        %3054 = vmatprep.subr.mxu0 0.0
        %3055 = vmatpush1.msra.mxu0 0.0
        %3056 = vmatprep.subr.mxu0 0.0
        %3057 = vmatpush1.msra.mxu0 0.0
        %3058 = vmatprep.subr.mxu0 0.0
        %3059 = vmatpush1.msra.mxu0 0.0
        %3060 = vmatprep.subr.mxu0 0.0
        %3061 = vmatpush1.msra.mxu0 0.0
        %3062 = vmatprep.subr.mxu0 0.0
        %3063 = vmatpush1.msra.mxu0 0.0
        %3064 = vmatprep.subr.mxu0 0.0
        %3065 = vmatpush1.msra.mxu0 0.0
        %3066 = vmatprep.subr.mxu0 0.0
        %3067 = vmatpush1.msra.mxu0 0.0
        %3068 = vmatprep.subr.mxu0 0.0
        %3069 = vmatpush1.msra.mxu0 0.0
        %3070 = vmatprep.subr.mxu0 0.0
        %3071 = vmatpush1.msra.mxu0 0.0
        %3072 = vmatprep.subr.mxu0 0.0
        %3073 = vmatpush1.msra.mxu0 0.0
        %3074 = vmatprep.subr.mxu0 0.0
        %3075 = vmatpush1.msra.mxu0 0.0
        %3076 = vmatprep.subr.mxu0 0.0
        %3077 = vmatpush1.msra.mxu0 0.0
        %3078 = vmatprep.subr.mxu0 0.0
        %3079 = vmatpush1.msra.mxu0 0.0
        %3080 = vmatprep.subr.mxu0 0.0
        %3081 = vmatpush1.msra.mxu0 0.0
        %3082 = vmatprep.subr.mxu0 0.0
        %3083 = vmatpush1.msra.mxu0 0.0
        %3084 = vmatprep.mubr.f32.mxu0 0.0
        %3085 = vmatmul.mubr.f32.gmra.mrb[0].mxu0 %v539
        %v3086 = vpop.f32.mrb[0].mxu0
        %v3087 = vadd.f32 0.0, %v3086
        %v3088 = vpop.f32.mrb[0].mxu0
        %3089 = vmatprep.mubr.f32.mxu0 0.0
        %3090 = vmatmul.mubr.f32.gmra.mrb[0].mxu0 %v542
        %v3091 = vpop.f32.mrb[0].mxu0
        %v3092 = vadd.f32 0.0, %v3091
        %v3093 = vpop.f32.mrb[0].mxu0
        %3094 = vdwg.mxu0
        %3095 = vmatprep.subr.mxu0 0.0
        %3096 = vmatpush1.msra.mxu0 %v2847
        %3097 = vmatprep.subr.mxu0 0.0
        %3098 = vmatpush1.msra.mxu0 %v2848
        %3099 = vmatprep.subr.mxu0 0.0
        %3100 = vmatpush1.msra.mxu0 %v2849
        %3101 = vmatprep.subr.mxu0 0.0
        %3102 = vmatpush1.msra.mxu0 %v2850
        %3103 = vmatprep.subr.mxu0 0.0
        %3104 = vmatpush1.msra.mxu0 %v2851
        %3105 = vmatprep.subr.mxu0 0.0
        %3106 = vmatpush1.msra.mxu0 %v2852
        %3107 = vmatprep.subr.mxu0 0.0
        %3108 = vmatpush1.msra.mxu0 %v2853
        %3109 = vmatprep.subr.mxu0 0.0
        %3110 = vmatpush1.msra.mxu0 %v2854
        %3111 = vmatprep.subr.mxu0 0.0
        %3112 = vmatpush1.msra.mxu0 0.0
        %3113 = vmatprep.subr.mxu0 0.0
        %3114 = vmatpush1.msra.mxu0 0.0
        %3115 = vmatprep.subr.mxu0 0.0
        %3116 = vmatpush1.msra.mxu0 0.0
        %3117 = vmatprep.subr.mxu0 0.0
        %3118 = vmatpush1.msra.mxu0 0.0
        %3119 = vmatprep.subr.mxu0 0.0
        %3120 = vmatpush1.msra.mxu0 0.0
        %3121 = vmatprep.subr.mxu0 0.0
        %3122 = vmatpush1.msra.mxu0 0.0
        %3123 = vmatprep.subr.mxu0 0.0
        %3124 = vmatpush1.msra.mxu0 0.0
        %3125 = vmatprep.subr.mxu0 0.0
        %3126 = vmatpush1.msra.mxu0 0.0
        %3127 = vmatprep.subr.mxu0 0.0
        %3128 = vmatpush1.msra.mxu0 0.0
        %3129 = vmatprep.subr.mxu0 0.0
        %3130 = vmatpush1.msra.mxu0 0.0
        %3131 = vmatprep.subr.mxu0 0.0
        %3132 = vmatpush1.msra.mxu0 0.0
        %3133 = vmatprep.subr.mxu0 0.0
        %3134 = vmatpush1.msra.mxu0 0.0
        %3135 = vmatprep.subr.mxu0 0.0
        %3136 = vmatpush1.msra.mxu0 0.0
        %3137 = vmatprep.subr.mxu0 0.0
        %3138 = vmatpush1.msra.mxu0 0.0
        %3139 = vmatprep.subr.mxu0 0.0
        %3140 = vmatpush1.msra.mxu0 0.0
        %3141 = vmatprep.subr.mxu0 0.0
        %3142 = vmatpush1.msra.mxu0 0.0
        %3143 = vmatprep.subr.mxu0 0.0
        %3144 = vmatpush1.msra.mxu0 0.0
        %3145 = vmatprep.subr.mxu0 0.0
        %3146 = vmatpush1.msra.mxu0 0.0
        %3147 = vmatprep.subr.mxu0 0.0
        %3148 = vmatpush1.msra.mxu0 0.0
        %3149 = vmatprep.subr.mxu0 0.0
        %3150 = vmatpush1.msra.mxu0 0.0
        %3151 = vmatprep.subr.mxu0 0.0
        %3152 = vmatpush1.msra.mxu0 0.0
        %3153 = vmatprep.subr.mxu0 0.0
        %3154 = vmatpush1.msra.mxu0 0.0
        %3155 = vmatprep.subr.mxu0 0.0
        %3156 = vmatpush1.msra.mxu0 0.0
        %3157 = vmatprep.subr.mxu0 0.0
        %3158 = vmatpush1.msra.mxu0 0.0
        %3159 = vmatprep.mubr.f32.mxu0 0.0
        %3160 = vmatmul.mubr.f32.gmra.mrb[0].mxu0 %v622
        %v3161 = vpop.f32.mrb[0].mxu0
        %v3162 = vadd.f32 0.0, %v3161
        %v3163 = vpop.f32.mrb[0].mxu0
        %3164 = vmatprep.mubr.f32.mxu0 0.0
        %3165 = vmatmul.mubr.f32.gmra.mrb[0].mxu0 %v625
        %v3166 = vpop.f32.mrb[0].mxu0
        %v3167 = vadd.f32 0.0, %v3166
        %v3168 = vpop.f32.mrb[0].mxu0
        %3169 = vmatprep.mubr.f32.mxu0 0.0
        %3170 = vmatmul.mubr.f32.gmra.mrb[0].mxu0 %v628
        %v3171 = vpop.f32.mrb[0].mxu0
        %v3172 = vadd.f32 0.0, %v3171
        %v3173 = vpop.f32.mrb[0].mxu0
        %3174 = vmatprep.mubr.f32.mxu0 0.0
        %3175 = vmatmul.mubr.f32.gmra.mrb[0].mxu0 %v631
        %v3176 = vpop.f32.mrb[0].mxu0
        %v3177 = vadd.f32 0.0, %v3176
        %v3178 = vpop.f32.mrb[0].mxu0
        %3179 = vdwg.mxu0
        %3180 = vmatprep.subr.mxu0 0.0
        %3181 = vmatpush1.msra.mxu0 %v2847
        %3182 = vmatprep.subr.mxu0 0.0
        %3183 = vmatpush1.msra.mxu0 %v2848
        %3184 = vmatprep.subr.mxu0 0.0
        %3185 = vmatpush1.msra.mxu0 %v2849
        %3186 = vmatprep.subr.mxu0 0.0
        %3187 = vmatpush1.msra.mxu0 %v2850
        %3188 = vmatprep.subr.mxu0 0.0
        %3189 = vmatpush1.msra.mxu0 %v2851
        %3190 = vmatprep.subr.mxu0 0.0
        %3191 = vmatpush1.msra.mxu0 %v2852
        %3192 = vmatprep.subr.mxu0 0.0
        %3193 = vmatpush1.msra.mxu0 %v2853
        %3194 = vmatprep.subr.mxu0 0.0
        %3195 = vmatpush1.msra.mxu0 %v2854
        %3196 = vmatprep.subr.mxu0 0.0
        %3197 = vmatpush1.msra.mxu0 0.0
        %3198 = vmatprep.subr.mxu0 0.0
        %3199 = vmatpush1.msra.mxu0 0.0
        %3200 = vmatprep.subr.mxu0 0.0
        %3201 = vmatpush1.msra.mxu0 0.0
        %3202 = vmatprep.subr.mxu0 0.0
        %3203 = vmatpush1.msra.mxu0 0.0
        %3204 = vmatprep.subr.mxu0 0.0
        %3205 = vmatpush1.msra.mxu0 0.0
        %3206 = vmatprep.subr.mxu0 0.0
        %3207 = vmatpush1.msra.mxu0 0.0
        %3208 = vmatprep.subr.mxu0 0.0
        %3209 = vmatpush1.msra.mxu0 0.0
        %3210 = vmatprep.subr.mxu0 0.0
        %3211 = vmatpush1.msra.mxu0 0.0
        %3212 = vmatprep.subr.mxu0 0.0
        %3213 = vmatpush1.msra.mxu0 0.0
        %3214 = vmatprep.subr.mxu0 0.0
        %3215 = vmatpush1.msra.mxu0 0.0
        %3216 = vmatprep.subr.mxu0 0.0
        %3217 = vmatpush1.msra.mxu0 0.0
        %3218 = vmatprep.subr.mxu0 0.0
        %3219 = vmatpush1.msra.mxu0 0.0
        %3220 = vmatprep.subr.mxu0 0.0
        %3221 = vmatpush1.msra.mxu0 0.0
        %3222 = vmatprep.subr.mxu0 0.0
        %3223 = vmatpush1.msra.mxu0 0.0
        %3224 = vmatprep.subr.mxu0 0.0
        %3225 = vmatpush1.msra.mxu0 0.0
        %3226 = vmatprep.subr.mxu0 0.0
        %3227 = vmatpush1.msra.mxu0 0.0
        %3228 = vmatprep.subr.mxu0 0.0
        %3229 = vmatpush1.msra.mxu0 0.0
        %3230 = vmatprep.subr.mxu0 0.0
        %3231 = vmatpush1.msra.mxu0 0.0
        %3232 = vmatprep.subr.mxu0 0.0
        %3233 = vmatpush1.msra.mxu0 0.0
        %3234 = vmatprep.subr.mxu0 0.0
        %3235 = vmatpush1.msra.mxu0 0.0
        %3236 = vmatprep.subr.mxu0 0.0
        %3237 = vmatpush1.msra.mxu0 0.0
        %3238 = vmatprep.subr.mxu0 0.0
        %3239 = vmatpush1.msra.mxu0 0.0
        %3240 = vmatprep.subr.mxu0 0.0
        %3241 = vmatpush1.msra.mxu0 0.0
        %3242 = vmatprep.subr.mxu0 0.0
        %3243 = vmatpush1.msra.mxu0 0.0
        %3244 = vmatprep.mubr.f32.mxu0 0.0
        %3245 = vmatmul.mubr.f32.gmra.mrb[0].mxu0 %v539
        %v3246 = vpop.f32.mrb[0].mxu0
        %v3247 = vadd.f32 0.0, %v3246
        %v3248 = vpop.f32.mrb[0].mxu0
        %3249 = vmatprep.mubr.f32.mxu0 0.0
        %3250 = vmatmul.mubr.f32.gmra.mrb[0].mxu0 %v542
        %v3251 = vpop.f32.mrb[0].mxu0
        %v3252 = vadd.f32 0.0, %v3251
        %v3253 = vpop.f32.mrb[0].mxu0
        %3254 = vdwg.mxu0
        %v3256 = vsel %vm953, %v2933, 0
        %v3259 = vsel %vm953, %v3002, 0
        %v3262 = vsel %vm953, %v3007, 0
        %3264 = vmatprep.subr.mxu0 0.0
        %3265 = vmatpush1.xpose.msra.mxu0 %v3259
        %3266 = vmatprep.subr.mxu0 0.0
        %3267 = vmatpush1.xpose.msra.mxu0 %v3262
        %3268 = vmatprep.subr.mxu0 0.0
        %3269 = vmatpush1.xpose.msra.mxu0 0.0
        %3270 = vmatprep.subr.mxu0 0.0
        %3271 = vmatpush1.xpose.msra.mxu0 0.0
        %3272 = vmatprep.subr.mxu0 0.0
        %3273 = vmatpush1.xpose.msra.mxu0 0.0
        %3274 = vmatprep.subr.mxu0 0.0
        %3275 = vmatpush1.xpose.msra.mxu0 0.0
        %3276 = vmatprep.subr.mxu0 0.0
        %3277 = vmatpush1.xpose.msra.mxu0 0.0
        %3278 = vmatprep.subr.mxu0 0.0
        %3279 = vmatpush1.xpose.msra.mxu0 0.0
        %3280 = vmatprep.subr.mxu0 0.0
        %3281 = vmatpush1.xpose.msra.mxu0 0.0
        %3282 = vmatprep.subr.mxu0 0.0
        %3283 = vmatpush1.xpose.msra.mxu0 0.0
        %3284 = vmatprep.subr.mxu0 0.0
        %3285 = vmatpush1.xpose.msra.mxu0 0.0
        %3286 = vmatprep.subr.mxu0 0.0
        %3287 = vmatpush1.xpose.msra.mxu0 0.0
        %3288 = vmatprep.subr.mxu0 0.0
        %3289 = vmatpush1.xpose.msra.mxu0 0.0
        %3290 = vmatprep.subr.mxu0 0.0
        %3291 = vmatpush1.xpose.msra.mxu0 0.0
        %3292 = vmatprep.subr.mxu0 0.0
        %3293 = vmatpush1.xpose.msra.mxu0 0.0
        %3294 = vmatprep.subr.mxu0 0.0
        %3295 = vmatpush1.xpose.msra.mxu0 0.0
        %3296 = vmatprep.subr.mxu0 0.0
        %3297 = vmatpush1.xpose.msra.mxu0 0.0
        %3298 = vmatprep.subr.mxu0 0.0
        %3299 = vmatpush1.xpose.msra.mxu0 0.0
        %3300 = vmatprep.subr.mxu0 0.0
        %3301 = vmatpush1.xpose.msra.mxu0 0.0
        %3302 = vmatprep.subr.mxu0 0.0
        %3303 = vmatpush1.xpose.msra.mxu0 0.0
        %3304 = vmatprep.subr.mxu0 0.0
        %3305 = vmatpush1.xpose.msra.mxu0 0.0
        %3306 = vmatprep.subr.mxu0 0.0
        %3307 = vmatpush1.xpose.msra.mxu0 0.0
        %3308 = vmatprep.subr.mxu0 0.0
        %3309 = vmatpush1.xpose.msra.mxu0 0.0
        %3310 = vmatprep.subr.mxu0 0.0
        %3311 = vmatpush1.xpose.msra.mxu0 0.0
        %3312 = vmatprep.subr.mxu0 0.0
        %3313 = vmatpush1.xpose.msra.mxu0 0.0
        %3314 = vmatprep.subr.mxu0 0.0
        %3315 = vmatpush1.xpose.msra.mxu0 0.0
        %3316 = vmatprep.subr.mxu0 0.0
        %3317 = vmatpush1.xpose.msra.mxu0 0.0
        %3318 = vmatprep.subr.mxu0 0.0
        %3319 = vmatpush1.xpose.msra.mxu0 0.0
        %3320 = vmatprep.subr.mxu0 0.0
        %3321 = vmatpush1.xpose.msra.mxu0 0.0
        %3322 = vmatprep.subr.mxu0 0.0
        %3323 = vmatpush1.xpose.msra.mxu0 0.0
        %3324 = vmatprep.subr.mxu0 0.0
        %3325 = vmatpush1.xpose.msra.mxu0 0.0
        %3326 = vmatprep.subr.mxu0 0.0
        %3327 = vmatpush1.xpose.msra.mxu0 0.0
        %3328 = vmatprep.mubr.f32.mxu0 0.0
        %3329 = vmatmul.mubr.f32.gmra.mrb[0].mxu0 %v3256
        %v3330 = vpop.f32.mrb[0].mxu0
        %v3331 = vadd.f32 0.0, %v3330
        %v3332 = vpop.f32.mrb[0].mxu0
        %3333 = vdwg.mxu0
        %v3335 = vsel %vm953, %v2934, 0
        %v3338 = vsel %vm953, %v3012, 0
        %v3341 = vsel %vm953, %v3017, 0
        %3343 = vmatprep.subr.mxu0 0.0
        %3344 = vmatpush1.xpose.msra.mxu0 %v3338
        %3345 = vmatprep.subr.mxu0 0.0
        %3346 = vmatpush1.xpose.msra.mxu0 %v3341
        %3347 = vmatprep.subr.mxu0 0.0
        %3348 = vmatpush1.xpose.msra.mxu0 0.0
        %3349 = vmatprep.subr.mxu0 0.0
        %3350 = vmatpush1.xpose.msra.mxu0 0.0
        %3351 = vmatprep.subr.mxu0 0.0
        %3352 = vmatpush1.xpose.msra.mxu0 0.0
        %3353 = vmatprep.subr.mxu0 0.0
        %3354 = vmatpush1.xpose.msra.mxu0 0.0
        %3355 = vmatprep.subr.mxu0 0.0
        %3356 = vmatpush1.xpose.msra.mxu0 0.0
        %3357 = vmatprep.subr.mxu0 0.0
        %3358 = vmatpush1.xpose.msra.mxu0 0.0
        %3359 = vmatprep.subr.mxu0 0.0
        %3360 = vmatpush1.xpose.msra.mxu0 0.0
        %3361 = vmatprep.subr.mxu0 0.0
        %3362 = vmatpush1.xpose.msra.mxu0 0.0
        %3363 = vmatprep.subr.mxu0 0.0
        %3364 = vmatpush1.xpose.msra.mxu0 0.0
        %3365 = vmatprep.subr.mxu0 0.0
        %3366 = vmatpush1.xpose.msra.mxu0 0.0
        %3367 = vmatprep.subr.mxu0 0.0
        %3368 = vmatpush1.xpose.msra.mxu0 0.0
        %3369 = vmatprep.subr.mxu0 0.0
        %3370 = vmatpush1.xpose.msra.mxu0 0.0
        %3371 = vmatprep.subr.mxu0 0.0
        %3372 = vmatpush1.xpose.msra.mxu0 0.0
        %3373 = vmatprep.subr.mxu0 0.0
        %3374 = vmatpush1.xpose.msra.mxu0 0.0
        %3375 = vmatprep.subr.mxu0 0.0
        %3376 = vmatpush1.xpose.msra.mxu0 0.0
        %3377 = vmatprep.subr.mxu0 0.0
        %3378 = vmatpush1.xpose.msra.mxu0 0.0
        %3379 = vmatprep.subr.mxu0 0.0
        %3380 = vmatpush1.xpose.msra.mxu0 0.0
        %3381 = vmatprep.subr.mxu0 0.0
        %3382 = vmatpush1.xpose.msra.mxu0 0.0
        %3383 = vmatprep.subr.mxu0 0.0
        %3384 = vmatpush1.xpose.msra.mxu0 0.0
        %3385 = vmatprep.subr.mxu0 0.0
        %3386 = vmatpush1.xpose.msra.mxu0 0.0
        %3387 = vmatprep.subr.mxu0 0.0
        %3388 = vmatpush1.xpose.msra.mxu0 0.0
        %3389 = vmatprep.subr.mxu0 0.0
        %3390 = vmatpush1.xpose.msra.mxu0 0.0
        %3391 = vmatprep.subr.mxu0 0.0
        %3392 = vmatpush1.xpose.msra.mxu0 0.0
        %3393 = vmatprep.subr.mxu0 0.0
        %3394 = vmatpush1.xpose.msra.mxu0 0.0
        %3395 = vmatprep.subr.mxu0 0.0
        %3396 = vmatpush1.xpose.msra.mxu0 0.0
        %3397 = vmatprep.subr.mxu0 0.0
        %3398 = vmatpush1.xpose.msra.mxu0 0.0
        %3399 = vmatprep.subr.mxu0 0.0
        %3400 = vmatpush1.xpose.msra.mxu0 0.0
        %3401 = vmatprep.subr.mxu0 0.0
        %3402 = vmatpush1.xpose.msra.mxu0 0.0
        %3403 = vmatprep.subr.mxu0 0.0
        %3404 = vmatpush1.xpose.msra.mxu0 0.0
        %3405 = vmatprep.subr.mxu0 0.0
        %3406 = vmatpush1.xpose.msra.mxu0 0.0
        %3407 = vmatprep.mubr.f32.mxu0 0.0
        %3408 = vmatmul.mubr.f32.gmra.mrb[0].mxu0 %v3335
        %v3409 = vpop.f32.mrb[0].mxu0
        %v3410 = vadd.f32 0.0, %v3409
        %v3411 = vpop.f32.mrb[0].mxu0
        %3412 = vdwg.mxu0
        %v3414 = vsel %vm953, %v3087, 0
        %3416 = vmatprep.subr.mxu0 0.0
        %3417 = vmatpush1.xpose.msra.mxu0 %v3414
        %3418 = vmatprep.subr.mxu0 0.0
        %3419 = vmatpush1.xpose.msra.mxu0 0.0
        %3420 = vmatprep.subr.mxu0 0.0
        %3421 = vmatpush1.xpose.msra.mxu0 0.0
        %3422 = vmatprep.subr.mxu0 0.0
        %3423 = vmatpush1.xpose.msra.mxu0 0.0
        %3424 = vmatprep.subr.mxu0 0.0
        %3425 = vmatpush1.xpose.msra.mxu0 0.0
        %3426 = vmatprep.subr.mxu0 0.0
        %3427 = vmatpush1.xpose.msra.mxu0 0.0
        %3428 = vmatprep.subr.mxu0 0.0
        %3429 = vmatpush1.xpose.msra.mxu0 0.0
        %3430 = vmatprep.subr.mxu0 0.0
        %3431 = vmatpush1.xpose.msra.mxu0 0.0
        %3432 = vmatprep.subr.mxu0 0.0
        %3433 = vmatpush1.xpose.msra.mxu0 0.0
        %3434 = vmatprep.subr.mxu0 0.0
        %3435 = vmatpush1.xpose.msra.mxu0 0.0
        %3436 = vmatprep.subr.mxu0 0.0
        %3437 = vmatpush1.xpose.msra.mxu0 0.0
        %3438 = vmatprep.subr.mxu0 0.0
        %3439 = vmatpush1.xpose.msra.mxu0 0.0
        %3440 = vmatprep.subr.mxu0 0.0
        %3441 = vmatpush1.xpose.msra.mxu0 0.0
        %3442 = vmatprep.subr.mxu0 0.0
        %3443 = vmatpush1.xpose.msra.mxu0 0.0
        %3444 = vmatprep.subr.mxu0 0.0
        %3445 = vmatpush1.xpose.msra.mxu0 0.0
        %3446 = vmatprep.subr.mxu0 0.0
        %3447 = vmatpush1.xpose.msra.mxu0 0.0
        %3448 = vmatprep.subr.mxu0 0.0
        %3449 = vmatpush1.xpose.msra.mxu0 0.0
        %3450 = vmatprep.subr.mxu0 0.0
        %3451 = vmatpush1.xpose.msra.mxu0 0.0
        %3452 = vmatprep.subr.mxu0 0.0
        %3453 = vmatpush1.xpose.msra.mxu0 0.0
        %3454 = vmatprep.subr.mxu0 0.0
        %3455 = vmatpush1.xpose.msra.mxu0 0.0
        %3456 = vmatprep.subr.mxu0 0.0
        %3457 = vmatpush1.xpose.msra.mxu0 0.0
        %3458 = vmatprep.subr.mxu0 0.0
        %3459 = vmatpush1.xpose.msra.mxu0 0.0
        %3460 = vmatprep.subr.mxu0 0.0
        %3461 = vmatpush1.xpose.msra.mxu0 0.0
        %3462 = vmatprep.subr.mxu0 0.0
        %3463 = vmatpush1.xpose.msra.mxu0 0.0
        %3464 = vmatprep.subr.mxu0 0.0
        %3465 = vmatpush1.xpose.msra.mxu0 0.0
        %3466 = vmatprep.subr.mxu0 0.0
        %3467 = vmatpush1.xpose.msra.mxu0 0.0
        %3468 = vmatprep.subr.mxu0 0.0
        %3469 = vmatpush1.xpose.msra.mxu0 0.0
        %3470 = vmatprep.subr.mxu0 0.0
        %3471 = vmatpush1.xpose.msra.mxu0 0.0
        %3472 = vmatprep.subr.mxu0 0.0
        %3473 = vmatpush1.xpose.msra.mxu0 0.0
        %3474 = vmatprep.subr.mxu0 0.0
        %3475 = vmatpush1.xpose.msra.mxu0 0.0
        %3476 = vmatprep.subr.mxu0 0.0
        %3477 = vmatpush1.xpose.msra.mxu0 0.0
        %3478 = vmatprep.subr.mxu0 0.0
        %3479 = vmatpush1.xpose.msra.mxu0 0.0
        %3480 = vmatprep.mubr.f32.mxu0 0.0
        %3481 = vmatmul.mubr.f32.gmra.mrb[0].mxu0 %v3256
        %v3482 = vpop.f32.mrb[0].mxu0
        %v3483 = vadd.f32 0.0, %v3482
        %v3484 = vpop.f32.mrb[0].mxu0
        %3485 = vdwg.mxu0
        %v3487 = vsel %vm953, %v3092, 0
        %3489 = vmatprep.subr.mxu0 0.0
        %3490 = vmatpush1.xpose.msra.mxu0 %v3487
        %3491 = vmatprep.subr.mxu0 0.0
        %3492 = vmatpush1.xpose.msra.mxu0 0.0
        %3493 = vmatprep.subr.mxu0 0.0
        %3494 = vmatpush1.xpose.msra.mxu0 0.0
        %3495 = vmatprep.subr.mxu0 0.0
        %3496 = vmatpush1.xpose.msra.mxu0 0.0
        %3497 = vmatprep.subr.mxu0 0.0
        %3498 = vmatpush1.xpose.msra.mxu0 0.0
        %3499 = vmatprep.subr.mxu0 0.0
        %3500 = vmatpush1.xpose.msra.mxu0 0.0
        %3501 = vmatprep.subr.mxu0 0.0
        %3502 = vmatpush1.xpose.msra.mxu0 0.0
        %3503 = vmatprep.subr.mxu0 0.0
        %3504 = vmatpush1.xpose.msra.mxu0 0.0
        %3505 = vmatprep.subr.mxu0 0.0
        %3506 = vmatpush1.xpose.msra.mxu0 0.0
        %3507 = vmatprep.subr.mxu0 0.0
        %3508 = vmatpush1.xpose.msra.mxu0 0.0
        %3509 = vmatprep.subr.mxu0 0.0
        %3510 = vmatpush1.xpose.msra.mxu0 0.0
        %3511 = vmatprep.subr.mxu0 0.0
        %3512 = vmatpush1.xpose.msra.mxu0 0.0
        %3513 = vmatprep.subr.mxu0 0.0
        %3514 = vmatpush1.xpose.msra.mxu0 0.0
        %3515 = vmatprep.subr.mxu0 0.0
        %3516 = vmatpush1.xpose.msra.mxu0 0.0
        %3517 = vmatprep.subr.mxu0 0.0
        %3518 = vmatpush1.xpose.msra.mxu0 0.0
        %3519 = vmatprep.subr.mxu0 0.0
        %3520 = vmatpush1.xpose.msra.mxu0 0.0
        %3521 = vmatprep.subr.mxu0 0.0
        %3522 = vmatpush1.xpose.msra.mxu0 0.0
        %3523 = vmatprep.subr.mxu0 0.0
        %3524 = vmatpush1.xpose.msra.mxu0 0.0
        %3525 = vmatprep.subr.mxu0 0.0
        %3526 = vmatpush1.xpose.msra.mxu0 0.0
        %3527 = vmatprep.subr.mxu0 0.0
        %3528 = vmatpush1.xpose.msra.mxu0 0.0
        %3529 = vmatprep.subr.mxu0 0.0
        %3530 = vmatpush1.xpose.msra.mxu0 0.0
        %3531 = vmatprep.subr.mxu0 0.0
        %3532 = vmatpush1.xpose.msra.mxu0 0.0
        %3533 = vmatprep.subr.mxu0 0.0
        %3534 = vmatpush1.xpose.msra.mxu0 0.0
        %3535 = vmatprep.subr.mxu0 0.0
        %3536 = vmatpush1.xpose.msra.mxu0 0.0
        %3537 = vmatprep.subr.mxu0 0.0
        %3538 = vmatpush1.xpose.msra.mxu0 0.0
        %3539 = vmatprep.subr.mxu0 0.0
        %3540 = vmatpush1.xpose.msra.mxu0 0.0
        %3541 = vmatprep.subr.mxu0 0.0
        %3542 = vmatpush1.xpose.msra.mxu0 0.0
        %3543 = vmatprep.subr.mxu0 0.0
        %3544 = vmatpush1.xpose.msra.mxu0 0.0
        %3545 = vmatprep.subr.mxu0 0.0
        %3546 = vmatpush1.xpose.msra.mxu0 0.0
        %3547 = vmatprep.subr.mxu0 0.0
        %3548 = vmatpush1.xpose.msra.mxu0 0.0
        %3549 = vmatprep.subr.mxu0 0.0
        %3550 = vmatpush1.xpose.msra.mxu0 0.0
        %3551 = vmatprep.subr.mxu0 0.0
        %3552 = vmatpush1.xpose.msra.mxu0 0.0
        %3553 = vmatprep.mubr.f32.mxu0 0.0
        %3554 = vmatmul.mubr.f32.gmra.mrb[0].mxu0 %v3335
        %v3555 = vpop.f32.mrb[0].mxu0
        %v3556 = vadd.f32 0.0, %v3555
        %v3557 = vpop.f32.mrb[0].mxu0
        %3558 = vdwg.mxu0
        %v3559 = vsel %vm953, %v3331, -inf
        %3560 = vmax.xlane.f32.xlu0 %v3559
        %v3561 = vpop.xlane.xlu0 %3560
        %v3562 = vsel %vm953, %v3410, -inf
        %3563 = vmax.xlane.f32.xlu0 %v3562
        %v3564 = vpop.xlane.xlu0 %3563
        %v3565 = vsel %vm1264, %v3483, -inf
        %3566 = vmax.xlane.f32.xlu0 %v3565
        %v3567 = vpop.xlane.xlu0 %3566
        %v3568 = vsel %vm1264, %v3556, -inf
        %3569 = vmax.xlane.f32.xlu0 %v3568
        %v3570 = vpop.xlane.xlu0 %3569
        %v3571 = vmax.f32 %v3561, %v3567
        %v3572 = vmax.f32 %v3564, %v3570
        %v3573 = vsub.f32 %v3331, %v3571
        %v3574 = vsub.f32 %v3410, %v3572
        %v3575 = vmul.f32 %v3573, 1.442695
        %v3576 = vpow.pop %v3575
        %v3577 = vmul.f32 %v3574, 1.442695
        %v3578 = vpow.pop %v3577
        %v3579 = vsub.f32 %v3483, %v3571
        %v3580 = vsub.f32 %v3556, %v3572
        %v3581 = vmul.f32 %v3579, 1.442695
        %v3582 = vpow.pop %v3581
        %v3583 = vmul.f32 %v3580, 1.442695
        %v3584 = vpow.pop %v3583
        %v3585 = vsel %vm953, %v3576, 0.0
        %3586 = vadd.xlane.f32.xlu0 %v3585
        %v3587 = vpop.xlane.xlu0 %3586
        %v3588 = vsel %vm953, %v3578, 0.0
        %3589 = vadd.xlane.f32.xlu0 %v3588
        %v3590 = vpop.xlane.xlu0 %3589
        %v3591 = vsel %vm1264, %v3582, 0.0
        %3592 = vadd.xlane.f32.xlu0 %v3591
        %v3593 = vpop.xlane.xlu0 %3592
        %v3594 = vsel %vm1264, %v3584, 0.0
        %3595 = vadd.xlane.f32.xlu0 %v3594
        %v3596 = vpop.xlane.xlu0 %3595
        %v3597 = vadd.f32 %v3587, %v3593
        %v3598 = vadd.f32 %v3590, %v3596
        %v3599 = vrcp.pop %v3597
        %v3600 = vrcp.pop %v3598
        %v3601 = vmul.f32 %v3576, %v3599
        %v3602 = vmul.f32 %v3578, %v3600
        %v3603 = vmul.f32 %v3582, %v3599
        %v3604 = vmul.f32 %v3584, %v3600
        %v3606 = vsel %vm1264, %v3603, 0
        %3608 = vmatprep.subr.mxu0 0.0
        %3609 = vmatpush1.msra.mxu0 %v3247
        %3610 = vmatprep.subr.mxu0 0.0
        %3611 = vmatpush1.msra.mxu0 0.0
        %3612 = vmatprep.subr.mxu0 0.0
        %3613 = vmatpush1.msra.mxu0 0.0
        %3614 = vmatprep.subr.mxu0 0.0
        %3615 = vmatpush1.msra.mxu0 0.0
        %3616 = vmatprep.subr.mxu0 0.0
        %3617 = vmatpush1.msra.mxu0 0.0
        %3618 = vmatprep.subr.mxu0 0.0
        %3619 = vmatpush1.msra.mxu0 0.0
        %3620 = vmatprep.subr.mxu0 0.0
        %3621 = vmatpush1.msra.mxu0 0.0
        %3622 = vmatprep.subr.mxu0 0.0
        %3623 = vmatpush1.msra.mxu0 0.0
        %3624 = vmatprep.subr.mxu0 0.0
        %3625 = vmatpush1.msra.mxu0 0.0
        %3626 = vmatprep.subr.mxu0 0.0
        %3627 = vmatpush1.msra.mxu0 0.0
        %3628 = vmatprep.subr.mxu0 0.0
        %3629 = vmatpush1.msra.mxu0 0.0
        %3630 = vmatprep.subr.mxu0 0.0
        %3631 = vmatpush1.msra.mxu0 0.0
        %3632 = vmatprep.subr.mxu0 0.0
        %3633 = vmatpush1.msra.mxu0 0.0
        %3634 = vmatprep.subr.mxu0 0.0
        %3635 = vmatpush1.msra.mxu0 0.0
        %3636 = vmatprep.subr.mxu0 0.0
        %3637 = vmatpush1.msra.mxu0 0.0
        %3638 = vmatprep.subr.mxu0 0.0
        %3639 = vmatpush1.msra.mxu0 0.0
        %3640 = vmatprep.subr.mxu0 0.0
        %3641 = vmatpush1.msra.mxu0 0.0
        %3642 = vmatprep.subr.mxu0 0.0
        %3643 = vmatpush1.msra.mxu0 0.0
        %3644 = vmatprep.subr.mxu0 0.0
        %3645 = vmatpush1.msra.mxu0 0.0
        %3646 = vmatprep.subr.mxu0 0.0
        %3647 = vmatpush1.msra.mxu0 0.0
        %3648 = vmatprep.subr.mxu0 0.0
        %3649 = vmatpush1.msra.mxu0 0.0
        %3650 = vmatprep.subr.mxu0 0.0
        %3651 = vmatpush1.msra.mxu0 0.0
        %3652 = vmatprep.subr.mxu0 0.0
        %3653 = vmatpush1.msra.mxu0 0.0
        %3654 = vmatprep.subr.mxu0 0.0
        %3655 = vmatpush1.msra.mxu0 0.0
        %3656 = vmatprep.subr.mxu0 0.0
        %3657 = vmatpush1.msra.mxu0 0.0
        %3658 = vmatprep.subr.mxu0 0.0
        %3659 = vmatpush1.msra.mxu0 0.0
        %3660 = vmatprep.subr.mxu0 0.0
        %3661 = vmatpush1.msra.mxu0 0.0
        %3662 = vmatprep.subr.mxu0 0.0
        %3663 = vmatpush1.msra.mxu0 0.0
        %3664 = vmatprep.subr.mxu0 0.0
        %3665 = vmatpush1.msra.mxu0 0.0
        %3666 = vmatprep.subr.mxu0 0.0
        %3667 = vmatpush1.msra.mxu0 0.0
        %3668 = vmatprep.subr.mxu0 0.0
        %3669 = vmatpush1.msra.mxu0 0.0
        %3670 = vmatprep.subr.mxu0 0.0
        %3671 = vmatpush1.msra.mxu0 0.0
        %3672 = vmatprep.mubr.f32.mxu0 0.0
        %3673 = vmatmul.mubr.f32.gmra.mrb[0].mxu0 %v3606
        %v3674 = vpop.f32.mrb[0].mxu0
        %v3675 = vadd.f32 0.0, %v3674
        %v3676 = vpop.f32.mrb[0].mxu0
        %3677 = vdwg.mxu0
        %v3679 = vsel %vm1264, %v3604, 0
        %3681 = vmatprep.subr.mxu0 0.0
        %3682 = vmatpush1.msra.mxu0 %v3252
        %3683 = vmatprep.subr.mxu0 0.0
        %3684 = vmatpush1.msra.mxu0 0.0
        %3685 = vmatprep.subr.mxu0 0.0
        %3686 = vmatpush1.msra.mxu0 0.0
        %3687 = vmatprep.subr.mxu0 0.0
        %3688 = vmatpush1.msra.mxu0 0.0
        %3689 = vmatprep.subr.mxu0 0.0
        %3690 = vmatpush1.msra.mxu0 0.0
        %3691 = vmatprep.subr.mxu0 0.0
        %3692 = vmatpush1.msra.mxu0 0.0
        %3693 = vmatprep.subr.mxu0 0.0
        %3694 = vmatpush1.msra.mxu0 0.0
        %3695 = vmatprep.subr.mxu0 0.0
        %3696 = vmatpush1.msra.mxu0 0.0
        %3697 = vmatprep.subr.mxu0 0.0
        %3698 = vmatpush1.msra.mxu0 0.0
        %3699 = vmatprep.subr.mxu0 0.0
        %3700 = vmatpush1.msra.mxu0 0.0
        %3701 = vmatprep.subr.mxu0 0.0
        %3702 = vmatpush1.msra.mxu0 0.0
        %3703 = vmatprep.subr.mxu0 0.0
        %3704 = vmatpush1.msra.mxu0 0.0
        %3705 = vmatprep.subr.mxu0 0.0
        %3706 = vmatpush1.msra.mxu0 0.0
        %3707 = vmatprep.subr.mxu0 0.0
        %3708 = vmatpush1.msra.mxu0 0.0
        %3709 = vmatprep.subr.mxu0 0.0
        %3710 = vmatpush1.msra.mxu0 0.0
        %3711 = vmatprep.subr.mxu0 0.0
        %3712 = vmatpush1.msra.mxu0 0.0
        %3713 = vmatprep.subr.mxu0 0.0
        %3714 = vmatpush1.msra.mxu0 0.0
        %3715 = vmatprep.subr.mxu0 0.0
        %3716 = vmatpush1.msra.mxu0 0.0
        %3717 = vmatprep.subr.mxu0 0.0
        %3718 = vmatpush1.msra.mxu0 0.0
        %3719 = vmatprep.subr.mxu0 0.0
        %3720 = vmatpush1.msra.mxu0 0.0
        %3721 = vmatprep.subr.mxu0 0.0
        %3722 = vmatpush1.msra.mxu0 0.0
        %3723 = vmatprep.subr.mxu0 0.0
        %3724 = vmatpush1.msra.mxu0 0.0
        %3725 = vmatprep.subr.mxu0 0.0
        %3726 = vmatpush1.msra.mxu0 0.0
        %3727 = vmatprep.subr.mxu0 0.0
        %3728 = vmatpush1.msra.mxu0 0.0
        %3729 = vmatprep.subr.mxu0 0.0
        %3730 = vmatpush1.msra.mxu0 0.0
        %3731 = vmatprep.subr.mxu0 0.0
        %3732 = vmatpush1.msra.mxu0 0.0
        %3733 = vmatprep.subr.mxu0 0.0
        %3734 = vmatpush1.msra.mxu0 0.0
        %3735 = vmatprep.subr.mxu0 0.0
        %3736 = vmatpush1.msra.mxu0 0.0
        %3737 = vmatprep.subr.mxu0 0.0
        %3738 = vmatpush1.msra.mxu0 0.0
        %3739 = vmatprep.subr.mxu0 0.0
        %3740 = vmatpush1.msra.mxu0 0.0
        %3741 = vmatprep.subr.mxu0 0.0
        %3742 = vmatpush1.msra.mxu0 0.0
        %3743 = vmatprep.subr.mxu0 0.0
        %3744 = vmatpush1.msra.mxu0 0.0
        %3745 = vmatprep.mubr.f32.mxu0 0.0
        %3746 = vmatmul.mubr.f32.gmra.mrb[0].mxu0 %v3679
        %v3747 = vpop.f32.mrb[0].mxu0
        %v3748 = vadd.f32 0.0, %v3747
        %v3749 = vpop.f32.mrb[0].mxu0
        %3750 = vdwg.mxu0
        %v3752 = vsel %vm953, %v3601, 0
        %3754 = vmatprep.subr.mxu0 0.0
        %3755 = vmatpush1.msra.mxu0 %v3162
        %3756 = vmatprep.subr.mxu0 0.0
        %3757 = vmatpush1.msra.mxu0 %v3167
        %3758 = vmatprep.subr.mxu0 0.0
        %3759 = vmatpush1.msra.mxu0 0.0
        %3760 = vmatprep.subr.mxu0 0.0
        %3761 = vmatpush1.msra.mxu0 0.0
        %3762 = vmatprep.subr.mxu0 0.0
        %3763 = vmatpush1.msra.mxu0 0.0
        %3764 = vmatprep.subr.mxu0 0.0
        %3765 = vmatpush1.msra.mxu0 0.0
        %3766 = vmatprep.subr.mxu0 0.0
        %3767 = vmatpush1.msra.mxu0 0.0
        %3768 = vmatprep.subr.mxu0 0.0
        %3769 = vmatpush1.msra.mxu0 0.0
        %3770 = vmatprep.subr.mxu0 0.0
        %3771 = vmatpush1.msra.mxu0 0.0
        %3772 = vmatprep.subr.mxu0 0.0
        %3773 = vmatpush1.msra.mxu0 0.0
        %3774 = vmatprep.subr.mxu0 0.0
        %3775 = vmatpush1.msra.mxu0 0.0
        %3776 = vmatprep.subr.mxu0 0.0
        %3777 = vmatpush1.msra.mxu0 0.0
        %3778 = vmatprep.subr.mxu0 0.0
        %3779 = vmatpush1.msra.mxu0 0.0
        %3780 = vmatprep.subr.mxu0 0.0
        %3781 = vmatpush1.msra.mxu0 0.0
        %3782 = vmatprep.subr.mxu0 0.0
        %3783 = vmatpush1.msra.mxu0 0.0
        %3784 = vmatprep.subr.mxu0 0.0
        %3785 = vmatpush1.msra.mxu0 0.0
        %3786 = vmatprep.subr.mxu0 0.0
        %3787 = vmatpush1.msra.mxu0 0.0
        %3788 = vmatprep.subr.mxu0 0.0
        %3789 = vmatpush1.msra.mxu0 0.0
        %3790 = vmatprep.subr.mxu0 0.0
        %3791 = vmatpush1.msra.mxu0 0.0
        %3792 = vmatprep.subr.mxu0 0.0
        %3793 = vmatpush1.msra.mxu0 0.0
        %3794 = vmatprep.subr.mxu0 0.0
        %3795 = vmatpush1.msra.mxu0 0.0
        %3796 = vmatprep.subr.mxu0 0.0
        %3797 = vmatpush1.msra.mxu0 0.0
        %3798 = vmatprep.subr.mxu0 0.0
        %3799 = vmatpush1.msra.mxu0 0.0
        %3800 = vmatprep.subr.mxu0 0.0
        %3801 = vmatpush1.msra.mxu0 0.0
        %3802 = vmatprep.subr.mxu0 0.0
        %3803 = vmatpush1.msra.mxu0 0.0
        %3804 = vmatprep.subr.mxu0 0.0
        %3805 = vmatpush1.msra.mxu0 0.0
        %3806 = vmatprep.subr.mxu0 0.0
        %3807 = vmatpush1.msra.mxu0 0.0
        %3808 = vmatprep.subr.mxu0 0.0
        %3809 = vmatpush1.msra.mxu0 0.0
        %3810 = vmatprep.subr.mxu0 0.0
        %3811 = vmatpush1.msra.mxu0 0.0
        %3812 = vmatprep.subr.mxu0 0.0
        %3813 = vmatpush1.msra.mxu0 0.0
        %3814 = vmatprep.subr.mxu0 0.0
        %3815 = vmatpush1.msra.mxu0 0.0
        %3816 = vmatprep.subr.mxu0 0.0
        %3817 = vmatpush1.msra.mxu0 0.0
        %3818 = vmatprep.mubr.f32.mxu0 0.0
        %3819 = vmatmul.mubr.f32.gmra.mrb[0].mxu0 %v3752
        %v3820 = vpop.f32.mrb[0].mxu0
        %v3821 = vadd.f32 %v3675, %v3820
        %v3822 = vpop.f32.mrb[0].mxu0
        %3823 = vdwg.mxu0
        %v3825 = vsel %vm953, %v3602, 0
        %3827 = vmatprep.subr.mxu0 0.0
        %3828 = vmatpush1.msra.mxu0 %v3172
        %3829 = vmatprep.subr.mxu0 0.0
        %3830 = vmatpush1.msra.mxu0 %v3177
        %3831 = vmatprep.subr.mxu0 0.0
        %3832 = vmatpush1.msra.mxu0 0.0
        %3833 = vmatprep.subr.mxu0 0.0
        %3834 = vmatpush1.msra.mxu0 0.0
        %3835 = vmatprep.subr.mxu0 0.0
        %3836 = vmatpush1.msra.mxu0 0.0
        %3837 = vmatprep.subr.mxu0 0.0
        %3838 = vmatpush1.msra.mxu0 0.0
        %3839 = vmatprep.subr.mxu0 0.0
        %3840 = vmatpush1.msra.mxu0 0.0
        %3841 = vmatprep.subr.mxu0 0.0
        %3842 = vmatpush1.msra.mxu0 0.0
        %3843 = vmatprep.subr.mxu0 0.0
        %3844 = vmatpush1.msra.mxu0 0.0
        %3845 = vmatprep.subr.mxu0 0.0
        %3846 = vmatpush1.msra.mxu0 0.0
        %3847 = vmatprep.subr.mxu0 0.0
        %3848 = vmatpush1.msra.mxu0 0.0
        %3849 = vmatprep.subr.mxu0 0.0
        %3850 = vmatpush1.msra.mxu0 0.0
        %3851 = vmatprep.subr.mxu0 0.0
        %3852 = vmatpush1.msra.mxu0 0.0
        %3853 = vmatprep.subr.mxu0 0.0
        %3854 = vmatpush1.msra.mxu0 0.0
        %3855 = vmatprep.subr.mxu0 0.0
        %3856 = vmatpush1.msra.mxu0 0.0
        %3857 = vmatprep.subr.mxu0 0.0
        %3858 = vmatpush1.msra.mxu0 0.0
        %3859 = vmatprep.subr.mxu0 0.0
        %3860 = vmatpush1.msra.mxu0 0.0
        %3861 = vmatprep.subr.mxu0 0.0
        %3862 = vmatpush1.msra.mxu0 0.0
        %3863 = vmatprep.subr.mxu0 0.0
        %3864 = vmatpush1.msra.mxu0 0.0
        %3865 = vmatprep.subr.mxu0 0.0
        %3866 = vmatpush1.msra.mxu0 0.0
        %3867 = vmatprep.subr.mxu0 0.0
        %3868 = vmatpush1.msra.mxu0 0.0
        %3869 = vmatprep.subr.mxu0 0.0
        %3870 = vmatpush1.msra.mxu0 0.0
        %3871 = vmatprep.subr.mxu0 0.0
        %3872 = vmatpush1.msra.mxu0 0.0
        %3873 = vmatprep.subr.mxu0 0.0
        %3874 = vmatpush1.msra.mxu0 0.0
        %3875 = vmatprep.subr.mxu0 0.0
        %3876 = vmatpush1.msra.mxu0 0.0
        %3877 = vmatprep.subr.mxu0 0.0
        %3878 = vmatpush1.msra.mxu0 0.0
        %3879 = vmatprep.subr.mxu0 0.0
        %3880 = vmatpush1.msra.mxu0 0.0
        %3881 = vmatprep.subr.mxu0 0.0
        %3882 = vmatpush1.msra.mxu0 0.0
        %3883 = vmatprep.subr.mxu0 0.0
        %3884 = vmatpush1.msra.mxu0 0.0
        %3885 = vmatprep.subr.mxu0 0.0
        %3886 = vmatpush1.msra.mxu0 0.0
        %3887 = vmatprep.subr.mxu0 0.0
        %3888 = vmatpush1.msra.mxu0 0.0
        %3889 = vmatprep.subr.mxu0 0.0
        %3890 = vmatpush1.msra.mxu0 0.0
        %3891 = vmatprep.mubr.f32.mxu0 0.0
        %3892 = vmatmul.mubr.f32.gmra.mrb[0].mxu0 %v3825
        %v3893 = vpop.f32.mrb[0].mxu0
        %v3894 = vadd.f32 %v3748, %v3893
        %v3895 = vpop.f32.mrb[0].mxu0
        %3896 = vdwg.mxu0
        %v3898 = vsel %vm953, %v3821, 0
        %v3901 = vsel %vm953, %v3894, 0
        %3903 = vmatprep.subr.mxu0 0.0
        %3904 = vmatpush1.msra.mxu0 %v2856
        %3905 = vmatprep.subr.mxu0 0.0
        %3906 = vmatpush1.msra.mxu0 %v2857
        %3907 = vmatprep.subr.mxu0 0.0
        %3908 = vmatpush1.msra.mxu0 0.0
        %3909 = vmatprep.subr.mxu0 0.0
        %3910 = vmatpush1.msra.mxu0 0.0
        %3911 = vmatprep.subr.mxu0 0.0
        %3912 = vmatpush1.msra.mxu0 0.0
        %3913 = vmatprep.subr.mxu0 0.0
        %3914 = vmatpush1.msra.mxu0 0.0
        %3915 = vmatprep.subr.mxu0 0.0
        %3916 = vmatpush1.msra.mxu0 0.0
        %3917 = vmatprep.subr.mxu0 0.0
        %3918 = vmatpush1.msra.mxu0 0.0
        %3919 = vmatprep.subr.mxu0 0.0
        %3920 = vmatpush1.msra.mxu0 0.0
        %3921 = vmatprep.subr.mxu0 0.0
        %3922 = vmatpush1.msra.mxu0 0.0
        %3923 = vmatprep.subr.mxu0 0.0
        %3924 = vmatpush1.msra.mxu0 0.0
        %3925 = vmatprep.subr.mxu0 0.0
        %3926 = vmatpush1.msra.mxu0 0.0
        %3927 = vmatprep.subr.mxu0 0.0
        %3928 = vmatpush1.msra.mxu0 0.0
        %3929 = vmatprep.subr.mxu0 0.0
        %3930 = vmatpush1.msra.mxu0 0.0
        %3931 = vmatprep.subr.mxu0 0.0
        %3932 = vmatpush1.msra.mxu0 0.0
        %3933 = vmatprep.subr.mxu0 0.0
        %3934 = vmatpush1.msra.mxu0 0.0
        %3935 = vmatprep.subr.mxu0 0.0
        %3936 = vmatpush1.msra.mxu0 0.0
        %3937 = vmatprep.subr.mxu0 0.0
        %3938 = vmatpush1.msra.mxu0 0.0
        %3939 = vmatprep.subr.mxu0 0.0
        %3940 = vmatpush1.msra.mxu0 0.0
        %3941 = vmatprep.subr.mxu0 0.0
        %3942 = vmatpush1.msra.mxu0 0.0
        %3943 = vmatprep.subr.mxu0 0.0
        %3944 = vmatpush1.msra.mxu0 0.0
        %3945 = vmatprep.subr.mxu0 0.0
        %3946 = vmatpush1.msra.mxu0 0.0
        %3947 = vmatprep.subr.mxu0 0.0
        %3948 = vmatpush1.msra.mxu0 0.0
        %3949 = vmatprep.subr.mxu0 0.0
        %3950 = vmatpush1.msra.mxu0 0.0
        %3951 = vmatprep.subr.mxu0 0.0
        %3952 = vmatpush1.msra.mxu0 0.0
        %3953 = vmatprep.subr.mxu0 0.0
        %3954 = vmatpush1.msra.mxu0 0.0
        %3955 = vmatprep.subr.mxu0 0.0
        %3956 = vmatpush1.msra.mxu0 0.0
        %3957 = vmatprep.subr.mxu0 0.0
        %3958 = vmatpush1.msra.mxu0 0.0
        %3959 = vmatprep.subr.mxu0 0.0
        %3960 = vmatpush1.msra.mxu0 0.0
        %3961 = vmatprep.subr.mxu0 0.0
        %3962 = vmatpush1.msra.mxu0 0.0
        %3963 = vmatprep.subr.mxu0 0.0
        %3964 = vmatpush1.msra.mxu0 0.0
        %3965 = vmatprep.subr.mxu0 0.0
        %3966 = vmatpush1.msra.mxu0 0.0
        %3967 = vmatprep.mubr.f32.mxu0 0.0
        %3968 = vmatmul.mubr.f32.gmra.mrb[0].mxu0 %v3898
        %v3969 = vpop.f32.mrb[0].mxu0
        %v3970 = vadd.f32 0.0, %v3969
        %v3971 = vpop.f32.mrb[0].mxu0
        %3972 = vmatprep.mubr.f32.mxu0 0.0
        %3973 = vmatmul.mubr.f32.gmra.mrb[0].mxu0 %v3901
        %v3974 = vpop.f32.mrb[0].mxu0
        %v3975 = vadd.f32 0.0, %v3974
        %v3976 = vpop.f32.mrb[0].mxu0
        %3977 = vdwg.mxu0
        %v3978 = vadd.f32 %v2820, %v3970
        %v3979 = vadd.f32 %v2825, %v3975
        %s3980 = scalar_lea.vmem %s6, 192
        %v3981 = vld [vmem:[%s3980] sm:$0xff]
        %v3982 = vld [vmem:[%s3980 + $0x8] sm:$0xff]
        %v3983 = vld [vmem:[%s3980 + $0x10] sm:$0xff]
        %v3984 = vld [vmem:[%s3980 + $0x18] sm:$0xff]
        %v3985 = vld [vmem:[%s3980 + $0x20] sm:$0xff]
        %v3986 = vld [vmem:[%s3980 + $0x28] sm:$0xff]
        %v3987 = vld [vmem:[%s3980 + $0x30] sm:$0xff]
        %v3988 = vld [vmem:[%s3980 + $0x38] sm:$0xff]
        %s3989 = scalar_lea.vmem %s7, 192
        %v3990 = vld [vmem:[%s3989] sm:$0xff]
        %v3991 = vld [vmem:[%s3989 + $0x8] sm:$0xff]
        %v3992 = vld [vmem:[%s3989 + $0x10] sm:$0xff]
        %v3993 = vld [vmem:[%s3989 + $0x18] sm:$0xff]
        %v3994 = vld [vmem:[%s3989 + $0x20] sm:$0xff]
        %v3995 = vld [vmem:[%s3989 + $0x28] sm:$0xff]
        %v3996 = vld [vmem:[%s3989 + $0x30] sm:$0xff]
        %v3997 = vld [vmem:[%s3989 + $0x38] sm:$0xff]
        %s3998 = scalar_lea.vmem %s8, 192
        %v3999 = vld [vmem:[%s3998] sm:$0xff]
        %v4000 = vld [vmem:[%s3998 + $0x8] sm:$0xff]
        %v4001 = vld [vmem:[%s3998 + $0x10] sm:$0xff]
        %v4002 = vld [vmem:[%s3998 + $0x18] sm:$0xff]
        %v4003 = vld [vmem:[%s3998 + $0x20] sm:$0xff]
        %v4004 = vld [vmem:[%s3998 + $0x28] sm:$0xff]
        %v4005 = vld [vmem:[%s3998 + $0x30] sm:$0xff]
        %v4006 = vld [vmem:[%s3998 + $0x38] sm:$0xff]
        %s4007 = scalar_lea.vmem %s9, 48
        %v4008 = vld [vmem:[%s4007] sm:$0xff]
        %v4009 = vld [vmem:[%s4007 + $0x8] sm:$0xff]
        %4010 = vmatprep.subr.mxu0 0.0
        %4011 = vmatpush1.msra.mxu0 %v3981
        %4012 = vmatprep.subr.mxu0 0.0
        %4013 = vmatpush1.msra.mxu0 %v3982
        %4014 = vmatprep.subr.mxu0 0.0
        %4015 = vmatpush1.msra.mxu0 %v3983
        %4016 = vmatprep.subr.mxu0 0.0
        %4017 = vmatpush1.msra.mxu0 %v3984
        %4018 = vmatprep.subr.mxu0 0.0
        %4019 = vmatpush1.msra.mxu0 %v3985
        %4020 = vmatprep.subr.mxu0 0.0
        %4021 = vmatpush1.msra.mxu0 %v3986
        %4022 = vmatprep.subr.mxu0 0.0
        %4023 = vmatpush1.msra.mxu0 %v3987
        %4024 = vmatprep.subr.mxu0 0.0
        %4025 = vmatpush1.msra.mxu0 %v3988
        %4026 = vmatprep.subr.mxu0 0.0
        %4027 = vmatpush1.msra.mxu0 0.0
        %4028 = vmatprep.subr.mxu0 0.0
        %4029 = vmatpush1.msra.mxu0 0.0
        %4030 = vmatprep.subr.mxu0 0.0
        %4031 = vmatpush1.msra.mxu0 0.0
        %4032 = vmatprep.subr.mxu0 0.0
        %4033 = vmatpush1.msra.mxu0 0.0
        %4034 = vmatprep.subr.mxu0 0.0
        %4035 = vmatpush1.msra.mxu0 0.0
        %4036 = vmatprep.subr.mxu0 0.0
        %4037 = vmatpush1.msra.mxu0 0.0
        %4038 = vmatprep.subr.mxu0 0.0
        %4039 = vmatpush1.msra.mxu0 0.0
        %4040 = vmatprep.subr.mxu0 0.0
        %4041 = vmatpush1.msra.mxu0 0.0
        %4042 = vmatprep.subr.mxu0 0.0
        %4043 = vmatpush1.msra.mxu0 0.0
        %4044 = vmatprep.subr.mxu0 0.0
        %4045 = vmatpush1.msra.mxu0 0.0
        %4046 = vmatprep.subr.mxu0 0.0
        %4047 = vmatpush1.msra.mxu0 0.0
        %4048 = vmatprep.subr.mxu0 0.0
        %4049 = vmatpush1.msra.mxu0 0.0
        %4050 = vmatprep.subr.mxu0 0.0
        %4051 = vmatpush1.msra.mxu0 0.0
        %4052 = vmatprep.subr.mxu0 0.0
        %4053 = vmatpush1.msra.mxu0 0.0
        %4054 = vmatprep.subr.mxu0 0.0
        %4055 = vmatpush1.msra.mxu0 0.0
        %4056 = vmatprep.subr.mxu0 0.0
        %4057 = vmatpush1.msra.mxu0 0.0
        %4058 = vmatprep.subr.mxu0 0.0
        %4059 = vmatpush1.msra.mxu0 0.0
        %4060 = vmatprep.subr.mxu0 0.0
        %4061 = vmatpush1.msra.mxu0 0.0
        %4062 = vmatprep.subr.mxu0 0.0
        %4063 = vmatpush1.msra.mxu0 0.0
        %4064 = vmatprep.subr.mxu0 0.0
        %4065 = vmatpush1.msra.mxu0 0.0
        %4066 = vmatprep.subr.mxu0 0.0
        %4067 = vmatpush1.msra.mxu0 0.0
        %4068 = vmatprep.subr.mxu0 0.0
        %4069 = vmatpush1.msra.mxu0 0.0
        %4070 = vmatprep.subr.mxu0 0.0
        %4071 = vmatpush1.msra.mxu0 0.0
        %4072 = vmatprep.subr.mxu0 0.0
        %4073 = vmatpush1.msra.mxu0 0.0
        %4074 = vmatprep.mubr.f32.mxu0 0.0
        %4075 = vmatmul.mubr.f32.gmra.mrb[0].mxu0 %v539
        %v4076 = vpop.f32.mrb[0].mxu0
        %v4077 = vadd.f32 0.0, %v4076
        %v4078 = vpop.f32.mrb[0].mxu0
        %4079 = vmatprep.mubr.f32.mxu0 0.0
        %4080 = vmatmul.mubr.f32.gmra.mrb[0].mxu0 %v542
        %v4081 = vpop.f32.mrb[0].mxu0
        %v4082 = vadd.f32 0.0, %v4081
        %v4083 = vpop.f32.mrb[0].mxu0
        %4084 = vdwg.mxu0
        %v4085 = vmul.f32 %v4077, 0.25
        %v4086 = vmul.f32 %v4082, 0.25
        %4087 = vmatprep.subr.mxu0 0.0
        %4088 = vmatpush1.msra.mxu0 %v3990
        %4089 = vmatprep.subr.mxu0 0.0
        %4090 = vmatpush1.msra.mxu0 %v3991
        %4091 = vmatprep.subr.mxu0 0.0
        %4092 = vmatpush1.msra.mxu0 %v3992
        %4093 = vmatprep.subr.mxu0 0.0
        %4094 = vmatpush1.msra.mxu0 %v3993
        %4095 = vmatprep.subr.mxu0 0.0
        %4096 = vmatpush1.msra.mxu0 %v3994
        %4097 = vmatprep.subr.mxu0 0.0
        %4098 = vmatpush1.msra.mxu0 %v3995
        %4099 = vmatprep.subr.mxu0 0.0
        %4100 = vmatpush1.msra.mxu0 %v3996
        %4101 = vmatprep.subr.mxu0 0.0
        %4102 = vmatpush1.msra.mxu0 %v3997
        %4103 = vmatprep.subr.mxu0 0.0
        %4104 = vmatpush1.msra.mxu0 0.0
        %4105 = vmatprep.subr.mxu0 0.0
        %4106 = vmatpush1.msra.mxu0 0.0
        %4107 = vmatprep.subr.mxu0 0.0
        %4108 = vmatpush1.msra.mxu0 0.0
        %4109 = vmatprep.subr.mxu0 0.0
        %4110 = vmatpush1.msra.mxu0 0.0
        %4111 = vmatprep.subr.mxu0 0.0
        %4112 = vmatpush1.msra.mxu0 0.0
        %4113 = vmatprep.subr.mxu0 0.0
        %4114 = vmatpush1.msra.mxu0 0.0
        %4115 = vmatprep.subr.mxu0 0.0
        %4116 = vmatpush1.msra.mxu0 0.0
        %4117 = vmatprep.subr.mxu0 0.0
        %4118 = vmatpush1.msra.mxu0 0.0
        %4119 = vmatprep.subr.mxu0 0.0
        %4120 = vmatpush1.msra.mxu0 0.0
        %4121 = vmatprep.subr.mxu0 0.0
        %4122 = vmatpush1.msra.mxu0 0.0
        %4123 = vmatprep.subr.mxu0 0.0
        %4124 = vmatpush1.msra.mxu0 0.0
        %4125 = vmatprep.subr.mxu0 0.0
        %4126 = vmatpush1.msra.mxu0 0.0
        %4127 = vmatprep.subr.mxu0 0.0
        %4128 = vmatpush1.msra.mxu0 0.0
        %4129 = vmatprep.subr.mxu0 0.0
        %4130 = vmatpush1.msra.mxu0 0.0
        %4131 = vmatprep.subr.mxu0 0.0
        %4132 = vmatpush1.msra.mxu0 0.0
        %4133 = vmatprep.subr.mxu0 0.0
        %4134 = vmatpush1.msra.mxu0 0.0
        %4135 = vmatprep.subr.mxu0 0.0
        %4136 = vmatpush1.msra.mxu0 0.0
        %4137 = vmatprep.subr.mxu0 0.0
        %4138 = vmatpush1.msra.mxu0 0.0
        %4139 = vmatprep.subr.mxu0 0.0
        %4140 = vmatpush1.msra.mxu0 0.0
        %4141 = vmatprep.subr.mxu0 0.0
        %4142 = vmatpush1.msra.mxu0 0.0
        %4143 = vmatprep.subr.mxu0 0.0
        %4144 = vmatpush1.msra.mxu0 0.0
        %4145 = vmatprep.subr.mxu0 0.0
        %4146 = vmatpush1.msra.mxu0 0.0
        %4147 = vmatprep.subr.mxu0 0.0
        %4148 = vmatpush1.msra.mxu0 0.0
        %4149 = vmatprep.subr.mxu0 0.0
        %4150 = vmatpush1.msra.mxu0 0.0
        %4151 = vmatprep.mubr.f32.mxu0 0.0
        %4152 = vmatmul.mubr.f32.gmra.mrb[0].mxu0 %v622
        %v4153 = vpop.f32.mrb[0].mxu0
        %v4154 = vadd.f32 0.0, %v4153
        %v4155 = vpop.f32.mrb[0].mxu0
        %4156 = vmatprep.mubr.f32.mxu0 0.0
        %4157 = vmatmul.mubr.f32.gmra.mrb[0].mxu0 %v625
        %v4158 = vpop.f32.mrb[0].mxu0
        %v4159 = vadd.f32 0.0, %v4158
        %v4160 = vpop.f32.mrb[0].mxu0
        %4161 = vmatprep.mubr.f32.mxu0 0.0
        %4162 = vmatmul.mubr.f32.gmra.mrb[0].mxu0 %v628
        %v4163 = vpop.f32.mrb[0].mxu0
        %v4164 = vadd.f32 0.0, %v4163
        %v4165 = vpop.f32.mrb[0].mxu0
        %4166 = vmatprep.mubr.f32.mxu0 0.0
        %4167 = vmatmul.mubr.f32.gmra.mrb[0].mxu0 %v631
        %v4168 = vpop.f32.mrb[0].mxu0
        %v4169 = vadd.f32 0.0, %v4168
        %v4170 = vpop.f32.mrb[0].mxu0
        %4171 = vdwg.mxu0
        %4172 = vmatprep.subr.mxu0 0.0
        %4173 = vmatpush1.msra.mxu0 %v3990
        %4174 = vmatprep.subr.mxu0 0.0
        %4175 = vmatpush1.msra.mxu0 %v3991
        %4176 = vmatprep.subr.mxu0 0.0
        %4177 = vmatpush1.msra.mxu0 %v3992
        %4178 = vmatprep.subr.mxu0 0.0
        %4179 = vmatpush1.msra.mxu0 %v3993
        %4180 = vmatprep.subr.mxu0 0.0
        %4181 = vmatpush1.msra.mxu0 %v3994
        %4182 = vmatprep.subr.mxu0 0.0
        %4183 = vmatpush1.msra.mxu0 %v3995
        %4184 = vmatprep.subr.mxu0 0.0
        %4185 = vmatpush1.msra.mxu0 %v3996
        %4186 = vmatprep.subr.mxu0 0.0
        %4187 = vmatpush1.msra.mxu0 %v3997
        %4188 = vmatprep.subr.mxu0 0.0
        %4189 = vmatpush1.msra.mxu0 0.0
        %4190 = vmatprep.subr.mxu0 0.0
        %4191 = vmatpush1.msra.mxu0 0.0
        %4192 = vmatprep.subr.mxu0 0.0
        %4193 = vmatpush1.msra.mxu0 0.0
        %4194 = vmatprep.subr.mxu0 0.0
        %4195 = vmatpush1.msra.mxu0 0.0
        %4196 = vmatprep.subr.mxu0 0.0
        %4197 = vmatpush1.msra.mxu0 0.0
        %4198 = vmatprep.subr.mxu0 0.0
        %4199 = vmatpush1.msra.mxu0 0.0
        %4200 = vmatprep.subr.mxu0 0.0
        %4201 = vmatpush1.msra.mxu0 0.0
        %4202 = vmatprep.subr.mxu0 0.0
        %4203 = vmatpush1.msra.mxu0 0.0
        %4204 = vmatprep.subr.mxu0 0.0
        %4205 = vmatpush1.msra.mxu0 0.0
        %4206 = vmatprep.subr.mxu0 0.0
        %4207 = vmatpush1.msra.mxu0 0.0
        %4208 = vmatprep.subr.mxu0 0.0
        %4209 = vmatpush1.msra.mxu0 0.0
        %4210 = vmatprep.subr.mxu0 0.0
        %4211 = vmatpush1.msra.mxu0 0.0
        %4212 = vmatprep.subr.mxu0 0.0
        %4213 = vmatpush1.msra.mxu0 0.0
        %4214 = vmatprep.subr.mxu0 0.0
        %4215 = vmatpush1.msra.mxu0 0.0
        %4216 = vmatprep.subr.mxu0 0.0
        %4217 = vmatpush1.msra.mxu0 0.0
        %4218 = vmatprep.subr.mxu0 0.0
        %4219 = vmatpush1.msra.mxu0 0.0
        %4220 = vmatprep.subr.mxu0 0.0
        %4221 = vmatpush1.msra.mxu0 0.0
        %4222 = vmatprep.subr.mxu0 0.0
        %4223 = vmatpush1.msra.mxu0 0.0
        %4224 = vmatprep.subr.mxu0 0.0
        %4225 = vmatpush1.msra.mxu0 0.0
        %4226 = vmatprep.subr.mxu0 0.0
        %4227 = vmatpush1.msra.mxu0 0.0
        %4228 = vmatprep.subr.mxu0 0.0
        %4229 = vmatpush1.msra.mxu0 0.0
        %4230 = vmatprep.subr.mxu0 0.0
        %4231 = vmatpush1.msra.mxu0 0.0
        %4232 = vmatprep.subr.mxu0 0.0
        %4233 = vmatpush1.msra.mxu0 0.0
        %4234 = vmatprep.subr.mxu0 0.0
        %4235 = vmatpush1.msra.mxu0 0.0
        %4236 = vmatprep.mubr.f32.mxu0 0.0
        %4237 = vmatmul.mubr.f32.gmra.mrb[0].mxu0 %v539
        %v4238 = vpop.f32.mrb[0].mxu0
        %v4239 = vadd.f32 0.0, %v4238
        %v4240 = vpop.f32.mrb[0].mxu0
        %4241 = vmatprep.mubr.f32.mxu0 0.0
        %4242 = vmatmul.mubr.f32.gmra.mrb[0].mxu0 %v542
        %v4243 = vpop.f32.mrb[0].mxu0
        %v4244 = vadd.f32 0.0, %v4243
        %v4245 = vpop.f32.mrb[0].mxu0
        %4246 = vdwg.mxu0
        %4247 = vmatprep.subr.mxu0 0.0
        %4248 = vmatpush1.msra.mxu0 %v3999
        %4249 = vmatprep.subr.mxu0 0.0
        %4250 = vmatpush1.msra.mxu0 %v4000
        %4251 = vmatprep.subr.mxu0 0.0
        %4252 = vmatpush1.msra.mxu0 %v4001
        %4253 = vmatprep.subr.mxu0 0.0
        %4254 = vmatpush1.msra.mxu0 %v4002
        %4255 = vmatprep.subr.mxu0 0.0
        %4256 = vmatpush1.msra.mxu0 %v4003
        %4257 = vmatprep.subr.mxu0 0.0
        %4258 = vmatpush1.msra.mxu0 %v4004
        %4259 = vmatprep.subr.mxu0 0.0
        %4260 = vmatpush1.msra.mxu0 %v4005
        %4261 = vmatprep.subr.mxu0 0.0
        %4262 = vmatpush1.msra.mxu0 %v4006
        %4263 = vmatprep.subr.mxu0 0.0
        %4264 = vmatpush1.msra.mxu0 0.0
        %4265 = vmatprep.subr.mxu0 0.0
        %4266 = vmatpush1.msra.mxu0 0.0
        %4267 = vmatprep.subr.mxu0 0.0
        %4268 = vmatpush1.msra.mxu0 0.0
        %4269 = vmatprep.subr.mxu0 0.0
        %4270 = vmatpush1.msra.mxu0 0.0
        %4271 = vmatprep.subr.mxu0 0.0
        %4272 = vmatpush1.msra.mxu0 0.0
        %4273 = vmatprep.subr.mxu0 0.0
        %4274 = vmatpush1.msra.mxu0 0.0
        %4275 = vmatprep.subr.mxu0 0.0
        %4276 = vmatpush1.msra.mxu0 0.0
        %4277 = vmatprep.subr.mxu0 0.0
        %4278 = vmatpush1.msra.mxu0 0.0
        %4279 = vmatprep.subr.mxu0 0.0
        %4280 = vmatpush1.msra.mxu0 0.0
        %4281 = vmatprep.subr.mxu0 0.0
        %4282 = vmatpush1.msra.mxu0 0.0
        %4283 = vmatprep.subr.mxu0 0.0
        %4284 = vmatpush1.msra.mxu0 0.0
        %4285 = vmatprep.subr.mxu0 0.0
        %4286 = vmatpush1.msra.mxu0 0.0
        %4287 = vmatprep.subr.mxu0 0.0
        %4288 = vmatpush1.msra.mxu0 0.0
        %4289 = vmatprep.subr.mxu0 0.0
        %4290 = vmatpush1.msra.mxu0 0.0
        %4291 = vmatprep.subr.mxu0 0.0
        %4292 = vmatpush1.msra.mxu0 0.0
        %4293 = vmatprep.subr.mxu0 0.0
        %4294 = vmatpush1.msra.mxu0 0.0
        %4295 = vmatprep.subr.mxu0 0.0
        %4296 = vmatpush1.msra.mxu0 0.0
        %4297 = vmatprep.subr.mxu0 0.0
        %4298 = vmatpush1.msra.mxu0 0.0
        %4299 = vmatprep.subr.mxu0 0.0
        %4300 = vmatpush1.msra.mxu0 0.0
        %4301 = vmatprep.subr.mxu0 0.0
        %4302 = vmatpush1.msra.mxu0 0.0
        %4303 = vmatprep.subr.mxu0 0.0
        %4304 = vmatpush1.msra.mxu0 0.0
        %4305 = vmatprep.subr.mxu0 0.0
        %4306 = vmatpush1.msra.mxu0 0.0
        %4307 = vmatprep.subr.mxu0 0.0
        %4308 = vmatpush1.msra.mxu0 0.0
        %4309 = vmatprep.subr.mxu0 0.0
        %4310 = vmatpush1.msra.mxu0 0.0
        %4311 = vmatprep.mubr.f32.mxu0 0.0
        %4312 = vmatmul.mubr.f32.gmra.mrb[0].mxu0 %v622
        %v4313 = vpop.f32.mrb[0].mxu0
        %v4314 = vadd.f32 0.0, %v4313
        %v4315 = vpop.f32.mrb[0].mxu0
        %4316 = vmatprep.mubr.f32.mxu0 0.0
        %4317 = vmatmul.mubr.f32.gmra.mrb[0].mxu0 %v625
        %v4318 = vpop.f32.mrb[0].mxu0
        %v4319 = vadd.f32 0.0, %v4318
        %v4320 = vpop.f32.mrb[0].mxu0
        %4321 = vmatprep.mubr.f32.mxu0 0.0
        %4322 = vmatmul.mubr.f32.gmra.mrb[0].mxu0 %v628
        %v4323 = vpop.f32.mrb[0].mxu0
        %v4324 = vadd.f32 0.0, %v4323
        %v4325 = vpop.f32.mrb[0].mxu0
        %4326 = vmatprep.mubr.f32.mxu0 0.0
        %4327 = vmatmul.mubr.f32.gmra.mrb[0].mxu0 %v631
        %v4328 = vpop.f32.mrb[0].mxu0
        %v4329 = vadd.f32 0.0, %v4328
        %v4330 = vpop.f32.mrb[0].mxu0
        %4331 = vdwg.mxu0
        %4332 = vmatprep.subr.mxu0 0.0
        %4333 = vmatpush1.msra.mxu0 %v3999
        %4334 = vmatprep.subr.mxu0 0.0
        %4335 = vmatpush1.msra.mxu0 %v4000
        %4336 = vmatprep.subr.mxu0 0.0
        %4337 = vmatpush1.msra.mxu0 %v4001
        %4338 = vmatprep.subr.mxu0 0.0
        %4339 = vmatpush1.msra.mxu0 %v4002
        %4340 = vmatprep.subr.mxu0 0.0
        %4341 = vmatpush1.msra.mxu0 %v4003
        %4342 = vmatprep.subr.mxu0 0.0
        %4343 = vmatpush1.msra.mxu0 %v4004
        %4344 = vmatprep.subr.mxu0 0.0
        %4345 = vmatpush1.msra.mxu0 %v4005
        %4346 = vmatprep.subr.mxu0 0.0
        %4347 = vmatpush1.msra.mxu0 %v4006
        %4348 = vmatprep.subr.mxu0 0.0
        %4349 = vmatpush1.msra.mxu0 0.0
        %4350 = vmatprep.subr.mxu0 0.0
        %4351 = vmatpush1.msra.mxu0 0.0
        %4352 = vmatprep.subr.mxu0 0.0
        %4353 = vmatpush1.msra.mxu0 0.0
        %4354 = vmatprep.subr.mxu0 0.0
        %4355 = vmatpush1.msra.mxu0 0.0
        %4356 = vmatprep.subr.mxu0 0.0
        %4357 = vmatpush1.msra.mxu0 0.0
        %4358 = vmatprep.subr.mxu0 0.0
        %4359 = vmatpush1.msra.mxu0 0.0
        %4360 = vmatprep.subr.mxu0 0.0
        %4361 = vmatpush1.msra.mxu0 0.0
        %4362 = vmatprep.subr.mxu0 0.0
        %4363 = vmatpush1.msra.mxu0 0.0
        %4364 = vmatprep.subr.mxu0 0.0
        %4365 = vmatpush1.msra.mxu0 0.0
        %4366 = vmatprep.subr.mxu0 0.0
        %4367 = vmatpush1.msra.mxu0 0.0
        %4368 = vmatprep.subr.mxu0 0.0
        %4369 = vmatpush1.msra.mxu0 0.0
        %4370 = vmatprep.subr.mxu0 0.0
        %4371 = vmatpush1.msra.mxu0 0.0
        %4372 = vmatprep.subr.mxu0 0.0
        %4373 = vmatpush1.msra.mxu0 0.0
        %4374 = vmatprep.subr.mxu0 0.0
        %4375 = vmatpush1.msra.mxu0 0.0
        %4376 = vmatprep.subr.mxu0 0.0
        %4377 = vmatpush1.msra.mxu0 0.0
        %4378 = vmatprep.subr.mxu0 0.0
        %4379 = vmatpush1.msra.mxu0 0.0
        %4380 = vmatprep.subr.mxu0 0.0
        %4381 = vmatpush1.msra.mxu0 0.0
        %4382 = vmatprep.subr.mxu0 0.0
        %4383 = vmatpush1.msra.mxu0 0.0
        %4384 = vmatprep.subr.mxu0 0.0
        %4385 = vmatpush1.msra.mxu0 0.0
        %4386 = vmatprep.subr.mxu0 0.0
        %4387 = vmatpush1.msra.mxu0 0.0
        %4388 = vmatprep.subr.mxu0 0.0
        %4389 = vmatpush1.msra.mxu0 0.0
        %4390 = vmatprep.subr.mxu0 0.0
        %4391 = vmatpush1.msra.mxu0 0.0
        %4392 = vmatprep.subr.mxu0 0.0
        %4393 = vmatpush1.msra.mxu0 0.0
        %4394 = vmatprep.subr.mxu0 0.0
        %4395 = vmatpush1.msra.mxu0 0.0
        %4396 = vmatprep.mubr.f32.mxu0 0.0
        %4397 = vmatmul.mubr.f32.gmra.mrb[0].mxu0 %v539
        %v4398 = vpop.f32.mrb[0].mxu0
        %v4399 = vadd.f32 0.0, %v4398
        %v4400 = vpop.f32.mrb[0].mxu0
        %4401 = vmatprep.mubr.f32.mxu0 0.0
        %4402 = vmatmul.mubr.f32.gmra.mrb[0].mxu0 %v542
        %v4403 = vpop.f32.mrb[0].mxu0
        %v4404 = vadd.f32 0.0, %v4403
        %v4405 = vpop.f32.mrb[0].mxu0
        %4406 = vdwg.mxu0
        %v4408 = vsel %vm953, %v4085, 0
        %v4411 = vsel %vm953, %v4154, 0
        %v4414 = vsel %vm953, %v4159, 0
        %4416 = vmatprep.subr.mxu0 0.0
        %4417 = vmatpush1.xpose.msra.mxu0 %v4411
        %4418 = vmatprep.subr.mxu0 0.0
        %4419 = vmatpush1.xpose.msra.mxu0 %v4414
        %4420 = vmatprep.subr.mxu0 0.0
        %4421 = vmatpush1.xpose.msra.mxu0 0.0
        %4422 = vmatprep.subr.mxu0 0.0
        %4423 = vmatpush1.xpose.msra.mxu0 0.0
        %4424 = vmatprep.subr.mxu0 0.0
        %4425 = vmatpush1.xpose.msra.mxu0 0.0
        %4426 = vmatprep.subr.mxu0 0.0
        %4427 = vmatpush1.xpose.msra.mxu0 0.0
        %4428 = vmatprep.subr.mxu0 0.0
        %4429 = vmatpush1.xpose.msra.mxu0 0.0
        %4430 = vmatprep.subr.mxu0 0.0
        %4431 = vmatpush1.xpose.msra.mxu0 0.0
        %4432 = vmatprep.subr.mxu0 0.0
        %4433 = vmatpush1.xpose.msra.mxu0 0.0
        %4434 = vmatprep.subr.mxu0 0.0
        %4435 = vmatpush1.xpose.msra.mxu0 0.0
        %4436 = vmatprep.subr.mxu0 0.0
        %4437 = vmatpush1.xpose.msra.mxu0 0.0
        %4438 = vmatprep.subr.mxu0 0.0
        %4439 = vmatpush1.xpose.msra.mxu0 0.0
        %4440 = vmatprep.subr.mxu0 0.0
        %4441 = vmatpush1.xpose.msra.mxu0 0.0
        %4442 = vmatprep.subr.mxu0 0.0
        %4443 = vmatpush1.xpose.msra.mxu0 0.0
        %4444 = vmatprep.subr.mxu0 0.0
        %4445 = vmatpush1.xpose.msra.mxu0 0.0
        %4446 = vmatprep.subr.mxu0 0.0
        %4447 = vmatpush1.xpose.msra.mxu0 0.0
        %4448 = vmatprep.subr.mxu0 0.0
        %4449 = vmatpush1.xpose.msra.mxu0 0.0
        %4450 = vmatprep.subr.mxu0 0.0
        %4451 = vmatpush1.xpose.msra.mxu0 0.0
        %4452 = vmatprep.subr.mxu0 0.0
        %4453 = vmatpush1.xpose.msra.mxu0 0.0
        %4454 = vmatprep.subr.mxu0 0.0
        %4455 = vmatpush1.xpose.msra.mxu0 0.0
        %4456 = vmatprep.subr.mxu0 0.0
        %4457 = vmatpush1.xpose.msra.mxu0 0.0
        %4458 = vmatprep.subr.mxu0 0.0
        %4459 = vmatpush1.xpose.msra.mxu0 0.0
        %4460 = vmatprep.subr.mxu0 0.0
        %4461 = vmatpush1.xpose.msra.mxu0 0.0
        %4462 = vmatprep.subr.mxu0 0.0
        %4463 = vmatpush1.xpose.msra.mxu0 0.0
        %4464 = vmatprep.subr.mxu0 0.0
        %4465 = vmatpush1.xpose.msra.mxu0 0.0
        %4466 = vmatprep.subr.mxu0 0.0
        %4467 = vmatpush1.xpose.msra.mxu0 0.0
        %4468 = vmatprep.subr.mxu0 0.0
        %4469 = vmatpush1.xpose.msra.mxu0 0.0
        %4470 = vmatprep.subr.mxu0 0.0
        %4471 = vmatpush1.xpose.msra.mxu0 0.0
        %4472 = vmatprep.subr.mxu0 0.0
        %4473 = vmatpush1.xpose.msra.mxu0 0.0
        %4474 = vmatprep.subr.mxu0 0.0
        %4475 = vmatpush1.xpose.msra.mxu0 0.0
        %4476 = vmatprep.subr.mxu0 0.0
        %4477 = vmatpush1.xpose.msra.mxu0 0.0
        %4478 = vmatprep.subr.mxu0 0.0
        %4479 = vmatpush1.xpose.msra.mxu0 0.0
        %4480 = vmatprep.mubr.f32.mxu0 0.0
        %4481 = vmatmul.mubr.f32.gmra.mrb[0].mxu0 %v4408
        %v4482 = vpop.f32.mrb[0].mxu0
        %v4483 = vadd.f32 0.0, %v4482
        %v4484 = vpop.f32.mrb[0].mxu0
        %4485 = vdwg.mxu0
        %v4487 = vsel %vm953, %v4086, 0
        %v4490 = vsel %vm953, %v4164, 0
        %v4493 = vsel %vm953, %v4169, 0
        %4495 = vmatprep.subr.mxu0 0.0
        %4496 = vmatpush1.xpose.msra.mxu0 %v4490
        %4497 = vmatprep.subr.mxu0 0.0
        %4498 = vmatpush1.xpose.msra.mxu0 %v4493
        %4499 = vmatprep.subr.mxu0 0.0
        %4500 = vmatpush1.xpose.msra.mxu0 0.0
        %4501 = vmatprep.subr.mxu0 0.0
        %4502 = vmatpush1.xpose.msra.mxu0 0.0
        %4503 = vmatprep.subr.mxu0 0.0
        %4504 = vmatpush1.xpose.msra.mxu0 0.0
        %4505 = vmatprep.subr.mxu0 0.0
        %4506 = vmatpush1.xpose.msra.mxu0 0.0
        %4507 = vmatprep.subr.mxu0 0.0
        %4508 = vmatpush1.xpose.msra.mxu0 0.0
        %4509 = vmatprep.subr.mxu0 0.0
        %4510 = vmatpush1.xpose.msra.mxu0 0.0
        %4511 = vmatprep.subr.mxu0 0.0
        %4512 = vmatpush1.xpose.msra.mxu0 0.0
        %4513 = vmatprep.subr.mxu0 0.0
        %4514 = vmatpush1.xpose.msra.mxu0 0.0
        %4515 = vmatprep.subr.mxu0 0.0
        %4516 = vmatpush1.xpose.msra.mxu0 0.0
        %4517 = vmatprep.subr.mxu0 0.0
        %4518 = vmatpush1.xpose.msra.mxu0 0.0
        %4519 = vmatprep.subr.mxu0 0.0
        %4520 = vmatpush1.xpose.msra.mxu0 0.0
        %4521 = vmatprep.subr.mxu0 0.0
        %4522 = vmatpush1.xpose.msra.mxu0 0.0
        %4523 = vmatprep.subr.mxu0 0.0
        %4524 = vmatpush1.xpose.msra.mxu0 0.0
        %4525 = vmatprep.subr.mxu0 0.0
        %4526 = vmatpush1.xpose.msra.mxu0 0.0
        %4527 = vmatprep.subr.mxu0 0.0
        %4528 = vmatpush1.xpose.msra.mxu0 0.0
        %4529 = vmatprep.subr.mxu0 0.0
        %4530 = vmatpush1.xpose.msra.mxu0 0.0
        %4531 = vmatprep.subr.mxu0 0.0
        %4532 = vmatpush1.xpose.msra.mxu0 0.0
        %4533 = vmatprep.subr.mxu0 0.0
        %4534 = vmatpush1.xpose.msra.mxu0 0.0
        %4535 = vmatprep.subr.mxu0 0.0
        %4536 = vmatpush1.xpose.msra.mxu0 0.0
        %4537 = vmatprep.subr.mxu0 0.0
        %4538 = vmatpush1.xpose.msra.mxu0 0.0
        %4539 = vmatprep.subr.mxu0 0.0
        %4540 = vmatpush1.xpose.msra.mxu0 0.0
        %4541 = vmatprep.subr.mxu0 0.0
        %4542 = vmatpush1.xpose.msra.mxu0 0.0
        %4543 = vmatprep.subr.mxu0 0.0
        %4544 = vmatpush1.xpose.msra.mxu0 0.0
        %4545 = vmatprep.subr.mxu0 0.0
        %4546 = vmatpush1.xpose.msra.mxu0 0.0
        %4547 = vmatprep.subr.mxu0 0.0
        %4548 = vmatpush1.xpose.msra.mxu0 0.0
        %4549 = vmatprep.subr.mxu0 0.0
        %4550 = vmatpush1.xpose.msra.mxu0 0.0
        %4551 = vmatprep.subr.mxu0 0.0
        %4552 = vmatpush1.xpose.msra.mxu0 0.0
        %4553 = vmatprep.subr.mxu0 0.0
        %4554 = vmatpush1.xpose.msra.mxu0 0.0
        %4555 = vmatprep.subr.mxu0 0.0
        %4556 = vmatpush1.xpose.msra.mxu0 0.0
        %4557 = vmatprep.subr.mxu0 0.0
        %4558 = vmatpush1.xpose.msra.mxu0 0.0
        %4559 = vmatprep.mubr.f32.mxu0 0.0
        %4560 = vmatmul.mubr.f32.gmra.mrb[0].mxu0 %v4487
        %v4561 = vpop.f32.mrb[0].mxu0
        %v4562 = vadd.f32 0.0, %v4561
        %v4563 = vpop.f32.mrb[0].mxu0
        %4564 = vdwg.mxu0
        %v4566 = vsel %vm953, %v4239, 0
        %4568 = vmatprep.subr.mxu0 0.0
        %4569 = vmatpush1.xpose.msra.mxu0 %v4566
        %4570 = vmatprep.subr.mxu0 0.0
        %4571 = vmatpush1.xpose.msra.mxu0 0.0
        %4572 = vmatprep.subr.mxu0 0.0
        %4573 = vmatpush1.xpose.msra.mxu0 0.0
        %4574 = vmatprep.subr.mxu0 0.0
        %4575 = vmatpush1.xpose.msra.mxu0 0.0
        %4576 = vmatprep.subr.mxu0 0.0
        %4577 = vmatpush1.xpose.msra.mxu0 0.0
        %4578 = vmatprep.subr.mxu0 0.0
        %4579 = vmatpush1.xpose.msra.mxu0 0.0
        %4580 = vmatprep.subr.mxu0 0.0
        %4581 = vmatpush1.xpose.msra.mxu0 0.0
        %4582 = vmatprep.subr.mxu0 0.0
        %4583 = vmatpush1.xpose.msra.mxu0 0.0
        %4584 = vmatprep.subr.mxu0 0.0
        %4585 = vmatpush1.xpose.msra.mxu0 0.0
        %4586 = vmatprep.subr.mxu0 0.0
        %4587 = vmatpush1.xpose.msra.mxu0 0.0
        %4588 = vmatprep.subr.mxu0 0.0
        %4589 = vmatpush1.xpose.msra.mxu0 0.0
        %4590 = vmatprep.subr.mxu0 0.0
        %4591 = vmatpush1.xpose.msra.mxu0 0.0
        %4592 = vmatprep.subr.mxu0 0.0
        %4593 = vmatpush1.xpose.msra.mxu0 0.0
        %4594 = vmatprep.subr.mxu0 0.0
        %4595 = vmatpush1.xpose.msra.mxu0 0.0
        %4596 = vmatprep.subr.mxu0 0.0
        %4597 = vmatpush1.xpose.msra.mxu0 0.0
        %4598 = vmatprep.subr.mxu0 0.0
        %4599 = vmatpush1.xpose.msra.mxu0 0.0
        %4600 = vmatprep.subr.mxu0 0.0
        %4601 = vmatpush1.xpose.msra.mxu0 0.0
        %4602 = vmatprep.subr.mxu0 0.0
        %4603 = vmatpush1.xpose.msra.mxu0 0.0
        %4604 = vmatprep.subr.mxu0 0.0
        %4605 = vmatpush1.xpose.msra.mxu0 0.0
        %4606 = vmatprep.subr.mxu0 0.0
        %4607 = vmatpush1.xpose.msra.mxu0 0.0
        %4608 = vmatprep.subr.mxu0 0.0
        %4609 = vmatpush1.xpose.msra.mxu0 0.0
        %4610 = vmatprep.subr.mxu0 0.0
        %4611 = vmatpush1.xpose.msra.mxu0 0.0
        %4612 = vmatprep.subr.mxu0 0.0
        %4613 = vmatpush1.xpose.msra.mxu0 0.0
        %4614 = vmatprep.subr.mxu0 0.0
        %4615 = vmatpush1.xpose.msra.mxu0 0.0
        %4616 = vmatprep.subr.mxu0 0.0
        %4617 = vmatpush1.xpose.msra.mxu0 0.0
        %4618 = vmatprep.subr.mxu0 0.0
        %4619 = vmatpush1.xpose.msra.mxu0 0.0
        %4620 = vmatprep.subr.mxu0 0.0
        %4621 = vmatpush1.xpose.msra.mxu0 0.0
        %4622 = vmatprep.subr.mxu0 0.0
        %4623 = vmatpush1.xpose.msra.mxu0 0.0
        %4624 = vmatprep.subr.mxu0 0.0
        %4625 = vmatpush1.xpose.msra.mxu0 0.0
        %4626 = vmatprep.subr.mxu0 0.0
        %4627 = vmatpush1.xpose.msra.mxu0 0.0
        %4628 = vmatprep.subr.mxu0 0.0
        %4629 = vmatpush1.xpose.msra.mxu0 0.0
        %4630 = vmatprep.subr.mxu0 0.0
        %4631 = vmatpush1.xpose.msra.mxu0 0.0
        %4632 = vmatprep.mubr.f32.mxu0 0.0
        %4633 = vmatmul.mubr.f32.gmra.mrb[0].mxu0 %v4408
        %v4634 = vpop.f32.mrb[0].mxu0
        %v4635 = vadd.f32 0.0, %v4634
        %v4636 = vpop.f32.mrb[0].mxu0
        %4637 = vdwg.mxu0
        %v4639 = vsel %vm953, %v4244, 0
        %4641 = vmatprep.subr.mxu0 0.0
        %4642 = vmatpush1.xpose.msra.mxu0 %v4639
        %4643 = vmatprep.subr.mxu0 0.0
        %4644 = vmatpush1.xpose.msra.mxu0 0.0
        %4645 = vmatprep.subr.mxu0 0.0
        %4646 = vmatpush1.xpose.msra.mxu0 0.0
        %4647 = vmatprep.subr.mxu0 0.0
        %4648 = vmatpush1.xpose.msra.mxu0 0.0
        %4649 = vmatprep.subr.mxu0 0.0
        %4650 = vmatpush1.xpose.msra.mxu0 0.0
        %4651 = vmatprep.subr.mxu0 0.0
        %4652 = vmatpush1.xpose.msra.mxu0 0.0
        %4653 = vmatprep.subr.mxu0 0.0
        %4654 = vmatpush1.xpose.msra.mxu0 0.0
        %4655 = vmatprep.subr.mxu0 0.0
        %4656 = vmatpush1.xpose.msra.mxu0 0.0
        %4657 = vmatprep.subr.mxu0 0.0
        %4658 = vmatpush1.xpose.msra.mxu0 0.0
        %4659 = vmatprep.subr.mxu0 0.0
        %4660 = vmatpush1.xpose.msra.mxu0 0.0
        %4661 = vmatprep.subr.mxu0 0.0
        %4662 = vmatpush1.xpose.msra.mxu0 0.0
        %4663 = vmatprep.subr.mxu0 0.0
        %4664 = vmatpush1.xpose.msra.mxu0 0.0
        %4665 = vmatprep.subr.mxu0 0.0
        %4666 = vmatpush1.xpose.msra.mxu0 0.0
        %4667 = vmatprep.subr.mxu0 0.0
        %4668 = vmatpush1.xpose.msra.mxu0 0.0
        %4669 = vmatprep.subr.mxu0 0.0
        %4670 = vmatpush1.xpose.msra.mxu0 0.0
        %4671 = vmatprep.subr.mxu0 0.0
        %4672 = vmatpush1.xpose.msra.mxu0 0.0
        %4673 = vmatprep.subr.mxu0 0.0
        %4674 = vmatpush1.xpose.msra.mxu0 0.0
        %4675 = vmatprep.subr.mxu0 0.0
        %4676 = vmatpush1.xpose.msra.mxu0 0.0
        %4677 = vmatprep.subr.mxu0 0.0
        %4678 = vmatpush1.xpose.msra.mxu0 0.0
        %4679 = vmatprep.subr.mxu0 0.0
        %4680 = vmatpush1.xpose.msra.mxu0 0.0
        %4681 = vmatprep.subr.mxu0 0.0
        %4682 = vmatpush1.xpose.msra.mxu0 0.0
        %4683 = vmatprep.subr.mxu0 0.0
        %4684 = vmatpush1.xpose.msra.mxu0 0.0
        %4685 = vmatprep.subr.mxu0 0.0
        %4686 = vmatpush1.xpose.msra.mxu0 0.0
        %4687 = vmatprep.subr.mxu0 0.0
        %4688 = vmatpush1.xpose.msra.mxu0 0.0
        %4689 = vmatprep.subr.mxu0 0.0
        %4690 = vmatpush1.xpose.msra.mxu0 0.0
        %4691 = vmatprep.subr.mxu0 0.0
        %4692 = vmatpush1.xpose.msra.mxu0 0.0
        %4693 = vmatprep.subr.mxu0 0.0
        %4694 = vmatpush1.xpose.msra.mxu0 0.0
        %4695 = vmatprep.subr.mxu0 0.0
        %4696 = vmatpush1.xpose.msra.mxu0 0.0
        %4697 = vmatprep.subr.mxu0 0.0
        %4698 = vmatpush1.xpose.msra.mxu0 0.0
        %4699 = vmatprep.subr.mxu0 0.0
        %4700 = vmatpush1.xpose.msra.mxu0 0.0
        %4701 = vmatprep.subr.mxu0 0.0
        %4702 = vmatpush1.xpose.msra.mxu0 0.0
        %4703 = vmatprep.subr.mxu0 0.0
        %4704 = vmatpush1.xpose.msra.mxu0 0.0
        %4705 = vmatprep.mubr.f32.mxu0 0.0
        %4706 = vmatmul.mubr.f32.gmra.mrb[0].mxu0 %v4487
        %v4707 = vpop.f32.mrb[0].mxu0
        %v4708 = vadd.f32 0.0, %v4707
        %v4709 = vpop.f32.mrb[0].mxu0
        %4710 = vdwg.mxu0
        %v4711 = vsel %vm953, %v4483, -inf
        %4712 = vmax.xlane.f32.xlu0 %v4711
        %v4713 = vpop.xlane.xlu0 %4712
        %v4714 = vsel %vm953, %v4562, -inf
        %4715 = vmax.xlane.f32.xlu0 %v4714
        %v4716 = vpop.xlane.xlu0 %4715
        %v4717 = vsel %vm1264, %v4635, -inf
        %4718 = vmax.xlane.f32.xlu0 %v4717
        %v4719 = vpop.xlane.xlu0 %4718
        %v4720 = vsel %vm1264, %v4708, -inf
        %4721 = vmax.xlane.f32.xlu0 %v4720
        %v4722 = vpop.xlane.xlu0 %4721
        %v4723 = vmax.f32 %v4713, %v4719
        %v4724 = vmax.f32 %v4716, %v4722
        %v4725 = vsub.f32 %v4483, %v4723
        %v4726 = vsub.f32 %v4562, %v4724
        %v4727 = vmul.f32 %v4725, 1.442695
        %v4728 = vpow.pop %v4727
        %v4729 = vmul.f32 %v4726, 1.442695
        %v4730 = vpow.pop %v4729
        %v4731 = vsub.f32 %v4635, %v4723
        %v4732 = vsub.f32 %v4708, %v4724
        %v4733 = vmul.f32 %v4731, 1.442695
        %v4734 = vpow.pop %v4733
        %v4735 = vmul.f32 %v4732, 1.442695
        %v4736 = vpow.pop %v4735
        %v4737 = vsel %vm953, %v4728, 0.0
        %4738 = vadd.xlane.f32.xlu0 %v4737
        %v4739 = vpop.xlane.xlu0 %4738
        %v4740 = vsel %vm953, %v4730, 0.0
        %4741 = vadd.xlane.f32.xlu0 %v4740
        %v4742 = vpop.xlane.xlu0 %4741
        %v4743 = vsel %vm1264, %v4734, 0.0
        %4744 = vadd.xlane.f32.xlu0 %v4743
        %v4745 = vpop.xlane.xlu0 %4744
        %v4746 = vsel %vm1264, %v4736, 0.0
        %4747 = vadd.xlane.f32.xlu0 %v4746
        %v4748 = vpop.xlane.xlu0 %4747
        %v4749 = vadd.f32 %v4739, %v4745
        %v4750 = vadd.f32 %v4742, %v4748
        %v4751 = vrcp.pop %v4749
        %v4752 = vrcp.pop %v4750
        %v4753 = vmul.f32 %v4728, %v4751
        %v4754 = vmul.f32 %v4730, %v4752
        %v4755 = vmul.f32 %v4734, %v4751
        %v4756 = vmul.f32 %v4736, %v4752
        %v4758 = vsel %vm1264, %v4755, 0
        %4760 = vmatprep.subr.mxu0 0.0
        %4761 = vmatpush1.msra.mxu0 %v4399
        %4762 = vmatprep.subr.mxu0 0.0
        %4763 = vmatpush1.msra.mxu0 0.0
        %4764 = vmatprep.subr.mxu0 0.0
        %4765 = vmatpush1.msra.mxu0 0.0
        %4766 = vmatprep.subr.mxu0 0.0
        %4767 = vmatpush1.msra.mxu0 0.0
        %4768 = vmatprep.subr.mxu0 0.0
        %4769 = vmatpush1.msra.mxu0 0.0
        %4770 = vmatprep.subr.mxu0 0.0
        %4771 = vmatpush1.msra.mxu0 0.0
        %4772 = vmatprep.subr.mxu0 0.0
        %4773 = vmatpush1.msra.mxu0 0.0
        %4774 = vmatprep.subr.mxu0 0.0
        %4775 = vmatpush1.msra.mxu0 0.0
        %4776 = vmatprep.subr.mxu0 0.0
        %4777 = vmatpush1.msra.mxu0 0.0
        %4778 = vmatprep.subr.mxu0 0.0
        %4779 = vmatpush1.msra.mxu0 0.0
        %4780 = vmatprep.subr.mxu0 0.0
        %4781 = vmatpush1.msra.mxu0 0.0
        %4782 = vmatprep.subr.mxu0 0.0
        %4783 = vmatpush1.msra.mxu0 0.0
        %4784 = vmatprep.subr.mxu0 0.0
        %4785 = vmatpush1.msra.mxu0 0.0
        %4786 = vmatprep.subr.mxu0 0.0
        %4787 = vmatpush1.msra.mxu0 0.0
        %4788 = vmatprep.subr.mxu0 0.0
        %4789 = vmatpush1.msra.mxu0 0.0
        %4790 = vmatprep.subr.mxu0 0.0
        %4791 = vmatpush1.msra.mxu0 0.0
        %4792 = vmatprep.subr.mxu0 0.0
        %4793 = vmatpush1.msra.mxu0 0.0
        %4794 = vmatprep.subr.mxu0 0.0
        %4795 = vmatpush1.msra.mxu0 0.0
        %4796 = vmatprep.subr.mxu0 0.0
        %4797 = vmatpush1.msra.mxu0 0.0
        %4798 = vmatprep.subr.mxu0 0.0
        %4799 = vmatpush1.msra.mxu0 0.0
        %4800 = vmatprep.subr.mxu0 0.0
        %4801 = vmatpush1.msra.mxu0 0.0
        %4802 = vmatprep.subr.mxu0 0.0
        %4803 = vmatpush1.msra.mxu0 0.0
        %4804 = vmatprep.subr.mxu0 0.0
        %4805 = vmatpush1.msra.mxu0 0.0
        %4806 = vmatprep.subr.mxu0 0.0
        %4807 = vmatpush1.msra.mxu0 0.0
        %4808 = vmatprep.subr.mxu0 0.0
        %4809 = vmatpush1.msra.mxu0 0.0
        %4810 = vmatprep.subr.mxu0 0.0
        %4811 = vmatpush1.msra.mxu0 0.0
        %4812 = vmatprep.subr.mxu0 0.0
        %4813 = vmatpush1.msra.mxu0 0.0
        %4814 = vmatprep.subr.mxu0 0.0
        %4815 = vmatpush1.msra.mxu0 0.0
        %4816 = vmatprep.subr.mxu0 0.0
        %4817 = vmatpush1.msra.mxu0 0.0
        %4818 = vmatprep.subr.mxu0 0.0
        %4819 = vmatpush1.msra.mxu0 0.0
        %4820 = vmatprep.subr.mxu0 0.0
        %4821 = vmatpush1.msra.mxu0 0.0
        %4822 = vmatprep.subr.mxu0 0.0
        %4823 = vmatpush1.msra.mxu0 0.0
        %4824 = vmatprep.mubr.f32.mxu0 0.0
        %4825 = vmatmul.mubr.f32.gmra.mrb[0].mxu0 %v4758
        %v4826 = vpop.f32.mrb[0].mxu0
        %v4827 = vadd.f32 0.0, %v4826
        %v4828 = vpop.f32.mrb[0].mxu0
        %4829 = vdwg.mxu0
        %v4831 = vsel %vm1264, %v4756, 0
        %4833 = vmatprep.subr.mxu0 0.0
        %4834 = vmatpush1.msra.mxu0 %v4404
        %4835 = vmatprep.subr.mxu0 0.0
        %4836 = vmatpush1.msra.mxu0 0.0
        %4837 = vmatprep.subr.mxu0 0.0
        %4838 = vmatpush1.msra.mxu0 0.0
        %4839 = vmatprep.subr.mxu0 0.0
        %4840 = vmatpush1.msra.mxu0 0.0
        %4841 = vmatprep.subr.mxu0 0.0
        %4842 = vmatpush1.msra.mxu0 0.0
        %4843 = vmatprep.subr.mxu0 0.0
        %4844 = vmatpush1.msra.mxu0 0.0
        %4845 = vmatprep.subr.mxu0 0.0
        %4846 = vmatpush1.msra.mxu0 0.0
        %4847 = vmatprep.subr.mxu0 0.0
        %4848 = vmatpush1.msra.mxu0 0.0
        %4849 = vmatprep.subr.mxu0 0.0
        %4850 = vmatpush1.msra.mxu0 0.0
        %4851 = vmatprep.subr.mxu0 0.0
        %4852 = vmatpush1.msra.mxu0 0.0
        %4853 = vmatprep.subr.mxu0 0.0
        %4854 = vmatpush1.msra.mxu0 0.0
        %4855 = vmatprep.subr.mxu0 0.0
        %4856 = vmatpush1.msra.mxu0 0.0
        %4857 = vmatprep.subr.mxu0 0.0
        %4858 = vmatpush1.msra.mxu0 0.0
        %4859 = vmatprep.subr.mxu0 0.0
        %4860 = vmatpush1.msra.mxu0 0.0
        %4861 = vmatprep.subr.mxu0 0.0
        %4862 = vmatpush1.msra.mxu0 0.0
        %4863 = vmatprep.subr.mxu0 0.0
        %4864 = vmatpush1.msra.mxu0 0.0
        %4865 = vmatprep.subr.mxu0 0.0
        %4866 = vmatpush1.msra.mxu0 0.0
        %4867 = vmatprep.subr.mxu0 0.0
        %4868 = vmatpush1.msra.mxu0 0.0
        %4869 = vmatprep.subr.mxu0 0.0
        %4870 = vmatpush1.msra.mxu0 0.0
        %4871 = vmatprep.subr.mxu0 0.0
        %4872 = vmatpush1.msra.mxu0 0.0
        %4873 = vmatprep.subr.mxu0 0.0
        %4874 = vmatpush1.msra.mxu0 0.0
        %4875 = vmatprep.subr.mxu0 0.0
        %4876 = vmatpush1.msra.mxu0 0.0
        %4877 = vmatprep.subr.mxu0 0.0
        %4878 = vmatpush1.msra.mxu0 0.0
        %4879 = vmatprep.subr.mxu0 0.0
        %4880 = vmatpush1.msra.mxu0 0.0
        %4881 = vmatprep.subr.mxu0 0.0
        %4882 = vmatpush1.msra.mxu0 0.0
        %4883 = vmatprep.subr.mxu0 0.0
        %4884 = vmatpush1.msra.mxu0 0.0
        %4885 = vmatprep.subr.mxu0 0.0
        %4886 = vmatpush1.msra.mxu0 0.0
        %4887 = vmatprep.subr.mxu0 0.0
        %4888 = vmatpush1.msra.mxu0 0.0
        %4889 = vmatprep.subr.mxu0 0.0
        %4890 = vmatpush1.msra.mxu0 0.0
        %4891 = vmatprep.subr.mxu0 0.0
        %4892 = vmatpush1.msra.mxu0 0.0
        %4893 = vmatprep.subr.mxu0 0.0
        %4894 = vmatpush1.msra.mxu0 0.0
        %4895 = vmatprep.subr.mxu0 0.0
        %4896 = vmatpush1.msra.mxu0 0.0
        %4897 = vmatprep.mubr.f32.mxu0 0.0
        %4898 = vmatmul.mubr.f32.gmra.mrb[0].mxu0 %v4831
        %v4899 = vpop.f32.mrb[0].mxu0
        %v4900 = vadd.f32 0.0, %v4899
        %v4901 = vpop.f32.mrb[0].mxu0
        %4902 = vdwg.mxu0
        %v4904 = vsel %vm953, %v4753, 0
        %4906 = vmatprep.subr.mxu0 0.0
        %4907 = vmatpush1.msra.mxu0 %v4314
        %4908 = vmatprep.subr.mxu0 0.0
        %4909 = vmatpush1.msra.mxu0 %v4319
        %4910 = vmatprep.subr.mxu0 0.0
        %4911 = vmatpush1.msra.mxu0 0.0
        %4912 = vmatprep.subr.mxu0 0.0
        %4913 = vmatpush1.msra.mxu0 0.0
        %4914 = vmatprep.subr.mxu0 0.0
        %4915 = vmatpush1.msra.mxu0 0.0
        %4916 = vmatprep.subr.mxu0 0.0
        %4917 = vmatpush1.msra.mxu0 0.0
        %4918 = vmatprep.subr.mxu0 0.0
        %4919 = vmatpush1.msra.mxu0 0.0
        %4920 = vmatprep.subr.mxu0 0.0
        %4921 = vmatpush1.msra.mxu0 0.0
        %4922 = vmatprep.subr.mxu0 0.0
        %4923 = vmatpush1.msra.mxu0 0.0
        %4924 = vmatprep.subr.mxu0 0.0
        %4925 = vmatpush1.msra.mxu0 0.0
        %4926 = vmatprep.subr.mxu0 0.0
        %4927 = vmatpush1.msra.mxu0 0.0
        %4928 = vmatprep.subr.mxu0 0.0
        %4929 = vmatpush1.msra.mxu0 0.0
        %4930 = vmatprep.subr.mxu0 0.0
        %4931 = vmatpush1.msra.mxu0 0.0
        %4932 = vmatprep.subr.mxu0 0.0
        %4933 = vmatpush1.msra.mxu0 0.0
        %4934 = vmatprep.subr.mxu0 0.0
        %4935 = vmatpush1.msra.mxu0 0.0
        %4936 = vmatprep.subr.mxu0 0.0
        %4937 = vmatpush1.msra.mxu0 0.0
        %4938 = vmatprep.subr.mxu0 0.0
        %4939 = vmatpush1.msra.mxu0 0.0
        %4940 = vmatprep.subr.mxu0 0.0
        %4941 = vmatpush1.msra.mxu0 0.0
        %4942 = vmatprep.subr.mxu0 0.0
        %4943 = vmatpush1.msra.mxu0 0.0
        %4944 = vmatprep.subr.mxu0 0.0
        %4945 = vmatpush1.msra.mxu0 0.0
        %4946 = vmatprep.subr.mxu0 0.0
        %4947 = vmatpush1.msra.mxu0 0.0
        %4948 = vmatprep.subr.mxu0 0.0
        %4949 = vmatpush1.msra.mxu0 0.0
        %4950 = vmatprep.subr.mxu0 0.0
        %4951 = vmatpush1.msra.mxu0 0.0
        %4952 = vmatprep.subr.mxu0 0.0
        %4953 = vmatpush1.msra.mxu0 0.0
        %4954 = vmatprep.subr.mxu0 0.0
        %4955 = vmatpush1.msra.mxu0 0.0
        %4956 = vmatprep.subr.mxu0 0.0
        %4957 = vmatpush1.msra.mxu0 0.0
        %4958 = vmatprep.subr.mxu0 0.0
        %4959 = vmatpush1.msra.mxu0 0.0
        %4960 = vmatprep.subr.mxu0 0.0
        %4961 = vmatpush1.msra.mxu0 0.0
        %4962 = vmatprep.subr.mxu0 0.0
        %4963 = vmatpush1.msra.mxu0 0.0
        %4964 = vmatprep.subr.mxu0 0.0
        %4965 = vmatpush1.msra.mxu0 0.0
        %4966 = vmatprep.subr.mxu0 0.0
        %4967 = vmatpush1.msra.mxu0 0.0
        %4968 = vmatprep.subr.mxu0 0.0
        %4969 = vmatpush1.msra.mxu0 0.0
        %4970 = vmatprep.mubr.f32.mxu0 0.0
        %4971 = vmatmul.mubr.f32.gmra.mrb[0].mxu0 %v4904
        %v4972 = vpop.f32.mrb[0].mxu0
        %v4973 = vadd.f32 %v4827, %v4972
        %v4974 = vpop.f32.mrb[0].mxu0
        %4975 = vdwg.mxu0
        %v4977 = vsel %vm953, %v4754, 0
        %4979 = vmatprep.subr.mxu0 0.0
        %4980 = vmatpush1.msra.mxu0 %v4324
        %4981 = vmatprep.subr.mxu0 0.0
        %4982 = vmatpush1.msra.mxu0 %v4329
        %4983 = vmatprep.subr.mxu0 0.0
        %4984 = vmatpush1.msra.mxu0 0.0
        %4985 = vmatprep.subr.mxu0 0.0
        %4986 = vmatpush1.msra.mxu0 0.0
        %4987 = vmatprep.subr.mxu0 0.0
        %4988 = vmatpush1.msra.mxu0 0.0
        %4989 = vmatprep.subr.mxu0 0.0
        %4990 = vmatpush1.msra.mxu0 0.0
        %4991 = vmatprep.subr.mxu0 0.0
        %4992 = vmatpush1.msra.mxu0 0.0
        %4993 = vmatprep.subr.mxu0 0.0
        %4994 = vmatpush1.msra.mxu0 0.0
        %4995 = vmatprep.subr.mxu0 0.0
        %4996 = vmatpush1.msra.mxu0 0.0
        %4997 = vmatprep.subr.mxu0 0.0
        %4998 = vmatpush1.msra.mxu0 0.0
        %4999 = vmatprep.subr.mxu0 0.0
        %5000 = vmatpush1.msra.mxu0 0.0
        %5001 = vmatprep.subr.mxu0 0.0
        %5002 = vmatpush1.msra.mxu0 0.0
        %5003 = vmatprep.subr.mxu0 0.0
        %5004 = vmatpush1.msra.mxu0 0.0
        %5005 = vmatprep.subr.mxu0 0.0
        %5006 = vmatpush1.msra.mxu0 0.0
        %5007 = vmatprep.subr.mxu0 0.0
        %5008 = vmatpush1.msra.mxu0 0.0
        %5009 = vmatprep.subr.mxu0 0.0
        %5010 = vmatpush1.msra.mxu0 0.0
        %5011 = vmatprep.subr.mxu0 0.0
        %5012 = vmatpush1.msra.mxu0 0.0
        %5013 = vmatprep.subr.mxu0 0.0
        %5014 = vmatpush1.msra.mxu0 0.0
        %5015 = vmatprep.subr.mxu0 0.0
        %5016 = vmatpush1.msra.mxu0 0.0
        %5017 = vmatprep.subr.mxu0 0.0
        %5018 = vmatpush1.msra.mxu0 0.0
        %5019 = vmatprep.subr.mxu0 0.0
        %5020 = vmatpush1.msra.mxu0 0.0
        %5021 = vmatprep.subr.mxu0 0.0
        %5022 = vmatpush1.msra.mxu0 0.0
        %5023 = vmatprep.subr.mxu0 0.0
        %5024 = vmatpush1.msra.mxu0 0.0
        %5025 = vmatprep.subr.mxu0 0.0
        %5026 = vmatpush1.msra.mxu0 0.0
        %5027 = vmatprep.subr.mxu0 0.0
        %5028 = vmatpush1.msra.mxu0 0.0
        %5029 = vmatprep.subr.mxu0 0.0
        %5030 = vmatpush1.msra.mxu0 0.0
        %5031 = vmatprep.subr.mxu0 0.0
        %5032 = vmatpush1.msra.mxu0 0.0
        %5033 = vmatprep.subr.mxu0 0.0
        %5034 = vmatpush1.msra.mxu0 0.0
        %5035 = vmatprep.subr.mxu0 0.0
        %5036 = vmatpush1.msra.mxu0 0.0
        %5037 = vmatprep.subr.mxu0 0.0
        %5038 = vmatpush1.msra.mxu0 0.0
        %5039 = vmatprep.subr.mxu0 0.0
        %5040 = vmatpush1.msra.mxu0 0.0
        %5041 = vmatprep.subr.mxu0 0.0
        %5042 = vmatpush1.msra.mxu0 0.0
        %5043 = vmatprep.mubr.f32.mxu0 0.0
        %5044 = vmatmul.mubr.f32.gmra.mrb[0].mxu0 %v4977
        %v5045 = vpop.f32.mrb[0].mxu0
        %v5046 = vadd.f32 %v4900, %v5045
        %v5047 = vpop.f32.mrb[0].mxu0
        %5048 = vdwg.mxu0
        %v5050 = vsel %vm953, %v4973, 0
        %v5053 = vsel %vm953, %v5046, 0
        %5055 = vmatprep.subr.mxu0 0.0
        %5056 = vmatpush1.msra.mxu0 %v4008
        %5057 = vmatprep.subr.mxu0 0.0
        %5058 = vmatpush1.msra.mxu0 %v4009
        %5059 = vmatprep.subr.mxu0 0.0
        %5060 = vmatpush1.msra.mxu0 0.0
        %5061 = vmatprep.subr.mxu0 0.0
        %5062 = vmatpush1.msra.mxu0 0.0
        %5063 = vmatprep.subr.mxu0 0.0
        %5064 = vmatpush1.msra.mxu0 0.0
        %5065 = vmatprep.subr.mxu0 0.0
        %5066 = vmatpush1.msra.mxu0 0.0
        %5067 = vmatprep.subr.mxu0 0.0
        %5068 = vmatpush1.msra.mxu0 0.0
        %5069 = vmatprep.subr.mxu0 0.0
        %5070 = vmatpush1.msra.mxu0 0.0
        %5071 = vmatprep.subr.mxu0 0.0
        %5072 = vmatpush1.msra.mxu0 0.0
        %5073 = vmatprep.subr.mxu0 0.0
        %5074 = vmatpush1.msra.mxu0 0.0
        %5075 = vmatprep.subr.mxu0 0.0
        %5076 = vmatpush1.msra.mxu0 0.0
        %5077 = vmatprep.subr.mxu0 0.0
        %5078 = vmatpush1.msra.mxu0 0.0
        %5079 = vmatprep.subr.mxu0 0.0
        %5080 = vmatpush1.msra.mxu0 0.0
        %5081 = vmatprep.subr.mxu0 0.0
        %5082 = vmatpush1.msra.mxu0 0.0
        %5083 = vmatprep.subr.mxu0 0.0
        %5084 = vmatpush1.msra.mxu0 0.0
        %5085 = vmatprep.subr.mxu0 0.0
        %5086 = vmatpush1.msra.mxu0 0.0
        %5087 = vmatprep.subr.mxu0 0.0
        %5088 = vmatpush1.msra.mxu0 0.0
        %5089 = vmatprep.subr.mxu0 0.0
        %5090 = vmatpush1.msra.mxu0 0.0
        %5091 = vmatprep.subr.mxu0 0.0
        %5092 = vmatpush1.msra.mxu0 0.0
        %5093 = vmatprep.subr.mxu0 0.0
        %5094 = vmatpush1.msra.mxu0 0.0
        %5095 = vmatprep.subr.mxu0 0.0
        %5096 = vmatpush1.msra.mxu0 0.0
        %5097 = vmatprep.subr.mxu0 0.0
        %5098 = vmatpush1.msra.mxu0 0.0
        %5099 = vmatprep.subr.mxu0 0.0
        %5100 = vmatpush1.msra.mxu0 0.0
        %5101 = vmatprep.subr.mxu0 0.0
        %5102 = vmatpush1.msra.mxu0 0.0
        %5103 = vmatprep.subr.mxu0 0.0
        %5104 = vmatpush1.msra.mxu0 0.0
        %5105 = vmatprep.subr.mxu0 0.0
        %5106 = vmatpush1.msra.mxu0 0.0
        %5107 = vmatprep.subr.mxu0 0.0
        %5108 = vmatpush1.msra.mxu0 0.0
        %5109 = vmatprep.subr.mxu0 0.0
        %5110 = vmatpush1.msra.mxu0 0.0
        %5111 = vmatprep.subr.mxu0 0.0
        %5112 = vmatpush1.msra.mxu0 0.0
        %5113 = vmatprep.subr.mxu0 0.0
        %5114 = vmatpush1.msra.mxu0 0.0
        %5115 = vmatprep.subr.mxu0 0.0
        %5116 = vmatpush1.msra.mxu0 0.0
        %5117 = vmatprep.subr.mxu0 0.0
        %5118 = vmatpush1.msra.mxu0 0.0
        %5119 = vmatprep.mubr.f32.mxu0 0.0
        %5120 = vmatmul.mubr.f32.gmra.mrb[0].mxu0 %v5050
        %v5121 = vpop.f32.mrb[0].mxu0
        %v5122 = vadd.f32 0.0, %v5121
        %v5123 = vpop.f32.mrb[0].mxu0
        %5124 = vmatprep.mubr.f32.mxu0 0.0
        %5125 = vmatmul.mubr.f32.gmra.mrb[0].mxu0 %v5053
        %v5126 = vpop.f32.mrb[0].mxu0
        %v5127 = vadd.f32 0.0, %v5126
        %v5128 = vpop.f32.mrb[0].mxu0
        %5129 = vdwg.mxu0
        %v5130 = vadd.f32 %v3978, %v5122
        %v5131 = vadd.f32 %v3979, %v5127
        %5132 = vst.msk [vmem:[%s371] sm:$0xff] %vm394, %v5130
        %5133 = vst.msk [vmem:[%s371 + $0x8] sm:$0xff] %vm394, %v5131
        %s5134 = sand.u32 %s252, 1
        %s5135 = scalar_lea.sflag [#allocation3], %s5134
        %s5136 = sand.u32 %s252, 1
        %s5137 = smul.addr %s5136, 16
        %s5138 = scalar_lea.vmem [#allocation2], %s5137
        // Predicated region
        $region61: #{tpu_custom_call.1} parent=59 // pred_check
          %p5139 = pneg %p262
        $region62: #{tpu_custom_call.1} parent=59 // pred_check_branch
          %5141 = sbr.rel (%p5139) target = $region64
        $region63: #{tpu_custom_call.1} parent=59 // pred_region
          %s5142 = smul.u32 2, %s24
          %s5144 = ssub.s32 256, 256
          %5145 = vsyncadd %s5135, %s5144
          %s5146 = smul.addr %s5142, 128
          %s5147 = scalar_lea.hbm %s10, %s5146
          %s5148 = sshll.u32 %s5138, 4
          %s5149 = int_to_ptr.vmem [resolvable:$true] %s5148
          %5154 = dma.vmem_to_hbm [thread:$0]  %s5149, 256, %s5147, %s5135, 128, 128, 8
        $region64: #{tpu_custom_call.1} parent=59 // pred_fallthru
          _
      $region60: #{tpu_custom_call.1} parent=5 // pred_fallthru
        _
      %p5155 = scmp.le.s32.totalorder 2, %s19
      // Predicated region
      $region65: #{tpu_custom_call.1} parent=5 // pred_check
        %p5156 = pneg %p5155
      $region66: #{tpu_custom_call.1} parent=5 // pred_check_branch
        %5158 = sbr.rel (%p5156) target = $region68
      $region67: #{tpu_custom_call.1} parent=5 // pred_region
        %s5159 = ssub.s32 %s19, 2
        // Predicated region
        $region69: #{tpu_custom_call.1} parent=67 // pred_check
          %p5160 = pneg %p268
        $region70: #{tpu_custom_call.1} parent=67 // pred_check_branch
          %5162 = sbr.rel (%p5160) target = $region72
        $region71: #{tpu_custom_call.1} parent=67 // pred_region
          %s5163 = sand.u32 %s253, 1
          %s5164 = scalar_lea.sflag [#allocation3], %s5163
          %s5165 = sand.u32 %s253, 1
          %s5166 = smul.addr %s5165, 16
          %s5167 = scalar_lea.vmem [#allocation2], %s5166
          %5168 = dma.done %s5164, 256
        $region72: #{tpu_custom_call.1} parent=67 // pred_fallthru
          _
      $region68: #{tpu_custom_call.1} parent=5 // pred_fallthru
        _
    $region6: #{tpu_custom_call.1} parent=1 // loop_footer
      %s23 = sadd.s32 1, %s19
    $region7: #{tpu_custom_call.1} parent=1 // loop_footer_branch
      %18 = sbr.rel target = $region3
    $region8: #{tpu_custom_call.1} parent=1 // loop_exit
      _
    %5169 = vsyncpa [#allocation3], 1
    %s5170 = scalar_lea.sflag [#allocation3], 1
    %5171 = vsyncpa %s5170, 1

</llo_original>
